<compile_context>
chip_gen: v6e
topology: v6e:2x2x1
jax: 0.10.0
libtpu: 0.0.40
codegen_flags: <defaults>
</compile_context>

<pallas_src>
import math
import functools

import jax
import jax.numpy as jnp
from jax import lax
from jax.experimental import pallas as pl
from jax.experimental.pallas import tpu as pltpu

# Explicit scoped-VMEM budget: raises v5e's 16 MiB default, stays well under
# v7x's 64 MiB physical VMEM.
_VMEM_LIMIT = 32 * 1024 * 1024


# ----------------------------------------------------------------------------
# Helpers
# ----------------------------------------------------------------------------

def _pick_tile(dim, target, granule):
    """Largest tile <= target that divides dim and is a multiple of `granule`;
    falls back to the full dim (full-extent blocks are always legal)."""
    if dim <= target:
        return dim
    t = (min(target, dim) // granule) * granule
    while t >= granule:
        if dim % t == 0:
            return t
        t -= granule
    return dim


def _erf(x):
    # Abramowitz & Stegun 7.1.26 rational approximation (|err| < 1.5e-7, ~f32
    # eps) built only from exp/abs/where so it lowers on every TPU generation.
    # Used for the exact (erf-based) nn.GELU epilogue fused into fc1.
    a1, a2, a3, a4, a5 = (0.254829592, -0.284496736, 1.421413741,
                          -1.453152027, 1.061405429)
    p = 0.3275911
    sgn = jnp.where(x < 0.0, -1.0, 1.0)
    ax = jnp.abs(x)
    t = 1.0 / (1.0 + p * ax)
    poly = ((((a5 * t + a4) * t + a3) * t + a2) * t + a1) * t
    return sgn * (1.0 - poly * jnp.exp(-(ax * ax)))


# ----------------------------------------------------------------------------
# Tiled linear kernel: y = [LN](x) @ W [+ b] [-> activation] [+ residual]
# ----------------------------------------------------------------------------

def _make_linear_kernel(nk, fuse_ln, has_bias, has_res, activation):
    def kernel(*refs):
        it = iter(refs)
        x_ref = next(it)
        if fuse_ln:
            g_ref, bln_ref = next(it), next(it)
        w_ref = next(it)
        b_ref = next(it) if has_bias else None
        r_ref = next(it) if has_res else None
        o_ref = next(it)
        acc_ref = next(it)

        k_idx = pl.program_id(2)

        @pl.when(k_idx == 0)
        def _():
            acc_ref[...] = jnp.zeros_like(acc_ref)

        x = x_ref[...]
        if fuse_ln:                      # LayerNorm over the (full) K axis, f32
            mean = jnp.mean(x, axis=-1, keepdims=True)
            xc = x - mean
            var = jnp.mean(xc * xc, axis=-1, keepdims=True)
            x = xc * lax.rsqrt(var + 1e-5) * g_ref[...] + bln_ref[...]

        # bf16 MXU inputs, f32 accumulation.
        acc_ref[...] += jnp.dot(x.astype(jnp.bfloat16),
                                w_ref[...].astype(jnp.bfloat16),
                                preferred_element_type=jnp.float32)

        @pl.when(k_idx == nk - 1)
        def _():
            y = acc_ref[...]
            if has_bias:
                y = y + b_ref[...]
            if activation == "erf_gelu":        # nn.GELU (exact, erf-based)
                y = 0.5 * y * (1.0 + _erf(y * (1.0 / math.sqrt(2.0))))
            elif activation == "tanh_gelu":     # NewGELUActivation
                c = math.sqrt(2.0 / math.pi)
                y = 0.5 * y * (1.0 + jnp.tanh(c * (y + 0.044715 * (y * y * y))))
            if has_res:
                y = y + r_ref[...]              # fused residual add
            o_ref[...] = y

    return kernel


def linear(x, w, b=None, *, activation=None, residual=None,
           ln_gamma=None, ln_beta=None, tm=256, tn=256, tk=512):
    """x: (M, K) f32, w: (K, N) f32 -> (M, N) f32 (tiled, pipelined)."""
    M, K = x.shape
    N = w.shape[1]
    fuse_ln = ln_gamma is not None
    has_bias = b is not None
    has_res = residual is not None

    tm = _pick_tile(M, tm, 8)
    tn = _pick_tile(N, tn, 128)
    tk = K if fuse_ln else _pick_tile(K, tk, 128)   # LN needs the full row
    nm, nn, nk = M // tm, N // tn, K // tk

    operands = [x]
    in_specs = [pl.BlockSpec((tm, tk), lambda i, j, k: (i, k))]
    if fuse_ln:
        operands += [ln_gamma.reshape(1, K), ln_beta.reshape(1, K)]
        in_specs += [pl.BlockSpec((1, K), lambda i, j, k: (0, 0)),
                     pl.BlockSpec((1, K), lambda i, j, k: (0, 0))]
    operands.append(w)
    in_specs.append(pl.BlockSpec((tk, tn), lambda i, j, k: (k, j)))
    if has_bias:
        operands.append(b.reshape(1, N))
        in_specs.append(pl.BlockSpec((1, tn), lambda i, j, k: (0, j)))
    if has_res:
        operands.append(residual)
        in_specs.append(pl.BlockSpec((tm, tn), lambda i, j, k: (i, j)))

    kernel = _make_linear_kernel(nk, fuse_ln, has_bias, has_res, activation)
    return pl.pallas_call(
        kernel,
        out_shape=jax.ShapeDtypeStruct((M, N), jnp.float32),
        grid_spec=pltpu.PrefetchScalarGridSpec(
            num_scalar_prefetch=0,
            grid=(nm, nn, nk),
            in_specs=in_specs,
            out_specs=pl.BlockSpec((tm, tn), lambda i, j, k: (i, j)),
            scratch_shapes=[pltpu.VMEM((tm, tn), jnp.float32)]),
        compiler_params=pltpu.CompilerParams(
            dimension_semantics=("parallel", "parallel", "arbitrary"),
            vmem_limit_bytes=_VMEM_LIMIT),
    )(*operands)


# ----------------------------------------------------------------------------
# Causal attention core: per-(batch, head) softmax(QK^T / sqrt(D)) V
# ----------------------------------------------------------------------------

def _attn_core_kernel(q_ref, k_ref, v_ref, o_ref, *, scale):
    q = q_ref[0, 0].astype(jnp.bfloat16)            # (T, D)
    k = k_ref[0, 0].astype(jnp.bfloat16)
    v = v_ref[0, 0].astype(jnp.bfloat16)
    # Contract over D without an explicit transpose.
    s = lax.dot_general(q, k, (((1,), (1,)), ((), ())),
                        preferred_element_type=jnp.float32) * scale
    T = s.shape[0]
    rows = lax.broadcasted_iota(jnp.int32, (T, T), 0)
    cols = lax.broadcasted_iota(jnp.int32, (T, T), 1)
    s = jnp.where(cols <= rows, s, -1e30)           # large finite mask (NaN-safe)
    s = s - jnp.max(s, axis=-1, keepdims=True)
    p = jnp.exp(s)
    p = p * pl.reciprocal(jnp.sum(p, axis=-1, keepdims=True), approx=False)
    o_ref[0, 0] = jnp.dot(p.astype(jnp.bfloat16), v,
                          preferred_element_type=jnp.float32)


def attn_core(q, k, v):
    """q/k/v: (B, H, T, D) f32 -> (B, H, T, D) f32."""
    B, H, T, D = q.shape
    kernel = functools.partial(_attn_core_kernel, scale=1.0 / math.sqrt(D))
    spec = pl.BlockSpec((1, 1, T, D), lambda b, h: (b, h, 0, 0))
    # TODO(synk): for long sequences, replace with a flash-style online-softmax
    # kernel that streams K/V tiles instead of holding the (T, T) score block.
    return pl.pallas_call(
        kernel,
        grid=(B, H),
        out_shape=jax.ShapeDtypeStruct((B, H, T, D), jnp.float32),
        in_specs=[spec, spec, spec],
        out_specs=spec,
        compiler_params=pltpu.CompilerParams(
            dimension_semantics=("parallel", "parallel"),
            vmem_limit_bytes=_VMEM_LIMIT),
    )(q, k, v)


def attention_block(x2d, blk, n_head, B, T, C):
    """x = x + proj(causal_attn(ln1(x)));  x2d: (B*T, C)."""
    D = C // n_head
    # ln1 fused into the packed [q|k|v] projection (one tiled matmul).
    qkv = linear(x2d, blk["w_qkv"], blk["b_qkv"],
                 ln_gamma=blk["ln1_g"], ln_beta=blk["ln1_b"])     # (B*T, 3C)
    qkv = qkv.reshape(B, T, 3, n_head, D)
    q = jnp.transpose(qkv[:, :, 0], (0, 2, 1, 3))                 # (B, H, T, D)
    k = jnp.transpose(qkv[:, :, 1], (0, 2, 1, 3))
    v = jnp.transpose(qkv[:, :, 2], (0, 2, 1, 3))
    y = attn_core(q, k, v)                                        # (B, H, T, D)
    y2d = jnp.transpose(y, (0, 2, 1, 3)).reshape(B * T, C)
    # Output projection with the residual add fused into the kernel epilogue.
    return linear(y2d, blk["wo"], blk["bo"], residual=x2d)


# ----------------------------------------------------------------------------
# Parameter construction (mirrors GPT_Model._init_weights)
# ----------------------------------------------------------------------------

def init_params(key, *, vocab_size, block_size, n_embd, n_head, n_layer,
                mlp_mid=1000, mlp_mid_pad=1024):
    C = n_embd

    def normal(k, shape):
        return 0.02 * jax.random.normal(k, shape, dtype=jnp.float32)

    ks = iter(jax.random.split(key, 2 + 6 * n_layer))
    params = {
        "tok_emb": normal(next(ks), (vocab_size, C)),
        "pos_emb": jnp.zeros((1, block_size, C), jnp.float32),   # torch.zeros
        "ln_f_g": jnp.ones((C,), jnp.float32),
        "ln_f_b": jnp.zeros((C,), jnp.float32),
        # head: Linear(C, vocab, bias=False); stored (in, out)
        "head_w": normal(next(ks), (C, vocab_size)),
        "blocks": [],
    }
    pad = mlp_mid_pad - mlp_mid
    for _ in range(n_layer):
        blk = {
            "ln1_g": jnp.ones((C,), jnp.float32), "ln1_b": jnp.zeros((C,), jnp.float32),
            "ln2_g": jnp.ones((C,), jnp.float32), "ln2_b": jnp.zeros((C,), jnp.float32),
            # packed [query | key | value] projection weights, stored (in, out)
            "w_qkv": normal(next(ks), (C, 3 * C)),
            "b_qkv": jnp.zeros((3 * C,), jnp.float32),
            "wo": normal(next(ks), (C, C)), "bo": jnp.zeros((C,), jnp.float32),
            # mlp: Linear(C,4C) -> GELU -> Linear(4C,C) -> Linear(C,1000)
            #      -> NewGELU -> Linear(1000,C) -> Dropout(identity)
            "w1": normal(next(ks), (C, 4 * C)), "b1": jnp.zeros((4 * C,), jnp.float32),
            "w2": normal(next(ks), (4 * C, C)), "b2": jnp.zeros((C,), jnp.float32),
            # 1000 is zero-padded to 1024 for 128-lane-dense tiles; padded
            # columns/rows are zero (and NewGELU(0)=0) so the math is identical
            # to the 1000-wide hidden layer.
            "w3": jnp.pad(normal(next(ks), (C, mlp_mid)), ((0, 0), (0, pad))),
            "b3": jnp.zeros((mlp_mid_pad,), jnp.float32),
            "w4": jnp.pad(normal(next(ks), (mlp_mid, C)), ((0, pad), (0, 0))),
            "b4": jnp.zeros((C,), jnp.float32),
        }
        params["blocks"].append(blk)
    return params


# ----------------------------------------------------------------------------
# Forward pass
# ----------------------------------------------------------------------------

def gpt_forward(params, idx, n_head, block_size, targets=None):
    B, T = idx.shape
    assert T <= block_size, "Cannot forward, model block size is exhausted."
    C = params["tok_emb"].shape[1]

    # TODO(synk): embedding gather + positional add stay as plain-JAX glue
    # (jnp.take); a DMA-gather Pallas kernel is possible but not worth it here.
    tok = jnp.take(params["tok_emb"], idx, axis=0)                # (B, T, C)
    x = tok + params["pos_emb"][:, :T, :]
    # drop1 / drop2: identity (eval-mode semantics)
    x2d = x.reshape(B * T, C)

    for blk in params["blocks"]:
        # x = x + attn(ln1(x))      [ln1 + residual fused into the matmuls]
        x2d = attention_block(x2d, blk, n_head, B, T, C)
        # x = x + mlp(ln2(x))       [ln2 + erf-GELU fused into fc1, NewGELU
        #                            into fc3, residual into fc4]
        h = linear(x2d, blk["w1"], blk["b1"], activation="erf_gelu",
                   ln_gamma=blk["ln2_g"], ln_beta=blk["ln2_b"])
        h = linear(h, blk["w2"], blk["b2"])
        h = linear(h, blk["w3"], blk["b3"], activation="tanh_gelu")
        x2d = linear(h, blk["w4"], blk["b4"], residual=x2d)

    vocab = params["head_w"].shape[1]
    # ln_f fused into the bias-free vocab head (no dummy bias DMA).
    logits = linear(x2d, params["head_w"], None,
                    ln_gamma=params["ln_f_g"], ln_beta=params["ln_f_b"])
    logits = logits.reshape(B, T, vocab)

    loss = None
    if targets is not None:
        # cross_entropy (plain-JAX glue)
        lse = jax.nn.logsumexp(logits.reshape(-1, vocab), axis=-1)
        picked = jnp.take_along_axis(
            logits.reshape(-1, vocab), targets.reshape(-1, 1), axis=-1)[:, 0]
        loss = jnp.mean(lse - picked)
    return logits, loss


# ----------------------------------------------------------------------------
# Main
# ----------------------------------------------------------------------------

if __name__ == "__main__":
    VOCAB = 128
    BLOCK_SIZE = 16
    N_EMBD = 128
    N_HEAD = 4
    N_LAYER = 2
    B, T = 2, 16

    key = jax.random.PRNGKey(0)
    pkey, ikey = jax.random.split(key)
    params = init_params(pkey, vocab_size=VOCAB, block_size=BLOCK_SIZE,
                         n_embd=N_EMBD, n_head=N_HEAD, n_layer=N_LAYER)
    idx = jax.random.randint(ikey, (B, T), 0, VOCAB, dtype=jnp.int32)

    fwd = jax.jit(functools.partial(gpt_forward, n_head=N_HEAD,
                                    block_size=BLOCK_SIZE))
    logits, loss = fwd(params, idx)
    logits = jax.block_until_ready(logits)

    assert logits.shape == (B, T, VOCAB)
    assert bool(jnp.all(jnp.isfinite(logits)))
    print("KERNEL_OK")
</pallas_src>

<mosaic_0001>
module attributes {stable_mosaic.version = 11 : i64} {
  func.func @kernel(%arg0: i32, %arg1: i32, %arg2: i32, %arg3: memref<32x128xf32, #tpu.memory_space<vmem>>, %arg4: memref<1x128xf32, #tpu.memory_space<vmem>>, %arg5: memref<1x128xf32, #tpu.memory_space<vmem>>, %arg6: memref<128x128xf32, #tpu.memory_space<vmem>>, %arg7: memref<1x128xf32, #tpu.memory_space<vmem>>, %arg8: memref<32x128xf32, #tpu.memory_space<vmem>>, %arg9: memref<32x128xf32, #tpu.memory_space<vmem>>) attributes {dimension_semantics = [#tpu.dimension_semantics<parallel>, #tpu.dimension_semantics<parallel>, #tpu.dimension_semantics<arbitrary>], iteration_bounds = array<i64: 1, 3, 1>, scalar_prefetch = 0 : i64, scratch_operands = 1 : i64, tpu.core_type = #tpu.core_type<tc>, window_params = [{transform_indices = @transform_0, window_bounds = array<i64: 32, 128>}, {pipeline_mode = #tpu.pipeline_mode<synchronous>, transform_indices = @transform_1, window_bounds = array<i64: 1, 128>}, {pipeline_mode = #tpu.pipeline_mode<synchronous>, transform_indices = @transform_2, window_bounds = array<i64: 1, 128>}, {transform_indices = @transform_3, window_bounds = array<i64: 128, 128>}, {transform_indices = @transform_4, window_bounds = array<i64: 1, 128>}, {transform_indices = @transform_5, window_bounds = array<i64: 32, 128>}]} {
    %c0_i32 = arith.constant 0 : i32
    %0 = arith.cmpi eq, %arg2, %c0_i32 : i32
    %1 = arith.extui %0 : i1 to i32
    %c0_i32_0 = arith.constant 0 : i32
    %2 = arith.cmpi ne, %1, %c0_i32_0 : i32
    scf.if %2 {
      %cst_19 = arith.constant 0.000000e+00 : f32
      %36 = vector.broadcast %cst_19 : f32 to vector<32x128xf32>
      %c0_20 = arith.constant 0 : index
      %c0_21 = arith.constant 0 : index
      %37 = vector.load %arg9[%c0_20, %c0_21] : memref<32x128xf32, #tpu.memory_space<vmem>>, vector<32x128xf32>
      tpu.vector_store %arg9[%c0_20, %c0_21], %36 {strides = array<i32>} : memref<32x128xf32, #tpu.memory_space<vmem>>, vector<32x128xf32>,
    } else {
    }
    %c0 = arith.constant 0 : index
    %c0_1 = arith.constant 0 : index
    %3 = vector.load %arg3[%c0, %c0_1] : memref<32x128xf32, #tpu.memory_space<vmem>>, vector<32x128xf32>
    %cst = arith.constant dense<0.000000e+00> : vector<32xf32>
    %4 = vector.multi_reduction <add>, %3, %cst [1] : vector<32x128xf32> to vector<32xf32>
    %5 = vector.shape_cast %4 : vector<32xf32> to vector<32x1xf32>
    %cst_2 = arith.constant 1.280000e+02 : f32
    %6 = vector.broadcast %cst_2 : f32 to vector<32x1xf32>
    %7 = arith.divf %5, %6 : vector<32x1xf32>
    %8 = vector.broadcast %7 : vector<32x1xf32> to vector<32x128xf32>
    %9 = arith.subf %3, %8 : vector<32x128xf32>
    %10 = arith.mulf %9, %9 : vector<32x128xf32>
    %cst_3 = arith.constant dense<0.000000e+00> : vector<32xf32>
    %11 = vector.multi_reduction <add>, %10, %cst_3 [1] : vector<32x128xf32> to vector<32xf32>
    %12 = vector.shape_cast %11 : vector<32xf32> to vector<32x1xf32>
    %cst_4 = arith.constant 1.280000e+02 : f32
    %13 = vector.broadcast %cst_4 : f32 to vector<32x1xf32>
    %14 = arith.divf %12, %13 : vector<32x1xf32>
    %cst_5 = arith.constant 9.99999974E-6 : f32
    %15 = vector.broadcast %cst_5 : f32 to vector<32x1xf32>
    %16 = arith.addf %14, %15 : vector<32x1xf32>
    %17 = math.rsqrt %16 : vector<32x1xf32>
    %18 = vector.broadcast %17 : vector<32x1xf32> to vector<32x128xf32>
    %19 = arith.mulf %9, %18 : vector<32x128xf32>
    %c0_6 = arith.constant 0 : index
    %c0_7 = arith.constant 0 : index
    %20 = vector.load %arg4[%c0_6, %c0_7] : memref<1x128xf32, #tpu.memory_space<vmem>>, vector<1x128xf32>
    %21 = vector.broadcast %20 : vector<1x128xf32> to vector<32x128xf32>
    %22 = arith.mulf %19, %21 : vector<32x128xf32>
    %c0_8 = arith.constant 0 : index
    %c0_9 = arith.constant 0 : index
    %23 = vector.load %arg5[%c0_8, %c0_9] : memref<1x128xf32, #tpu.memory_space<vmem>>, vector<1x128xf32>
    %24 = vector.broadcast %23 : vector<1x128xf32> to vector<32x128xf32>
    %25 = arith.addf %22, %24 : vector<32x128xf32>
    %c0_10 = arith.constant 0 : index
    %c0_11 = arith.constant 0 : index
    %26 = vector.load %arg9[%c0_10, %c0_11] : memref<32x128xf32, #tpu.memory_space<vmem>>, vector<32x128xf32>
    %27 = arith.truncf %25 : vector<32x128xf32> to vector<32x128xbf16>
    %c0_12 = arith.constant 0 : index
    %c0_13 = arith.constant 0 : index
    %28 = vector.load %arg6[%c0_12, %c0_13] : memref<128x128xf32, #tpu.memory_space<vmem>>, vector<128x128xf32>
    %29 = arith.truncf %28 : vector<128x128xf32> to vector<128x128xbf16>
    %cst_14 = arith.constant dense<0.000000e+00> : vector<32x128xf32>
    %30 = tpu.matmul %27, %29, %cst_14 {dimension_numbers = #tpu.dot_dimension_numbers<[1], [0], [0], [1], [0, 0, 1, 1], [], []>} : vector<32x128xbf16>, vector<128x128xbf16>, vector<32x128xf32> -> vector<32x128xf32>
    %31 = arith.addf %26, %30 : vector<32x128xf32>
    %c0_15 = arith.constant 0 : index
    %c0_16 = arith.constant 0 : index
    %32 = vector.load %arg9[%c0_15, %c0_16] : memref<32x128xf32, #tpu.memory_space<vmem>>, vector<32x128xf32>
    tpu.vector_store %arg9[%c0_15, %c0_16], %31 {strides = array<i32>} : memref<32x128xf32, #tpu.memory_space<vmem>>, vector<32x128xf32>,
    %c0_i32_17 = arith.constant 0 : i32
    %33 = arith.cmpi eq, %arg2, %c0_i32_17 : i32
    %34 = arith.extui %33 : i1 to i32
    %c0_i32_18 = arith.constant 0 : i32
    %35 = arith.cmpi ne, %34, %c0_i32_18 : i32
    scf.if %35 {
      %c0_19 = arith.constant 0 : index
      %c0_20 = arith.constant 0 : index
      %36 = vector.load %arg9[%c0_19, %c0_20] : memref<32x128xf32, #tpu.memory_space<vmem>>, vector<32x128xf32>
      %c0_21 = arith.constant 0 : index
      %c0_22 = arith.constant 0 : index
      %37 = vector.load %arg7[%c0_21, %c0_22] : memref<1x128xf32, #tpu.memory_space<vmem>>, vector<1x128xf32>
      %38 = vector.broadcast %37 : vector<1x128xf32> to vector<32x128xf32>
      %39 = arith.addf %36, %38 : vector<32x128xf32>
      %c0_23 = arith.constant 0 : index
      %c0_24 = arith.constant 0 : index
      %40 = vector.load %arg8[%c0_23, %c0_24] : memref<32x128xf32, #tpu.memory_space<vmem>>, vector<32x128xf32>
      tpu.vector_store %arg8[%c0_23, %c0_24], %39 {strides = array<i32>} : memref<32x128xf32, #tpu.memory_space<vmem>>, vector<32x128xf32>,
    } else {
    }
    return
  }
  func.func @transform_0(%arg0: i32, %arg1: i32, %arg2: i32) -> (i32, i32) {
    %c0_i32 = arith.constant 0 : i32
    return %arg0, %arg2 : i32, i32
  }
  func.func @transform_1(%arg0: i32, %arg1: i32, %arg2: i32) -> (i32, i32) {
    %c0_i32 = arith.constant 0 : i32
    %c0_i32_0 = arith.constant 0 : i32
    %c0_i32_1 = arith.constant 0 : i32
    return %c0_i32, %c0_i32_0 : i32, i32
  }
  func.func @transform_2(%arg0: i32, %arg1: i32, %arg2: i32) -> (i32, i32) {
    %c0_i32 = arith.constant 0 : i32
    %c0_i32_0 = arith.constant 0 : i32
    %c0_i32_1 = arith.constant 0 : i32
    return %c0_i32, %c0_i32_0 : i32, i32
  }
  func.func @transform_3(%arg0: i32, %arg1: i32, %arg2: i32) -> (i32, i32) {
    %c0_i32 = arith.constant 0 : i32
    return %arg2, %arg1 : i32, i32
  }
  func.func @transform_4(%arg0: i32, %arg1: i32, %arg2: i32) -> (i32, i32) {
    %c0_i32 = arith.constant 0 : i32
    %c0_i32_0 = arith.constant 0 : i32
    return %c0_i32, %arg1 : i32, i32
  }
  func.func @transform_5(%arg0: i32, %arg1: i32, %arg2: i32) -> (i32, i32) {
    %c0_i32 = arith.constant 0 : i32
    return %arg0, %arg1 : i32, i32
  }
}

module attributes {stable_mosaic.version = 11 : i64} {
  func.func @_attn_core_kernel(%arg0: i32, %arg1: i32, %arg2: memref<1x1x16x32xf32, #tpu.memory_space<vmem>>, %arg3: memref<1x1x16x32xf32, #tpu.memory_space<vmem>>, %arg4: memref<1x1x16x32xf32, #tpu.memory_space<vmem>>, %arg5: memref<1x1x16x32xf32, #tpu.memory_space<vmem>>) attributes {dimension_semantics = [#tpu.dimension_semantics<parallel>, #tpu.dimension_semantics<parallel>], iteration_bounds = array<i64: 2, 4>, scalar_prefetch = 0 : i64, scratch_operands = 0 : i64, tpu.core_type = #tpu.core_type<tc>, window_params = [{transform_indices = @transform_0, window_bounds = array<i64: 1, 1, 16, 32>}, {transform_indices = @transform_1, window_bounds = array<i64: 1, 1, 16, 32>}, {transform_indices = @transform_2, window_bounds = array<i64: 1, 1, 16, 32>}, {transform_indices = @transform_3, window_bounds = array<i64: 1, 1, 16, 32>}]} {
    %c0 = arith.constant 0 : index
    %c0_0 = arith.constant 0 : index
    %c0_1 = arith.constant 0 : index
    %c0_2 = arith.constant 0 : index
    %0 = vector.load %arg2[%c0, %c0_0, %c0_1, %c0_2] : memref<1x1x16x32xf32, #tpu.memory_space<vmem>>, vector<1x1x16x32xf32>
    %1 = vector.shape_cast %0 : vector<1x1x16x32xf32> to vector<16x32xf32>
    %2 = arith.truncf %1 : vector<16x32xf32> to vector<16x32xbf16>
    %c0_3 = arith.constant 0 : index
    %c0_4 = arith.constant 0 : index
    %c0_5 = arith.constant 0 : index
    %c0_6 = arith.constant 0 : index
    %3 = vector.load %arg3[%c0_3, %c0_4, %c0_5, %c0_6] : memref<1x1x16x32xf32, #tpu.memory_space<vmem>>, vector<1x1x16x32xf32>
    %4 = vector.shape_cast %3 : vector<1x1x16x32xf32> to vector<16x32xf32>
    %5 = arith.truncf %4 : vector<16x32xf32> to vector<16x32xbf16>
    %c0_7 = arith.constant 0 : index
    %c0_8 = arith.constant 0 : index
    %c0_9 = arith.constant 0 : index
    %c0_10 = arith.constant 0 : index
    %6 = vector.load %arg4[%c0_7, %c0_8, %c0_9, %c0_10] : memref<1x1x16x32xf32, #tpu.memory_space<vmem>>, vector<1x1x16x32xf32>
    %7 = vector.shape_cast %6 : vector<1x1x16x32xf32> to vector<16x32xf32>
    %8 = arith.truncf %7 : vector<16x32xf32> to vector<16x32xbf16>
    %cst = arith.constant dense<0.000000e+00> : vector<16x16xf32>
    %9 = tpu.matmul %2, %5, %cst {dimension_numbers = #tpu.dot_dimension_numbers<[1], [1], [0], [0], [0, 0, 1, 0], [], []>} : vector<16x32xbf16>, vector<16x32xbf16>, vector<16x16xf32> -> vector<16x16xf32>
    %cst_11 = arith.constant 0.176776692 : f32
    %10 = vector.broadcast %cst_11 : f32 to vector<16x16xf32>
    %11 = arith.mulf %9, %10 : vector<16x16xf32>
    %12 = tpu.iota {dimensions = array<i32: 0>} : vector<16x16xi32>
    %13 = tpu.iota {dimensions = array<i32: 1>} : vector<16x16xi32>
    %14 = arith.cmpi sle, %13, %12 : vector<16x16xi32>
    %cst_12 = arith.constant -1.000000e+30 : f32
    %15 = vector.broadcast %cst_12 : f32 to vector<16x16xf32>
    %16 = arith.select %14, %11, %15 : vector<16x16xi1>, vector<16x16xf32>
    %cst_13 = arith.constant dense<0xFF800000> : vector<16xf32>
    %17 = vector.multi_reduction <maximumf>, %16, %cst_13 [1] : vector<16x16xf32> to vector<16xf32>
    %18 = vector.shape_cast %17 : vector<16xf32> to vector<16x1xf32>
    %19 = vector.broadcast %18 : vector<16x1xf32> to vector<16x16xf32>
    %20 = arith.subf %16, %19 : vector<16x16xf32>
    %21 = math.exp %20 : vector<16x16xf32>
    %cst_14 = arith.constant dense<0.000000e+00> : vector<16xf32>
    %22 = vector.multi_reduction <add>, %21, %cst_14 [1] : vector<16x16xf32> to vector<16xf32>
    %23 = vector.shape_cast %22 : vector<16xf32> to vector<16x1xf32>
    %24 = tpu.reciprocal %23 : vector<16x1xf32> -> vector<16x1xf32>
    %25 = vector.broadcast %24 : vector<16x1xf32> to vector<16x16xf32>
    %26 = arith.mulf %21, %25 : vector<16x16xf32>
    %27 = arith.truncf %26 : vector<16x16xf32> to vector<16x16xbf16>
    %cst_15 = arith.constant dense<0.000000e+00> : vector<16x32xf32>
    %28 = tpu.matmul %27, %8, %cst_15 {dimension_numbers = #tpu.dot_dimension_numbers<[1], [0], [0], [1], [0, 0, 1, 1], [], []>} : vector<16x16xbf16>, vector<16x32xbf16>, vector<16x32xf32> -> vector<16x32xf32>
    %c0_16 = arith.constant 0 : index
    %c0_17 = arith.constant 0 : index
    %c0_18 = arith.constant 0 : index
    %c0_19 = arith.constant 0 : index
    %29 = vector.load %arg5[%c0_16, %c0_17, %c0_18, %c0_19] : memref<1x1x16x32xf32, #tpu.memory_space<vmem>>, vector<1x1x16x32xf32>
    %30 = vector.shape_cast %29 : vector<1x1x16x32xf32> to vector<16x32xf32>
    %31 = vector.shape_cast %28 : vector<16x32xf32> to vector<1x1x16x32xf32>
    tpu.vector_store %arg5[%c0_16, %c0_17, %c0_18, %c0_19], %31 {strides = array<i32>} : memref<1x1x16x32xf32, #tpu.memory_space<vmem>>, vector<1x1x16x32xf32>,
    return
  }
  func.func @transform_0(%arg0: i32, %arg1: i32) -> (i32, i32, i32, i32) {
    %c0_i32 = arith.constant 0 : i32
    %c0_i32_0 = arith.constant 0 : i32
    %c0_i32_1 = arith.constant 0 : i32
    return %arg0, %arg1, %c0_i32, %c0_i32_0 : i32, i32, i32, i32
  }
  func.func @transform_1(%arg0: i32, %arg1: i32) -> (i32, i32, i32, i32) {
    %c0_i32 = arith.constant 0 : i32
    %c0_i32_0 = arith.constant 0 : i32
    %c0_i32_1 = arith.constant 0 : i32
    return %arg0, %arg1, %c0_i32, %c0_i32_0 : i32, i32, i32, i32
  }
  func.func @transform_2(%arg0: i32, %arg1: i32) -> (i32, i32, i32, i32) {
    %c0_i32 = arith.constant 0 : i32
    %c0_i32_0 = arith.constant 0 : i32
    %c0_i32_1 = arith.constant 0 : i32
    return %arg0, %arg1, %c0_i32, %c0_i32_0 : i32, i32, i32, i32
  }
  func.func @transform_3(%arg0: i32, %arg1: i32) -> (i32, i32, i32, i32) {
    %c0_i32 = arith.constant 0 : i32
    %c0_i32_0 = arith.constant 0 : i32
    %c0_i32_1 = arith.constant 0 : i32
    return %arg0, %arg1, %c0_i32, %c0_i32_0 : i32, i32, i32, i32
  }
}

module attributes {stable_mosaic.version = 11 : i64} {
  func.func @kernel(%arg0: i32, %arg1: i32, %arg2: i32, %arg3: memref<32x128xf32, #tpu.memory_space<vmem>>, %arg4: memref<128x128xf32, #tpu.memory_space<vmem>>, %arg5: memref<1x128xf32, #tpu.memory_space<vmem>>, %arg6: memref<32x128xf32, #tpu.memory_space<vmem>>, %arg7: memref<32x128xf32, #tpu.memory_space<vmem>>, %arg8: memref<32x128xf32, #tpu.memory_space<vmem>>) attributes {dimension_semantics = [#tpu.dimension_semantics<parallel>, #tpu.dimension_semantics<parallel>, #tpu.dimension_semantics<arbitrary>], iteration_bounds = array<i64: 1, 1, 1>, scalar_prefetch = 0 : i64, scratch_operands = 1 : i64, tpu.core_type = #tpu.core_type<tc>, window_params = [{transform_indices = @transform_0, window_bounds = array<i64: 32, 128>}, {transform_indices = @transform_1, window_bounds = array<i64: 128, 128>}, {transform_indices = @transform_2, window_bounds = array<i64: 1, 128>}, {transform_indices = @transform_3, window_bounds = array<i64: 32, 128>}, {transform_indices = @transform_4, window_bounds = array<i64: 32, 128>}]} {
    %c0_i32 = arith.constant 0 : i32
    %0 = arith.cmpi eq, %arg2, %c0_i32 : i32
    %1 = arith.extui %0 : i1 to i32
    %c0_i32_0 = arith.constant 0 : i32
    %2 = arith.cmpi ne, %1, %c0_i32_0 : i32
    scf.if %2 {
      %cst_10 = arith.constant 0.000000e+00 : f32
      %14 = vector.broadcast %cst_10 : f32 to vector<32x128xf32>
      %c0_11 = arith.constant 0 : index
      %c0_12 = arith.constant 0 : index
      %15 = vector.load %arg8[%c0_11, %c0_12] : memref<32x128xf32, #tpu.memory_space<vmem>>, vector<32x128xf32>
      tpu.vector_store %arg8[%c0_11, %c0_12], %14 {strides = array<i32>} : memref<32x128xf32, #tpu.memory_space<vmem>>, vector<32x128xf32>,
    } else {
    }
    %c0 = arith.constant 0 : index
    %c0_1 = arith.constant 0 : index
    %3 = vector.load %arg3[%c0, %c0_1] : memref<32x128xf32, #tpu.memory_space<vmem>>, vector<32x128xf32>
    %c0_2 = arith.constant 0 : index
    %c0_3 = arith.constant 0 : index
    %4 = vector.load %arg8[%c0_2, %c0_3] : memref<32x128xf32, #tpu.memory_space<vmem>>, vector<32x128xf32>
    %5 = arith.truncf %3 : vector<32x128xf32> to vector<32x128xbf16>
    %c0_4 = arith.constant 0 : index
    %c0_5 = arith.constant 0 : index
    %6 = vector.load %arg4[%c0_4, %c0_5] : memref<128x128xf32, #tpu.memory_space<vmem>>, vector<128x128xf32>
    %7 = arith.truncf %6 : vector<128x128xf32> to vector<128x128xbf16>
    %cst = arith.constant dense<0.000000e+00> : vector<32x128xf32>
    %8 = tpu.matmul %5, %7, %cst {dimension_numbers = #tpu.dot_dimension_numbers<[1], [0], [0], [1], [0, 0, 1, 1], [], []>} : vector<32x128xbf16>, vector<128x128xbf16>, vector<32x128xf32> -> vector<32x128xf32>
    %9 = arith.addf %4, %8 : vector<32x128xf32>
    %c0_6 = arith.constant 0 : index
    %c0_7 = arith.constant 0 : index
    %10 = vector.load %arg8[%c0_6, %c0_7] : memref<32x128xf32, #tpu.memory_space<vmem>>, vector<32x128xf32>
    tpu.vector_store %arg8[%c0_6, %c0_7], %9 {strides = array<i32>} : memref<32x128xf32, #tpu.memory_space<vmem>>, vector<32x128xf32>,
    %c0_i32_8 = arith.constant 0 : i32
    %11 = arith.cmpi eq, %arg2, %c0_i32_8 : i32
    %12 = arith.extui %11 : i1 to i32
    %c0_i32_9 = arith.constant 0 : i32
    %13 = arith.cmpi ne, %12, %c0_i32_9 : i32
    scf.if %13 {
      %c0_10 = arith.constant 0 : index
      %c0_11 = arith.constant 0 : index
      %14 = vector.load %arg8[%c0_10, %c0_11] : memref<32x128xf32, #tpu.memory_space<vmem>>, vector<32x128xf32>
      %c0_12 = arith.constant 0 : index
      %c0_13 = arith.constant 0 : index
      %15 = vector.load %arg5[%c0_12, %c0_13] : memref<1x128xf32, #tpu.memory_space<vmem>>, vector<1x128xf32>
      %16 = vector.broadcast %15 : vector<1x128xf32> to vector<32x128xf32>
      %17 = arith.addf %14, %16 : vector<32x128xf32>
      %c0_14 = arith.constant 0 : index
      %c0_15 = arith.constant 0 : index
      %18 = vector.load %arg6[%c0_14, %c0_15] : memref<32x128xf32, #tpu.memory_space<vmem>>, vector<32x128xf32>
      %19 = arith.addf %17, %18 : vector<32x128xf32>
      %c0_16 = arith.constant 0 : index
      %c0_17 = arith.constant 0 : index
      %20 = vector.load %arg7[%c0_16, %c0_17] : memref<32x128xf32, #tpu.memory_space<vmem>>, vector<32x128xf32>
      tpu.vector_store %arg7[%c0_16, %c0_17], %19 {strides = array<i32>} : memref<32x128xf32, #tpu.memory_space<vmem>>, vector<32x128xf32>,
    } else {
    }
    return
  }
  func.func @transform_0(%arg0: i32, %arg1: i32, %arg2: i32) -> (i32, i32) {
    %c0_i32 = arith.constant 0 : i32
    return %arg0, %arg2 : i32, i32
  }
  func.func @transform_1(%arg0: i32, %arg1: i32, %arg2: i32) -> (i32, i32) {
    %c0_i32 = arith.constant 0 : i32
    return %arg2, %arg1 : i32, i32
  }
  func.func @transform_2(%arg0: i32, %arg1: i32, %arg2: i32) -> (i32, i32) {
    %c0_i32 = arith.constant 0 : i32
    %c0_i32_0 = arith.constant 0 : i32
    return %c0_i32, %arg1 : i32, i32
  }
  func.func @transform_3(%arg0: i32, %arg1: i32, %arg2: i32) -> (i32, i32) {
    %c0_i32 = arith.constant 0 : i32
    return %arg0, %arg1 : i32, i32
  }
  func.func @transform_4(%arg0: i32, %arg1: i32, %arg2: i32) -> (i32, i32) {
    %c0_i32 = arith.constant 0 : i32
    return %arg0, %arg1 : i32, i32
  }
}

module attributes {stable_mosaic.version = 11 : i64} {
  func.func @kernel(%arg0: i32, %arg1: i32, %arg2: i32, %arg3: memref<32x128xf32, #tpu.memory_space<vmem>>, %arg4: memref<1x128xf32, #tpu.memory_space<vmem>>, %arg5: memref<1x128xf32, #tpu.memory_space<vmem>>, %arg6: memref<128x256xf32, #tpu.memory_space<vmem>>, %arg7: memref<1x256xf32, #tpu.memory_space<vmem>>, %arg8: memref<32x256xf32, #tpu.memory_space<vmem>>, %arg9: memref<32x256xf32, #tpu.memory_space<vmem>>) attributes {dimension_semantics = [#tpu.dimension_semantics<parallel>, #tpu.dimension_semantics<parallel>, #tpu.dimension_semantics<arbitrary>], iteration_bounds = array<i64: 1, 2, 1>, scalar_prefetch = 0 : i64, scratch_operands = 1 : i64, tpu.core_type = #tpu.core_type<tc>, window_params = [{transform_indices = @transform_0, window_bounds = array<i64: 32, 128>}, {pipeline_mode = #tpu.pipeline_mode<synchronous>, transform_indices = @transform_1, window_bounds = array<i64: 1, 128>}, {pipeline_mode = #tpu.pipeline_mode<synchronous>, transform_indices = @transform_2, window_bounds = array<i64: 1, 128>}, {transform_indices = @transform_3, window_bounds = array<i64: 128, 256>}, {transform_indices = @transform_4, window_bounds = array<i64: 1, 256>}, {transform_indices = @transform_5, window_bounds = array<i64: 32, 256>}]} {
    %c0_i32 = arith.constant 0 : i32
    %0 = arith.cmpi eq, %arg2, %c0_i32 : i32
    %1 = arith.extui %0 : i1 to i32
    %c0_i32_0 = arith.constant 0 : i32
    %2 = arith.cmpi ne, %1, %c0_i32_0 : i32
    scf.if %2 {
      %cst_19 = arith.constant 0.000000e+00 : f32
      %36 = vector.broadcast %cst_19 : f32 to vector<32x256xf32>
      %c0_20 = arith.constant 0 : index
      %c0_21 = arith.constant 0 : index
      %37 = vector.load %arg9[%c0_20, %c0_21] : memref<32x256xf32, #tpu.memory_space<vmem>>, vector<32x256xf32>
      tpu.vector_store %arg9[%c0_20, %c0_21], %36 {strides = array<i32>} : memref<32x256xf32, #tpu.memory_space<vmem>>, vector<32x256xf32>,
    } else {
    }
    %c0 = arith.constant 0 : index
    %c0_1 = arith.constant 0 : index
    %3 = vector.load %arg3[%c0, %c0_1] : memref<32x128xf32, #tpu.memory_space<vmem>>, vector<32x128xf32>
    %cst = arith.constant dense<0.000000e+00> : vector<32xf32>
    %4 = vector.multi_reduction <add>, %3, %cst [1] : vector<32x128xf32> to vector<32xf32>
    %5 = vector.shape_cast %4 : vector<32xf32> to vector<32x1xf32>
    %cst_2 = arith.constant 1.280000e+02 : f32
    %6 = vector.broadcast %cst_2 : f32 to vector<32x1xf32>
    %7 = arith.divf %5, %6 : vector<32x1xf32>
    %8 = vector.broadcast %7 : vector<32x1xf32> to vector<32x128xf32>
    %9 = arith.subf %3, %8 : vector<32x128xf32>
    %10 = arith.mulf %9, %9 : vector<32x128xf32>
    %cst_3 = arith.constant dense<0.000000e+00> : vector<32xf32>
    %11 = vector.multi_reduction <add>, %10, %cst_3 [1] : vector<32x128xf32> to vector<32xf32>
    %12 = vector.shape_cast %11 : vector<32xf32> to vector<32x1xf32>
    %cst_4 = arith.constant 1.280000e+02 : f32
    %13 = vector.broadcast %cst_4 : f32 to vector<32x1xf32>
    %14 = arith.divf %12, %13 : vector<32x1xf32>
    %cst_5 = arith.constant 9.99999974E-6 : f32
    %15 = vector.broadcast %cst_5 : f32 to vector<32x1xf32>
    %16 = arith.addf %14, %15 : vector<32x1xf32>
    %17 = math.rsqrt %16 : vector<32x1xf32>
    %18 = vector.broadcast %17 : vector<32x1xf32> to vector<32x128xf32>
    %19 = arith.mulf %9, %18 : vector<32x128xf32>
    %c0_6 = arith.constant 0 : index
    %c0_7 = arith.constant 0 : index
    %20 = vector.load %arg4[%c0_6, %c0_7] : memref<1x128xf32, #tpu.memory_space<vmem>>, vector<1x128xf32>
    %21 = vector.broadcast %20 : vector<1x128xf32> to vector<32x128xf32>
    %22 = arith.mulf %19, %21 : vector<32x128xf32>
    %c0_8 = arith.constant 0 : index
    %c0_9 = arith.constant 0 : index
    %23 = vector.load %arg5[%c0_8, %c0_9] : memref<1x128xf32, #tpu.memory_space<vmem>>, vector<1x128xf32>
    %24 = vector.broadcast %23 : vector<1x128xf32> to vector<32x128xf32>
    %25 = arith.addf %22, %24 : vector<32x128xf32>
    %c0_10 = arith.constant 0 : index
    %c0_11 = arith.constant 0 : index
    %26 = vector.load %arg9[%c0_10, %c0_11] : memref<32x256xf32, #tpu.memory_space<vmem>>, vector<32x256xf32>
    %27 = arith.truncf %25 : vector<32x128xf32> to vector<32x128xbf16>
    %c0_12 = arith.constant 0 : index
    %c0_13 = arith.constant 0 : index
    %28 = vector.load %arg6[%c0_12, %c0_13] : memref<128x256xf32, #tpu.memory_space<vmem>>, vector<128x256xf32>
    %29 = arith.truncf %28 : vector<128x256xf32> to vector<128x256xbf16>
    %cst_14 = arith.constant dense<0.000000e+00> : vector<32x256xf32>
    %30 = tpu.matmul %27, %29, %cst_14 {dimension_numbers = #tpu.dot_dimension_numbers<[1], [0], [0], [1], [0, 0, 1, 1], [], []>} : vector<32x128xbf16>, vector<128x256xbf16>, vector<32x256xf32> -> vector<32x256xf32>
    %31 = arith.addf %26, %30 : vector<32x256xf32>
    %c0_15 = arith.constant 0 : index
    %c0_16 = arith.constant 0 : index
    %32 = vector.load %arg9[%c0_15, %c0_16] : memref<32x256xf32, #tpu.memory_space<vmem>>, vector<32x256xf32>
    tpu.vector_store %arg9[%c0_15, %c0_16], %31 {strides = array<i32>} : memref<32x256xf32, #tpu.memory_space<vmem>>, vector<32x256xf32>,
    %c0_i32_17 = arith.constant 0 : i32
    %33 = arith.cmpi eq, %arg2, %c0_i32_17 : i32
    %34 = arith.extui %33 : i1 to i32
    %c0_i32_18 = arith.constant 0 : i32
    %35 = arith.cmpi ne, %34, %c0_i32_18 : i32
    scf.if %35 {
      %c0_19 = arith.constant 0 : index
      %c0_20 = arith.constant 0 : index
      %36 = vector.load %arg9[%c0_19, %c0_20] : memref<32x256xf32, #tpu.memory_space<vmem>>, vector<32x256xf32>
      %c0_21 = arith.constant 0 : index
      %c0_22 = arith.constant 0 : index
      %37 = vector.load %arg7[%c0_21, %c0_22] : memref<1x256xf32, #tpu.memory_space<vmem>>, vector<1x256xf32>
      %38 = vector.broadcast %37 : vector<1x256xf32> to vector<32x256xf32>
      %39 = arith.addf %36, %38 : vector<32x256xf32>
      %cst_23 = arith.constant 5.000000e-01 : f32
      %40 = vector.broadcast %cst_23 : f32 to vector<32x256xf32>
      %41 = arith.mulf %40, %39 : vector<32x256xf32>
      %cst_24 = arith.constant 0.707106769 : f32
      %42 = vector.broadcast %cst_24 : f32 to vector<32x256xf32>
      %43 = arith.mulf %39, %42 : vector<32x256xf32>
      %cst_25 = arith.constant 0.000000e+00 : f32
      %44 = vector.broadcast %cst_25 : f32 to vector<32x256xf32>
      %45 = arith.cmpf olt, %43, %44 : vector<32x256xf32>
      %cst_26 = arith.constant -1.000000e+00 : f32
      %cst_27 = arith.constant 1.000000e+00 : f32
      %46 = vector.broadcast %cst_26 : f32 to vector<32x256xf32>
      %47 = vector.broadcast %cst_27 : f32 to vector<32x256xf32>
      %48 = arith.select %45, %46, %47 : vector<32x256xi1>, vector<32x256xf32>
      %49 = math.absf %43 : vector<32x256xf32>
      %cst_28 = arith.constant 0.327591091 : f32
      %50 = vector.broadcast %cst_28 : f32 to vector<32x256xf32>
      %51 = arith.mulf %50, %49 : vector<32x256xf32>
      %cst_29 = arith.constant 1.000000e+00 : f32
      %52 = vector.broadcast %cst_29 : f32 to vector<32x256xf32>
      %53 = arith.addf %52, %51 : vector<32x256xf32>
      %cst_30 = arith.constant 1.000000e+00 : f32
      %54 = vector.broadcast %cst_30 : f32 to vector<32x256xf32>
      %55 = arith.divf %54, %53 : vector<32x256xf32>
      %cst_31 = arith.constant 1.06140542 : f32
      %56 = vector.broadcast %cst_31 : f32 to vector<32x256xf32>
      %57 = arith.mulf %56, %55 : vector<32x256xf32>
      %cst_32 = arith.constant -1.45315206 : f32
      %58 = vector.broadcast %cst_32 : f32 to vector<32x256xf32>
      %59 = arith.addf %57, %58 : vector<32x256xf32>
      %60 = arith.mulf %59, %55 : vector<32x256xf32>
      %cst_33 = arith.constant 1.42141378 : f32
      %61 = vector.broadcast %cst_33 : f32 to vector<32x256xf32>
      %62 = arith.addf %60, %61 : vector<32x256xf32>
      %63 = arith.mulf %62, %55 : vector<32x256xf32>
      %cst_34 = arith.constant -0.284496725 : f32
      %64 = vector.broadcast %cst_34 : f32 to vector<32x256xf32>
      %65 = arith.addf %63, %64 : vector<32x256xf32>
      %66 = arith.mulf %65, %55 : vector<32x256xf32>
      %cst_35 = arith.constant 0.254829586 : f32
      %67 = vector.broadcast %cst_35 : f32 to vector<32x256xf32>
      %68 = arith.addf %66, %67 : vector<32x256xf32>
      %69 = arith.mulf %68, %55 : vector<32x256xf32>
      %70 = arith.mulf %49, %49 : vector<32x256xf32>
      %cst_36 = arith.constant 0.000000e+00 : f32
      %71 = vector.broadcast %cst_36 : f32 to vector<32x256xf32>
      %72 = arith.subf %71, %70 : vector<32x256xf32>
      %73 = math.exp %72 : vector<32x256xf32>
      %74 = arith.mulf %69, %73 : vector<32x256xf32>
      %cst_37 = arith.constant 1.000000e+00 : f32
      %75 = vector.broadcast %cst_37 : f32 to vector<32x256xf32>
      %76 = arith.subf %75, %74 : vector<32x256xf32>
      %77 = arith.mulf %48, %76 : vector<32x256xf32>
      %cst_38 = arith.constant 1.000000e+00 : f32
      %78 = vector.broadcast %cst_38 : f32 to vector<32x256xf32>
      %79 = arith.addf %78, %77 : vector<32x256xf32>
      %80 = arith.mulf %41, %79 : vector<32x256xf32>
      %c0_39 = arith.constant 0 : index
      %c0_40 = arith.constant 0 : index
      %81 = vector.load %arg8[%c0_39, %c0_40] : memref<32x256xf32, #tpu.memory_space<vmem>>, vector<32x256xf32>
      tpu.vector_store %arg8[%c0_39, %c0_40], %80 {strides = array<i32>} : memref<32x256xf32, #tpu.memory_space<vmem>>, vector<32x256xf32>,
    } else {
    }
    return
  }
  func.func @transform_0(%arg0: i32, %arg1: i32, %arg2: i32) -> (i32, i32) {
    %c0_i32 = arith.constant 0 : i32
    return %arg0, %arg2 : i32, i32
  }
  func.func @transform_1(%arg0: i32, %arg1: i32, %arg2: i32) -> (i32, i32) {
    %c0_i32 = arith.constant 0 : i32
    %c0_i32_0 = arith.constant 0 : i32
    %c0_i32_1 = arith.constant 0 : i32
    return %c0_i32, %c0_i32_0 : i32, i32
  }
  func.func @transform_2(%arg0: i32, %arg1: i32, %arg2: i32) -> (i32, i32) {
    %c0_i32 = arith.constant 0 : i32
    %c0_i32_0 = arith.constant 0 : i32
    %c0_i32_1 = arith.constant 0 : i32
    return %c0_i32, %c0_i32_0 : i32, i32
  }
  func.func @transform_3(%arg0: i32, %arg1: i32, %arg2: i32) -> (i32, i32) {
    %c0_i32 = arith.constant 0 : i32
    return %arg2, %arg1 : i32, i32
  }
  func.func @transform_4(%arg0: i32, %arg1: i32, %arg2: i32) -> (i32, i32) {
    %c0_i32 = arith.constant 0 : i32
    %c0_i32_0 = arith.constant 0 : i32
    return %c0_i32, %arg1 : i32, i32
  }
  func.func @transform_5(%arg0: i32, %arg1: i32, %arg2: i32) -> (i32, i32) {
    %c0_i32 = arith.constant 0 : i32
    return %arg0, %arg1 : i32, i32
  }
}

module attributes {stable_mosaic.version = 11 : i64} {
  func.func @kernel(%arg0: i32, %arg1: i32, %arg2: i32, %arg3: memref<32x512xf32, #tpu.memory_space<vmem>>, %arg4: memref<512x128xf32, #tpu.memory_space<vmem>>, %arg5: memref<1x128xf32, #tpu.memory_space<vmem>>, %arg6: memref<32x128xf32, #tpu.memory_space<vmem>>, %arg7: memref<32x128xf32, #tpu.memory_space<vmem>>) attributes {dimension_semantics = [#tpu.dimension_semantics<parallel>, #tpu.dimension_semantics<parallel>, #tpu.dimension_semantics<arbitrary>], iteration_bounds = array<i64: 1, 1, 1>, scalar_prefetch = 0 : i64, scratch_operands = 1 : i64, tpu.core_type = #tpu.core_type<tc>, window_params = [{transform_indices = @transform_0, window_bounds = array<i64: 32, 512>}, {transform_indices = @transform_1, window_bounds = array<i64: 512, 128>}, {transform_indices = @transform_2, window_bounds = array<i64: 1, 128>}, {transform_indices = @transform_3, window_bounds = array<i64: 32, 128>}]} {
    %c0_i32 = arith.constant 0 : i32
    %0 = arith.cmpi eq, %arg2, %c0_i32 : i32
    %1 = arith.extui %0 : i1 to i32
    %c0_i32_0 = arith.constant 0 : i32
    %2 = arith.cmpi ne, %1, %c0_i32_0 : i32
    scf.if %2 {
      %cst_10 = arith.constant 0.000000e+00 : f32
      %14 = vector.broadcast %cst_10 : f32 to vector<32x128xf32>
      %c0_11 = arith.constant 0 : index
      %c0_12 = arith.constant 0 : index
      %15 = vector.load %arg7[%c0_11, %c0_12] : memref<32x128xf32, #tpu.memory_space<vmem>>, vector<32x128xf32>
      tpu.vector_store %arg7[%c0_11, %c0_12], %14 {strides = array<i32>} : memref<32x128xf32, #tpu.memory_space<vmem>>, vector<32x128xf32>,
    } else {
    }
    %c0 = arith.constant 0 : index
    %c0_1 = arith.constant 0 : index
    %3 = vector.load %arg3[%c0, %c0_1] : memref<32x512xf32, #tpu.memory_space<vmem>>, vector<32x512xf32>
    %c0_2 = arith.constant 0 : index
    %c0_3 = arith.constant 0 : index
    %4 = vector.load %arg7[%c0_2, %c0_3] : memref<32x128xf32, #tpu.memory_space<vmem>>, vector<32x128xf32>
    %5 = arith.truncf %3 : vector<32x512xf32> to vector<32x512xbf16>
    %c0_4 = arith.constant 0 : index
    %c0_5 = arith.constant 0 : index
    %6 = vector.load %arg4[%c0_4, %c0_5] : memref<512x128xf32, #tpu.memory_space<vmem>>, vector<512x128xf32>
    %7 = arith.truncf %6 : vector<512x128xf32> to vector<512x128xbf16>
    %cst = arith.constant dense<0.000000e+00> : vector<32x128xf32>
    %8 = tpu.matmul %5, %7, %cst {dimension_numbers = #tpu.dot_dimension_numbers<[1], [0], [0], [1], [0, 0, 1, 1], [], []>} : vector<32x512xbf16>, vector<512x128xbf16>, vector<32x128xf32> -> vector<32x128xf32>
    %9 = arith.addf %4, %8 : vector<32x128xf32>
    %c0_6 = arith.constant 0 : index
    %c0_7 = arith.constant 0 : index
    %10 = vector.load %arg7[%c0_6, %c0_7] : memref<32x128xf32, #tpu.memory_space<vmem>>, vector<32x128xf32>
    tpu.vector_store %arg7[%c0_6, %c0_7], %9 {strides = array<i32>} : memref<32x128xf32, #tpu.memory_space<vmem>>, vector<32x128xf32>,
    %c0_i32_8 = arith.constant 0 : i32
    %11 = arith.cmpi eq, %arg2, %c0_i32_8 : i32
    %12 = arith.extui %11 : i1 to i32
    %c0_i32_9 = arith.constant 0 : i32
    %13 = arith.cmpi ne, %12, %c0_i32_9 : i32
    scf.if %13 {
      %c0_10 = arith.constant 0 : index
      %c0_11 = arith.constant 0 : index
      %14 = vector.load %arg7[%c0_10, %c0_11] : memref<32x128xf32, #tpu.memory_space<vmem>>, vector<32x128xf32>
      %c0_12 = arith.constant 0 : index
      %c0_13 = arith.constant 0 : index
      %15 = vector.load %arg5[%c0_12, %c0_13] : memref<1x128xf32, #tpu.memory_space<vmem>>, vector<1x128xf32>
      %16 = vector.broadcast %15 : vector<1x128xf32> to vector<32x128xf32>
      %17 = arith.addf %14, %16 : vector<32x128xf32>
      %c0_14 = arith.constant 0 : index
      %c0_15 = arith.constant 0 : index
      %18 = vector.load %arg6[%c0_14, %c0_15] : memref<32x128xf32, #tpu.memory_space<vmem>>, vector<32x128xf32>
      tpu.vector_store %arg6[%c0_14, %c0_15], %17 {strides = array<i32>} : memref<32x128xf32, #tpu.memory_space<vmem>>, vector<32x128xf32>,
    } else {
    }
    return
  }
  func.func @transform_0(%arg0: i32, %arg1: i32, %arg2: i32) -> (i32, i32) {
    %c0_i32 = arith.constant 0 : i32
    return %arg0, %arg2 : i32, i32
  }
  func.func @transform_1(%arg0: i32, %arg1: i32, %arg2: i32) -> (i32, i32) {
    %c0_i32 = arith.constant 0 : i32
    return %arg2, %arg1 : i32, i32
  }
  func.func @transform_2(%arg0: i32, %arg1: i32, %arg2: i32) -> (i32, i32) {
    %c0_i32 = arith.constant 0 : i32
    %c0_i32_0 = arith.constant 0 : i32
    return %c0_i32, %arg1 : i32, i32
  }
  func.func @transform_3(%arg0: i32, %arg1: i32, %arg2: i32) -> (i32, i32) {
    %c0_i32 = arith.constant 0 : i32
    return %arg0, %arg1 : i32, i32
  }
}

module attributes {stable_mosaic.version = 11 : i64} {
  func.func @kernel(%arg0: i32, %arg1: i32, %arg2: i32, %arg3: memref<32x128xf32, #tpu.memory_space<vmem>>, %arg4: memref<128x256xf32, #tpu.memory_space<vmem>>, %arg5: memref<1x256xf32, #tpu.memory_space<vmem>>, %arg6: memref<32x256xf32, #tpu.memory_space<vmem>>, %arg7: memref<32x256xf32, #tpu.memory_space<vmem>>) attributes {dimension_semantics = [#tpu.dimension_semantics<parallel>, #tpu.dimension_semantics<parallel>, #tpu.dimension_semantics<arbitrary>], iteration_bounds = array<i64: 1, 4, 1>, scalar_prefetch = 0 : i64, scratch_operands = 1 : i64, tpu.core_type = #tpu.core_type<tc>, window_params = [{transform_indices = @transform_0, window_bounds = array<i64: 32, 128>}, {transform_indices = @transform_1, window_bounds = array<i64: 128, 256>}, {transform_indices = @transform_2, window_bounds = array<i64: 1, 256>}, {transform_indices = @transform_3, window_bounds = array<i64: 32, 256>}]} {
    %c0_i32 = arith.constant 0 : i32
    %0 = arith.cmpi eq, %arg2, %c0_i32 : i32
    %1 = arith.extui %0 : i1 to i32
    %c0_i32_0 = arith.constant 0 : i32
    %2 = arith.cmpi ne, %1, %c0_i32_0 : i32
    scf.if %2 {
      %cst_10 = arith.constant 0.000000e+00 : f32
      %14 = vector.broadcast %cst_10 : f32 to vector<32x256xf32>
      %c0_11 = arith.constant 0 : index
      %c0_12 = arith.constant 0 : index
      %15 = vector.load %arg7[%c0_11, %c0_12] : memref<32x256xf32, #tpu.memory_space<vmem>>, vector<32x256xf32>
      tpu.vector_store %arg7[%c0_11, %c0_12], %14 {strides = array<i32>} : memref<32x256xf32, #tpu.memory_space<vmem>>, vector<32x256xf32>,
    } else {
    }
    %c0 = arith.constant 0 : index
    %c0_1 = arith.constant 0 : index
    %3 = vector.load %arg3[%c0, %c0_1] : memref<32x128xf32, #tpu.memory_space<vmem>>, vector<32x128xf32>
    %c0_2 = arith.constant 0 : index
    %c0_3 = arith.constant 0 : index
    %4 = vector.load %arg7[%c0_2, %c0_3] : memref<32x256xf32, #tpu.memory_space<vmem>>, vector<32x256xf32>
    %5 = arith.truncf %3 : vector<32x128xf32> to vector<32x128xbf16>
    %c0_4 = arith.constant 0 : index
    %c0_5 = arith.constant 0 : index
    %6 = vector.load %arg4[%c0_4, %c0_5] : memref<128x256xf32, #tpu.memory_space<vmem>>, vector<128x256xf32>
    %7 = arith.truncf %6 : vector<128x256xf32> to vector<128x256xbf16>
    %cst = arith.constant dense<0.000000e+00> : vector<32x256xf32>
    %8 = tpu.matmul %5, %7, %cst {dimension_numbers = #tpu.dot_dimension_numbers<[1], [0], [0], [1], [0, 0, 1, 1], [], []>} : vector<32x128xbf16>, vector<128x256xbf16>, vector<32x256xf32> -> vector<32x256xf32>
    %9 = arith.addf %4, %8 : vector<32x256xf32>
    %c0_6 = arith.constant 0 : index
    %c0_7 = arith.constant 0 : index
    %10 = vector.load %arg7[%c0_6, %c0_7] : memref<32x256xf32, #tpu.memory_space<vmem>>, vector<32x256xf32>
    tpu.vector_store %arg7[%c0_6, %c0_7], %9 {strides = array<i32>} : memref<32x256xf32, #tpu.memory_space<vmem>>, vector<32x256xf32>,
    %c0_i32_8 = arith.constant 0 : i32
    %11 = arith.cmpi eq, %arg2, %c0_i32_8 : i32
    %12 = arith.extui %11 : i1 to i32
    %c0_i32_9 = arith.constant 0 : i32
    %13 = arith.cmpi ne, %12, %c0_i32_9 : i32
    scf.if %13 {
      %c0_10 = arith.constant 0 : index
      %c0_11 = arith.constant 0 : index
      %14 = vector.load %arg7[%c0_10, %c0_11] : memref<32x256xf32, #tpu.memory_space<vmem>>, vector<32x256xf32>
      %c0_12 = arith.constant 0 : index
      %c0_13 = arith.constant 0 : index
      %15 = vector.load %arg5[%c0_12, %c0_13] : memref<1x256xf32, #tpu.memory_space<vmem>>, vector<1x256xf32>
      %16 = vector.broadcast %15 : vector<1x256xf32> to vector<32x256xf32>
      %17 = arith.addf %14, %16 : vector<32x256xf32>
      %cst_14 = arith.constant 5.000000e-01 : f32
      %18 = vector.broadcast %cst_14 : f32 to vector<32x256xf32>
      %19 = arith.mulf %18, %17 : vector<32x256xf32>
      %20 = arith.mulf %17, %17 : vector<32x256xf32>
      %21 = arith.mulf %20, %17 : vector<32x256xf32>
      %cst_15 = arith.constant 4.471500e-02 : f32
      %22 = vector.broadcast %cst_15 : f32 to vector<32x256xf32>
      %23 = arith.mulf %22, %21 : vector<32x256xf32>
      %24 = arith.addf %17, %23 : vector<32x256xf32>
      %cst_16 = arith.constant 0.797884583 : f32
      %25 = vector.broadcast %cst_16 : f32 to vector<32x256xf32>
      %26 = arith.mulf %25, %24 : vector<32x256xf32>
      %27 = math.tanh %26 : vector<32x256xf32>
      %cst_17 = arith.constant 1.000000e+00 : f32
      %28 = vector.broadcast %cst_17 : f32 to vector<32x256xf32>
      %29 = arith.addf %28, %27 : vector<32x256xf32>
      %30 = arith.mulf %19, %29 : vector<32x256xf32>
      %c0_18 = arith.constant 0 : index
      %c0_19 = arith.constant 0 : index
      %31 = vector.load %arg6[%c0_18, %c0_19] : memref<32x256xf32, #tpu.memory_space<vmem>>, vector<32x256xf32>
      tpu.vector_store %arg6[%c0_18, %c0_19], %30 {strides = array<i32>} : memref<32x256xf32, #tpu.memory_space<vmem>>, vector<32x256xf32>,
    } else {
    }
    return
  }
  func.func @transform_0(%arg0: i32, %arg1: i32, %arg2: i32) -> (i32, i32) {
    %c0_i32 = arith.constant 0 : i32
    return %arg0, %arg2 : i32, i32
  }
  func.func @transform_1(%arg0: i32, %arg1: i32, %arg2: i32) -> (i32, i32) {
    %c0_i32 = arith.constant 0 : i32
    return %arg2, %arg1 : i32, i32
  }
  func.func @transform_2(%arg0: i32, %arg1: i32, %arg2: i32) -> (i32, i32) {
    %c0_i32 = arith.constant 0 : i32
    %c0_i32_0 = arith.constant 0 : i32
    return %c0_i32, %arg1 : i32, i32
  }
  func.func @transform_3(%arg0: i32, %arg1: i32, %arg2: i32) -> (i32, i32) {
    %c0_i32 = arith.constant 0 : i32
    return %arg0, %arg1 : i32, i32
  }
}

module attributes {stable_mosaic.version = 11 : i64} {
  func.func @kernel(%arg0: i32, %arg1: i32, %arg2: i32, %arg3: memref<32x512xf32, #tpu.memory_space<vmem>>, %arg4: memref<512x128xf32, #tpu.memory_space<vmem>>, %arg5: memref<1x128xf32, #tpu.memory_space<vmem>>, %arg6: memref<32x128xf32, #tpu.memory_space<vmem>>, %arg7: memref<32x128xf32, #tpu.memory_space<vmem>>, %arg8: memref<32x128xf32, #tpu.memory_space<vmem>>) attributes {dimension_semantics = [#tpu.dimension_semantics<parallel>, #tpu.dimension_semantics<parallel>, #tpu.dimension_semantics<arbitrary>], iteration_bounds = array<i64: 1, 1, 2>, scalar_prefetch = 0 : i64, scratch_operands = 1 : i64, tpu.core_type = #tpu.core_type<tc>, window_params = [{transform_indices = @transform_0, window_bounds = array<i64: 32, 512>}, {transform_indices = @transform_1, window_bounds = array<i64: 512, 128>}, {transform_indices = @transform_2, window_bounds = array<i64: 1, 128>}, {transform_indices = @transform_3, window_bounds = array<i64: 32, 128>}, {transform_indices = @transform_4, window_bounds = array<i64: 32, 128>}]} {
    %c0_i32 = arith.constant 0 : i32
    %0 = arith.cmpi eq, %arg2, %c0_i32 : i32
    %1 = arith.extui %0 : i1 to i32
    %c0_i32_0 = arith.constant 0 : i32
    %2 = arith.cmpi ne, %1, %c0_i32_0 : i32
    scf.if %2 {
      %cst_9 = arith.constant 0.000000e+00 : f32
      %14 = vector.broadcast %cst_9 : f32 to vector<32x128xf32>
      %c0_10 = arith.constant 0 : index
      %c0_11 = arith.constant 0 : index
      %15 = vector.load %arg8[%c0_10, %c0_11] : memref<32x128xf32, #tpu.memory_space<vmem>>, vector<32x128xf32>
      tpu.vector_store %arg8[%c0_10, %c0_11], %14 {strides = array<i32>} : memref<32x128xf32, #tpu.memory_space<vmem>>, vector<32x128xf32>,
    } else {
    }
    %c0 = arith.constant 0 : index
    %c0_1 = arith.constant 0 : index
    %3 = vector.load %arg3[%c0, %c0_1] : memref<32x512xf32, #tpu.memory_space<vmem>>, vector<32x512xf32>
    %c0_2 = arith.constant 0 : index
    %c0_3 = arith.constant 0 : index
    %4 = vector.load %arg8[%c0_2, %c0_3] : memref<32x128xf32, #tpu.memory_space<vmem>>, vector<32x128xf32>
    %5 = arith.truncf %3 : vector<32x512xf32> to vector<32x512xbf16>
    %c0_4 = arith.constant 0 : index
    %c0_5 = arith.constant 0 : index
    %6 = vector.load %arg4[%c0_4, %c0_5] : memref<512x128xf32, #tpu.memory_space<vmem>>, vector<512x128xf32>
    %7 = arith.truncf %6 : vector<512x128xf32> to vector<512x128xbf16>
    %cst = arith.constant dense<0.000000e+00> : vector<32x128xf32>
    %8 = tpu.matmul %5, %7, %cst {dimension_numbers = #tpu.dot_dimension_numbers<[1], [0], [0], [1], [0, 0, 1, 1], [], []>} : vector<32x512xbf16>, vector<512x128xbf16>, vector<32x128xf32> -> vector<32x128xf32>
    %9 = arith.addf %4, %8 : vector<32x128xf32>
    %c0_6 = arith.constant 0 : index
    %c0_7 = arith.constant 0 : index
    %10 = vector.load %arg8[%c0_6, %c0_7] : memref<32x128xf32, #tpu.memory_space<vmem>>, vector<32x128xf32>
    tpu.vector_store %arg8[%c0_6, %c0_7], %9 {strides = array<i32>} : memref<32x128xf32, #tpu.memory_space<vmem>>, vector<32x128xf32>,
    %c1_i32 = arith.constant 1 : i32
    %11 = arith.cmpi eq, %arg2, %c1_i32 : i32
    %12 = arith.extui %11 : i1 to i32
    %c0_i32_8 = arith.constant 0 : i32
    %13 = arith.cmpi ne, %12, %c0_i32_8 : i32
    scf.if %13 {
      %c0_9 = arith.constant 0 : index
      %c0_10 = arith.constant 0 : index
      %14 = vector.load %arg8[%c0_9, %c0_10] : memref<32x128xf32, #tpu.memory_space<vmem>>, vector<32x128xf32>
      %c0_11 = arith.constant 0 : index
      %c0_12 = arith.constant 0 : index
      %15 = vector.load %arg5[%c0_11, %c0_12] : memref<1x128xf32, #tpu.memory_space<vmem>>, vector<1x128xf32>
      %16 = vector.broadcast %15 : vector<1x128xf32> to vector<32x128xf32>
      %17 = arith.addf %14, %16 : vector<32x128xf32>
      %c0_13 = arith.constant 0 : index
      %c0_14 = arith.constant 0 : index
      %18 = vector.load %arg6[%c0_13, %c0_14] : memref<32x128xf32, #tpu.memory_space<vmem>>, vector<32x128xf32>
      %19 = arith.addf %17, %18 : vector<32x128xf32>
      %c0_15 = arith.constant 0 : index
      %c0_16 = arith.constant 0 : index
      %20 = vector.load %arg7[%c0_15, %c0_16] : memref<32x128xf32, #tpu.memory_space<vmem>>, vector<32x128xf32>
      tpu.vector_store %arg7[%c0_15, %c0_16], %19 {strides = array<i32>} : memref<32x128xf32, #tpu.memory_space<vmem>>, vector<32x128xf32>,
    } else {
    }
    return
  }
  func.func @transform_0(%arg0: i32, %arg1: i32, %arg2: i32) -> (i32, i32) {
    %c0_i32 = arith.constant 0 : i32
    return %arg0, %arg2 : i32, i32
  }
  func.func @transform_1(%arg0: i32, %arg1: i32, %arg2: i32) -> (i32, i32) {
    %c0_i32 = arith.constant 0 : i32
    return %arg2, %arg1 : i32, i32
  }
  func.func @transform_2(%arg0: i32, %arg1: i32, %arg2: i32) -> (i32, i32) {
    %c0_i32 = arith.constant 0 : i32
    %c0_i32_0 = arith.constant 0 : i32
    return %c0_i32, %arg1 : i32, i32
  }
  func.func @transform_3(%arg0: i32, %arg1: i32, %arg2: i32) -> (i32, i32) {
    %c0_i32 = arith.constant 0 : i32
    return %arg0, %arg1 : i32, i32
  }
  func.func @transform_4(%arg0: i32, %arg1: i32, %arg2: i32) -> (i32, i32) {
    %c0_i32 = arith.constant 0 : i32
    return %arg0, %arg1 : i32, i32
  }
}

module attributes {stable_mosaic.version = 11 : i64} {
  func.func @kernel(%arg0: i32, %arg1: i32, %arg2: i32, %arg3: memref<32x128xf32, #tpu.memory_space<vmem>>, %arg4: memref<1x128xf32, #tpu.memory_space<vmem>>, %arg5: memref<1x128xf32, #tpu.memory_space<vmem>>, %arg6: memref<128x128xf32, #tpu.memory_space<vmem>>, %arg7: memref<32x128xf32, #tpu.memory_space<vmem>>, %arg8: memref<32x128xf32, #tpu.memory_space<vmem>>) attributes {dimension_semantics = [#tpu.dimension_semantics<parallel>, #tpu.dimension_semantics<parallel>, #tpu.dimension_semantics<arbitrary>], iteration_bounds = array<i64: 1, 1, 1>, scalar_prefetch = 0 : i64, scratch_operands = 1 : i64, tpu.core_type = #tpu.core_type<tc>, window_params = [{transform_indices = @transform_0, window_bounds = array<i64: 32, 128>}, {pipeline_mode = #tpu.pipeline_mode<synchronous>, transform_indices = @transform_1, window_bounds = array<i64: 1, 128>}, {pipeline_mode = #tpu.pipeline_mode<synchronous>, transform_indices = @transform_2, window_bounds = array<i64: 1, 128>}, {transform_indices = @transform_3, window_bounds = array<i64: 128, 128>}, {transform_indices = @transform_4, window_bounds = array<i64: 32, 128>}]} {
    %c0_i32 = arith.constant 0 : i32
    %0 = arith.cmpi eq, %arg2, %c0_i32 : i32
    %1 = arith.extui %0 : i1 to i32
    %c0_i32_0 = arith.constant 0 : i32
    %2 = arith.cmpi ne, %1, %c0_i32_0 : i32
    scf.if %2 {
      %cst_19 = arith.constant 0.000000e+00 : f32
      %36 = vector.broadcast %cst_19 : f32 to vector<32x128xf32>
      %c0_20 = arith.constant 0 : index
      %c0_21 = arith.constant 0 : index
      %37 = vector.load %arg8[%c0_20, %c0_21] : memref<32x128xf32, #tpu.memory_space<vmem>>, vector<32x128xf32>
      tpu.vector_store %arg8[%c0_20, %c0_21], %36 {strides = array<i32>} : memref<32x128xf32, #tpu.memory_space<vmem>>, vector<32x128xf32>,
    } else {
    }
    %c0 = arith.constant 0 : index
    %c0_1 = arith.constant 0 : index
    %3 = vector.load %arg3[%c0, %c0_1] : memref<32x128xf32, #tpu.memory_space<vmem>>, vector<32x128xf32>
    %cst = arith.constant dense<0.000000e+00> : vector<32xf32>
    %4 = vector.multi_reduction <add>, %3, %cst [1] : vector<32x128xf32> to vector<32xf32>
    %5 = vector.shape_cast %4 : vector<32xf32> to vector<32x1xf32>
    %cst_2 = arith.constant 1.280000e+02 : f32
    %6 = vector.broadcast %cst_2 : f32 to vector<32x1xf32>
    %7 = arith.divf %5, %6 : vector<32x1xf32>
    %8 = vector.broadcast %7 : vector<32x1xf32> to vector<32x128xf32>
    %9 = arith.subf %3, %8 : vector<32x128xf32>
    %10 = arith.mulf %9, %9 : vector<32x128xf32>
    %cst_3 = arith.constant dense<0.000000e+00> : vector<32xf32>
    %11 = vector.multi_reduction <add>, %10, %cst_3 [1] : vector<32x128xf32> to vector<32xf32>
    %12 = vector.shape_cast %11 : vector<32xf32> to vector<32x1xf32>
    %cst_4 = arith.constant 1.280000e+02 : f32
    %13 = vector.broadcast %cst_4 : f32 to vector<32x1xf32>
    %14 = arith.divf %12, %13 : vector<32x1xf32>
    %cst_5 = arith.constant 9.99999974E-6 : f32
    %15 = vector.broadcast %cst_5 : f32 to vector<32x1xf32>
    %16 = arith.addf %14, %15 : vector<32x1xf32>
    %17 = math.rsqrt %16 : vector<32x1xf32>
    %18 = vector.broadcast %17 : vector<32x1xf32> to vector<32x128xf32>
    %19 = arith.mulf %9, %18 : vector<32x128xf32>
    %c0_6 = arith.constant 0 : index
    %c0_7 = arith.constant 0 : index
    %20 = vector.load %arg4[%c0_6, %c0_7] : memref<1x128xf32, #tpu.memory_space<vmem>>, vector<1x128xf32>
    %21 = vector.broadcast %20 : vector<1x128xf32> to vector<32x128xf32>
    %22 = arith.mulf %19, %21 : vector<32x128xf32>
    %c0_8 = arith.constant 0 : index
    %c0_9 = arith.constant 0 : index
    %23 = vector.load %arg5[%c0_8, %c0_9] : memref<1x128xf32, #tpu.memory_space<vmem>>, vector<1x128xf32>
    %24 = vector.broadcast %23 : vector<1x128xf32> to vector<32x128xf32>
    %25 = arith.addf %22, %24 : vector<32x128xf32>
    %c0_10 = arith.constant 0 : index
    %c0_11 = arith.constant 0 : index
    %26 = vector.load %arg8[%c0_10, %c0_11] : memref<32x128xf32, #tpu.memory_space<vmem>>, vector<32x128xf32>
    %27 = arith.truncf %25 : vector<32x128xf32> to vector<32x128xbf16>
    %c0_12 = arith.constant 0 : index
    %c0_13 = arith.constant 0 : index
    %28 = vector.load %arg6[%c0_12, %c0_13] : memref<128x128xf32, #tpu.memory_space<vmem>>, vector<128x128xf32>
    %29 = arith.truncf %28 : vector<128x128xf32> to vector<128x128xbf16>
    %cst_14 = arith.constant dense<0.000000e+00> : vector<32x128xf32>
    %30 = tpu.matmul %27, %29, %cst_14 {dimension_numbers = #tpu.dot_dimension_numbers<[1], [0], [0], [1], [0, 0, 1, 1], [], []>} : vector<32x128xbf16>, vector<128x128xbf16>, vector<32x128xf32> -> vector<32x128xf32>
    %31 = arith.addf %26, %30 : vector<32x128xf32>
    %c0_15 = arith.constant 0 : index
    %c0_16 = arith.constant 0 : index
    %32 = vector.load %arg8[%c0_15, %c0_16] : memref<32x128xf32, #tpu.memory_space<vmem>>, vector<32x128xf32>
    tpu.vector_store %arg8[%c0_15, %c0_16], %31 {strides = array<i32>} : memref<32x128xf32, #tpu.memory_space<vmem>>, vector<32x128xf32>,
    %c0_i32_17 = arith.constant 0 : i32
    %33 = arith.cmpi eq, %arg2, %c0_i32_17 : i32
    %34 = arith.extui %33 : i1 to i32
    %c0_i32_18 = arith.constant 0 : i32
    %35 = arith.cmpi ne, %34, %c0_i32_18 : i32
    scf.if %35 {
      %c0_19 = arith.constant 0 : index
      %c0_20 = arith.constant 0 : index
      %36 = vector.load %arg8[%c0_19, %c0_20] : memref<32x128xf32, #tpu.memory_space<vmem>>, vector<32x128xf32>
      %c0_21 = arith.constant 0 : index
      %c0_22 = arith.constant 0 : index
      %37 = vector.load %arg7[%c0_21, %c0_22] : memref<32x128xf32, #tpu.memory_space<vmem>>, vector<32x128xf32>
      tpu.vector_store %arg7[%c0_21, %c0_22], %36 {strides = array<i32>} : memref<32x128xf32, #tpu.memory_space<vmem>>, vector<32x128xf32>,
    } else {
    }
    return
  }
  func.func @transform_0(%arg0: i32, %arg1: i32, %arg2: i32) -> (i32, i32) {
    %c0_i32 = arith.constant 0 : i32
    return %arg0, %arg2 : i32, i32
  }
  func.func @transform_1(%arg0: i32, %arg1: i32, %arg2: i32) -> (i32, i32) {
    %c0_i32 = arith.constant 0 : i32
    %c0_i32_0 = arith.constant 0 : i32
    %c0_i32_1 = arith.constant 0 : i32
    return %c0_i32, %c0_i32_0 : i32, i32
  }
  func.func @transform_2(%arg0: i32, %arg1: i32, %arg2: i32) -> (i32, i32) {
    %c0_i32 = arith.constant 0 : i32
    %c0_i32_0 = arith.constant 0 : i32
    %c0_i32_1 = arith.constant 0 : i32
    return %c0_i32, %c0_i32_0 : i32, i32
  }
  func.func @transform_3(%arg0: i32, %arg1: i32, %arg2: i32) -> (i32, i32) {
    %c0_i32 = arith.constant 0 : i32
    return %arg2, %arg1 : i32, i32
  }
  func.func @transform_4(%arg0: i32, %arg1: i32, %arg2: i32) -> (i32, i32) {
    %c0_i32 = arith.constant 0 : i32
    return %arg0, %arg1 : i32, i32
  }
}

</mosaic_0001>

<llo_original>
// kernel: gpt_forward.16
$region0: #{gpt_forward.16}
  #allocation0 [shape = 'u32[]', space=smem, size = 0x4, offset = 0x4, fixed_abs, tag = 'smem constant byte address 0x4 - core index']
  #allocation1 [shape = 'u32[144,128]{1,0:T(1,128)}', space=vmem, size = 0x12000, scoped, tag = 'internal scratch']
  %s0 = inlined_call_operand.vmem [shape: f32[2,4,16,32], index: 0, kind: input, shape index: {}]
  %s1 = inlined_call_operand.vmem [shape: f32[2,4,16,32], index: 1, kind: input, shape index: {}]
  %s2 = inlined_call_operand.vmem [shape: f32[2,4,16,32], index: 2, kind: input, shape index: {}]
  %s3 = inlined_call_operand.vmem [shape: f32[2,4,16,32], index: 3, kind: output, shape index: {}]
  %s4 = sld [smem:[#allocation0]]
  $region45: #{gpt_forward.16} parent=0
    _
  %s6 = ssub.s32 1, %s4
  %s7 = scalar_select 0, %s6, %s4
  loop: start=0, step=1, limit=10
  $region2: #{gpt_forward.16} parent=0 // loop_pre_header
    _
  $region3: #{gpt_forward.16} parent=0 // loop_header
    %s9 = sphi 0, %s13
    %p10 = scmp.ge.s32.totalorder %s9, 10
    %s16 = sphi 0, %s28
    %s17 = sphi 0, %s24
    %s18 = sphi 0, %s16
    %s19 = sphi 0, %s17
    %s20 = sphi 0, %s18
    %s21 = sphi 0, %s19
    %s33 = sphi 0, %s35
    %s36 = sphi 0, %s33
    %s37 = sphi 0, %s36
    %s53 = sphi 0, %s37
    %s61 = sphi 0, %s63
    %s64 = sphi 0, %s61
    %s65 = sphi 0, %s64
    %s81 = sphi 0, %s65
    %s89 = sphi 0, %s91
    %s92 = sphi 0, %s89
    %s93 = sphi 0, %s92
    %s109 = sphi 0, %s93
    %s117 = sphi 0, %s119
    %s120 = sphi 0, %s117
    %s121 = sphi 0, %s120
    %s137 = sphi 0, %s121
  $region4: #{gpt_forward.16} parent=0 // loop_header_branch
    %12 = sbr.rel (%p10) target = $region8
  $region5: #{gpt_forward.16} parent=0 // loop_body
    %s14 = ssub.s32 %s9, 1
    %s15 = ssub.s32 %s9, 2
    %s22 = sadd.s32 1, %s17
    %p23 = scmp.ge.s32.totalorder %s22, 4
    %s24 = scalar_select %p23, 0, %s22
    %s25 = sadd.s32 1, %s16
    %s26 = scalar_select %p23, %s25, %s16
    %p27 = scmp.ge.s32.totalorder %s26, 2
    %s28 = scalar_select %p27, 0, %s26
    %s29 = ssub.s32 %s16, %s28
    %s30 = ssub.s32 %s17, %s24
    %s31 = sor.u32 %s29, %s30
    %p32 = scmp.eq.s32.totalorder %s31, 0
    %s34 = sadd.s32 %s33, 1
    %s35 = scalar_select %p32, %s33, %s34
    %p38 = pneg %p32
    %p39 = scmp.eq.s32.totalorder %s9, 7
    %p40 = por %p38, %p39
    %p41 = scmp.ne.s32.totalorder %s33, %s36
    %p42 = scmp.eq.s32.totalorder %s9, 0
    %p43 = por %p41, %p42
    %p44 = scmp.ne.s32.totalorder %s33, %s36
    %p45 = scmp.eq.s32.totalorder %s14, 7
    %p46 = por %p44, %p45
    %p47 = scmp.ne.s32.totalorder %s36, %s37
    %p48 = scmp.eq.s32.totalorder %s14, 0
    %p49 = por %p47, %p48
    %p50 = scmp.ne.s32.totalorder %s36, %s37
    %p51 = scmp.eq.s32.totalorder %s15, 7
    %p52 = por %p50, %p51
    %p54 = scmp.ne.s32.totalorder %s37, %s53
    %p55 = scmp.eq.s32.totalorder %s15, 0
    %p56 = por %p54, %p55
    %s57 = ssub.s32 %s16, %s28
    %s58 = ssub.s32 %s17, %s24
    %s59 = sor.u32 %s57, %s58
    %p60 = scmp.eq.s32.totalorder %s59, 0
    %s62 = sadd.s32 %s61, 1
    %s63 = scalar_select %p60, %s61, %s62
    %p66 = pneg %p60
    %p67 = scmp.eq.s32.totalorder %s9, 7
    %p68 = por %p66, %p67
    %p69 = scmp.ne.s32.totalorder %s61, %s64
    %p70 = scmp.eq.s32.totalorder %s9, 0
    %p71 = por %p69, %p70
    %p72 = scmp.ne.s32.totalorder %s61, %s64
    %p73 = scmp.eq.s32.totalorder %s14, 7
    %p74 = por %p72, %p73
    %p75 = scmp.ne.s32.totalorder %s64, %s65
    %p76 = scmp.eq.s32.totalorder %s14, 0
    %p77 = por %p75, %p76
    %p78 = scmp.ne.s32.totalorder %s64, %s65
    %p79 = scmp.eq.s32.totalorder %s15, 7
    %p80 = por %p78, %p79
    %p82 = scmp.ne.s32.totalorder %s65, %s81
    %p83 = scmp.eq.s32.totalorder %s15, 0
    %p84 = por %p82, %p83
    %s85 = ssub.s32 %s16, %s28
    %s86 = ssub.s32 %s17, %s24
    %s87 = sor.u32 %s85, %s86
    %p88 = scmp.eq.s32.totalorder %s87, 0
    %s90 = sadd.s32 %s89, 1
    %s91 = scalar_select %p88, %s89, %s90
    %p94 = pneg %p88
    %p95 = scmp.eq.s32.totalorder %s9, 7
    %p96 = por %p94, %p95
    %p97 = scmp.ne.s32.totalorder %s89, %s92
    %p98 = scmp.eq.s32.totalorder %s9, 0
    %p99 = por %p97, %p98
    %p100 = scmp.ne.s32.totalorder %s89, %s92
    %p101 = scmp.eq.s32.totalorder %s14, 7
    %p102 = por %p100, %p101
    %p103 = scmp.ne.s32.totalorder %s92, %s93
    %p104 = scmp.eq.s32.totalorder %s14, 0
    %p105 = por %p103, %p104
    %p106 = scmp.ne.s32.totalorder %s92, %s93
    %p107 = scmp.eq.s32.totalorder %s15, 7
    %p108 = por %p106, %p107
    %p110 = scmp.ne.s32.totalorder %s93, %s109
    %p111 = scmp.eq.s32.totalorder %s15, 0
    %p112 = por %p110, %p111
    %s113 = ssub.s32 %s16, %s28
    %s114 = ssub.s32 %s17, %s24
    %s115 = sor.u32 %s113, %s114
    %p116 = scmp.eq.s32.totalorder %s115, 0
    %s118 = sadd.s32 %s117, 1
    %s119 = scalar_select %p116, %s117, %s118
    %p122 = pneg %p116
    %p123 = scmp.eq.s32.totalorder %s9, 7
    %p124 = por %p122, %p123
    %p125 = scmp.ne.s32.totalorder %s117, %s120
    %p126 = scmp.eq.s32.totalorder %s9, 0
    %p127 = por %p125, %p126
    %p128 = scmp.ne.s32.totalorder %s117, %s120
    %p129 = scmp.eq.s32.totalorder %s14, 7
    %p130 = por %p128, %p129
    %p131 = scmp.ne.s32.totalorder %s120, %s121
    %p132 = scmp.eq.s32.totalorder %s14, 0
    %p133 = por %p131, %p132
    %p134 = scmp.ne.s32.totalorder %s120, %s121
    %p135 = scmp.eq.s32.totalorder %s15, 7
    %p136 = por %p134, %p135
    %p138 = scmp.ne.s32.totalorder %s121, %s137
    %p139 = scmp.eq.s32.totalorder %s15, 0
    %p140 = por %p138, %p139
    %p141 = scmp.le.s32.totalorder 1, %s9
    %p142 = scmp.lt.s32.totalorder %s9, 9
    %p143 = pnand %p141, %p142
    %p144 = pneg %p143
    // Predicated region
    $region9: #{gpt_forward.16} parent=5 // pred_check
      _
    $region10: #{gpt_forward.16} parent=5 // pred_check_branch
      %146 = sbr.rel (%p143) target = $region12
    $region11: #{gpt_forward.16} parent=5 // pred_region
      %s147 = ssub.s32 %s9, 1
    $region12: #{gpt_forward.16} parent=5 // pred_fallthru
      _
    %p148 = scmp.lt.s32.totalorder %s9, 8
    // Predicated region
    $region13: #{gpt_forward.16} parent=5 // pred_check
      %p149 = pneg %p148
    $region14: #{gpt_forward.16} parent=5 // pred_check_branch
      %151 = sbr.rel (%p149) target = $region16
    $region15: #{gpt_forward.16} parent=5 // pred_region
      // Predicated region
      $region17: #{gpt_forward.16} parent=15 // pred_check
        %p152 = pneg %p43
      $region18: #{gpt_forward.16} parent=15 // pred_check_branch
        %154 = sbr.rel (%p152) target = $region20
      $region19: #{gpt_forward.16} parent=15 // pred_region
        %p155 = scmp.lt.s32.totalorder %s16, 1
        %s156 = scalar_select %p155, %s16, 1
        %p157 = scmp.lt.s32.totalorder %s17, 3
        %s158 = scalar_select %p157, %s17, 3
        %s159 = smul.addr %s158, 2
        %s160 = smul.addr %s156, 8
        %s161 = sadd.s32 %s159, %s160
        %s162 = smul.addr %s161, 8
        %s163 = scalar_lea.vmem %s0, %s162
      $region20: #{gpt_forward.16} parent=15 // pred_fallthru
        _
      // Predicated region
      $region21: #{gpt_forward.16} parent=15 // pred_check
        %p164 = pneg %p71
      $region22: #{gpt_forward.16} parent=15 // pred_check_branch
        %166 = sbr.rel (%p164) target = $region24
      $region23: #{gpt_forward.16} parent=15 // pred_region
        %p167 = scmp.lt.s32.totalorder %s16, 1
        %s168 = scalar_select %p167, %s16, 1
        %p169 = scmp.lt.s32.totalorder %s17, 3
        %s170 = scalar_select %p169, %s17, 3
        %s171 = smul.addr %s170, 2
        %s172 = smul.addr %s168, 8
        %s173 = sadd.s32 %s171, %s172
        %s174 = smul.addr %s173, 8
        %s175 = scalar_lea.vmem %s1, %s174
      $region24: #{gpt_forward.16} parent=15 // pred_fallthru
        _
      // Predicated region
      $region25: #{gpt_forward.16} parent=15 // pred_check
        %p176 = pneg %p99
      $region26: #{gpt_forward.16} parent=15 // pred_check_branch
        %178 = sbr.rel (%p176) target = $region28
      $region27: #{gpt_forward.16} parent=15 // pred_region
        %p179 = scmp.lt.s32.totalorder %s16, 1
        %s180 = scalar_select %p179, %s16, 1
        %p181 = scmp.lt.s32.totalorder %s17, 3
        %s182 = scalar_select %p181, %s17, 3
        %s183 = smul.addr %s182, 2
        %s184 = smul.addr %s180, 8
        %s185 = sadd.s32 %s183, %s184
        %s186 = smul.addr %s185, 8
        %s187 = scalar_lea.vmem %s2, %s186
      $region28: #{gpt_forward.16} parent=15 // pred_fallthru
        _
    $region16: #{gpt_forward.16} parent=5 // pred_fallthru
      _
    %p188 = scmp.le.s32.totalorder 1, %s9
    %p189 = scmp.lt.s32.totalorder %s9, 9
    %p190 = pnand %p188, %p189
    %p191 = pneg %p190
    // Predicated region
    $region29: #{gpt_forward.16} parent=5 // pred_check
      _
    $region30: #{gpt_forward.16} parent=5 // pred_check_branch
      %193 = sbr.rel (%p190) target = $region32
    $region31: #{gpt_forward.16} parent=5 // pred_region
      %s194 = ssub.s32 %s9, 1
      %p195 = scmp.lt.s32.totalorder %s18, 1
      %s196 = scalar_select %p195, %s18, 1
      %p197 = scmp.lt.s32.totalorder %s19, 3
      %s198 = scalar_select %p197, %s19, 3
      %s199 = smul.addr %s198, 2
      %s200 = smul.addr %s196, 8
      %s201 = sadd.s32 %s199, %s200
      %s202 = smul.addr %s201, 8
      %s203 = scalar_lea.vmem %s0, %s202
      %p204 = pneg %p49
      %p205 = pneg %p46
      %p206 = scmp.lt.s32.totalorder %s18, 1
      %s207 = scalar_select %p206, %s18, 1
      %p208 = scmp.lt.s32.totalorder %s19, 3
      %s209 = scalar_select %p208, %s19, 3
      %s210 = smul.addr %s209, 2
      %s211 = smul.addr %s207, 8
      %s212 = sadd.s32 %s210, %s211
      %s213 = smul.addr %s212, 8
      %s214 = scalar_lea.vmem %s1, %s213
      %p215 = pneg %p77
      %p216 = pneg %p74
      %p217 = scmp.lt.s32.totalorder %s18, 1
      %s218 = scalar_select %p217, %s18, 1
      %p219 = scmp.lt.s32.totalorder %s19, 3
      %s220 = scalar_select %p219, %s19, 3
      %s221 = smul.addr %s220, 2
      %s222 = smul.addr %s218, 8
      %s223 = sadd.s32 %s221, %s222
      %s224 = smul.addr %s223, 8
      %s225 = scalar_lea.vmem %s2, %s224
      %p226 = pneg %p105
      %p227 = pneg %p102
      %p228 = pneg %p133
      %p229 = pneg %p130
      %p230 = scmp.lt.s32.totalorder %s18, 1
      %s231 = scalar_select %p230, %s18, 1
      %p232 = scmp.lt.s32.totalorder %s19, 3
      %s233 = scalar_select %p232, %s19, 3
      %s234 = smul.addr %s233, 2
      %s235 = smul.addr %s231, 8
      %s236 = sadd.s32 %s234, %s235
      %s237 = smul.addr %s236, 8
      %s238 = scalar_lea.vmem %s3, %s237
      %p239 = scmp.lt.s32.totalorder %s18, 1
      %s240 = scalar_select %p239, %s18, 1
      %p241 = scmp.lt.s32.totalorder %s19, 3
      %s242 = scalar_select %p241, %s19, 3
      %s243 = smul.addr %s242, 2
      %s244 = smul.addr %s240, 8
      %s245 = sadd.s32 %s243, %s244
      %s246 = smul.addr %s245, 8
      %s247 = scalar_lea.vmem %s0, %s246
      %p248 = scmp.lt.s32.totalorder %s18, 1
      %s249 = scalar_select %p248, %s18, 1
      %p250 = scmp.lt.s32.totalorder %s19, 3
      %s251 = scalar_select %p250, %s19, 3
      %s252 = smul.addr %s251, 2
      %s253 = smul.addr %s249, 8
      %s254 = sadd.s32 %s252, %s253
      %s255 = smul.addr %s254, 8
      %s256 = scalar_lea.vmem %s1, %s255
      %p257 = scmp.lt.s32.totalorder %s18, 1
      %s258 = scalar_select %p257, %s18, 1
      %p259 = scmp.lt.s32.totalorder %s19, 3
      %s260 = scalar_select %p259, %s19, 3
      %s261 = smul.addr %s260, 2
      %s262 = smul.addr %s258, 8
      %s263 = sadd.s32 %s261, %s262
      %s264 = smul.addr %s263, 8
      %s265 = scalar_lea.vmem %s2, %s264
      %p266 = scmp.lt.s32.totalorder %s18, 1
      %s267 = scalar_select %p266, %s18, 1
      %p268 = scmp.lt.s32.totalorder %s19, 3
      %s269 = scalar_select %p268, %s19, 3
      %s270 = smul.addr %s269, 2
      %s271 = smul.addr %s267, 8
      %s272 = sadd.s32 %s270, %s271
      %s273 = smul.addr %s272, 8
      %s274 = scalar_lea.vmem %s3, %s273
      %v276 = vld [vmem:[%s247] sm:$0xff]
      %v277 = vld [vmem:[%s247 + $0x8] sm:$0xff]
      %v278 = vpack.c.bf16 %v277, %v276
      %v279 = vld [vmem:[%s256] sm:$0xff]
      %v280 = vld [vmem:[%s256 + $0x8] sm:$0xff]
      %v281 = vpack.c.bf16 %v280, %v279
      %v282 = vld [vmem:[%s265] sm:$0xff]
      %v283 = vld [vmem:[%s265 + $0x8] sm:$0xff]
      %v284 = vpack.c.bf16 %v283, %v282
      %vm285 = vcmask 261120
      %v287 = vsel %vm285, %v278, 0
      %v290 = vsel %vm285, %v281, 0
      %292 = vmatprep.subr.bf16.mxu0 0
      %293 = vmatpush1.bf16.xpose.msra.mxu0 0
      %294 = vmatprep.subr.bf16.mxu0 0
      %295 = vmatpush1.bf16.xpose.msra.mxu0 0
      %296 = vmatprep.subr.bf16.mxu0 0
      %297 = vmatpush1.bf16.xpose.msra.mxu0 0
      %298 = vmatprep.subr.bf16.mxu0 0
      %299 = vmatpush1.bf16.xpose.msra.mxu0 0
      %300 = vmatprep.subr.bf16.mxu0 0
      %301 = vmatpush1.bf16.xpose.msra.mxu0 0
      %302 = vmatprep.subr.bf16.mxu0 0
      %303 = vmatpush1.bf16.xpose.msra.mxu0 0
      %304 = vmatprep.subr.bf16.mxu0 0
      %305 = vmatpush1.bf16.xpose.msra.mxu0 0
      %306 = vmatprep.subr.bf16.mxu0 0
      %307 = vmatpush1.bf16.xpose.msra.mxu0 %v290
      %308 = vmatprep.subr.bf16.mxu0 0
      %309 = vmatpush2.bf16.xpose.msra.mxu0 0
      %310 = vmatprep.subr.bf16.mxu0 0
      %311 = vmatpush2.bf16.xpose.msra.mxu0 0
      %312 = vmatprep.subr.bf16.mxu0 0
      %313 = vmatpush2.bf16.xpose.msra.mxu0 0
      %314 = vmatprep.subr.bf16.mxu0 0
      %315 = vmatpush2.bf16.xpose.msra.mxu0 0
      %316 = vmatprep.subr.bf16.mxu0 0
      %317 = vmatpush2.bf16.xpose.msra.mxu0 0
      %318 = vmatprep.subr.bf16.mxu0 0
      %319 = vmatpush2.bf16.xpose.msra.mxu0 0
      %320 = vmatprep.subr.bf16.mxu0 0
      %321 = vmatpush2.bf16.xpose.msra.mxu0 0
      %322 = vmatprep.subr.bf16.mxu0 0
      %323 = vmatpush2.bf16.xpose.msra.mxu0 0
      %324 = vmatprep.mubr.bf16.mxu0 0
      %325 = vmatmul.mubr.bf16.gmra.mxu0 %v287
      %v326 = vpop.f32.mrf.mxu0
      %v327 = vadd.f32 0.0, %v326
      %v328 = vpop.f32.mrf.mxu0
      %v329 = vpop.f32.mrf.mxu0
      %v330 = vadd.f32 0.0, %v329
      %v331 = vpop.f32.mrf.mxu0
      %332 = vdwg.mxu0
      %v333 = vmul.f32 %v327, 0.17677669
      %v334 = vmul.f32 %v330, 0.17677669
      %v335 = vlaneseq
      %v336 = vshrl.u32 %v335, 7
      %v337 = vadd.s32 %v336, 8
      %v338 = vlaneseq
      %v339 = vand.u32 %v338, 127
      %vm340 = vcmp.le.s32.totalorder %v339, %v336
      %vm341 = vcmp.le.s32.totalorder %v339, %v337
      %v342 = vsel %vm340, %v333, -1e+30
      %v343 = vsel %vm341, %v334, -1e+30
      %vm344 = vcmask 130048
      %v345 = vsel %vm344, %v342, -inf
      %346 = vmax.xlane.f32.xlu0 %v345
      %v347 = vpop.xlane.xlu0 %346
      %v348 = vsel %vm344, %v343, -inf
      %349 = vmax.xlane.f32.xlu0 %v348
      %v350 = vpop.xlane.xlu0 %349
      %v351 = vsub.f32 %v342, %v347
      %v352 = vsub.f32 %v343, %v350
      %v353 = vmul.f32 %v351, 1.442695
      %v354 = vpow.pop %v353
      %v355 = vmul.f32 %v352, 1.442695
      %v356 = vpow.pop %v355
      %v357 = vsel %vm344, %v354, 0.0
      %358 = vadd.xlane.f32.xlu0 %v357
      %v359 = vpop.xlane.xlu0 %358
      %v360 = vsel %vm344, %v356, 0.0
      %361 = vadd.xlane.f32.xlu0 %v360
      %v362 = vpop.xlane.xlu0 %361
      %v363 = vrcp.pop %v359
      %v364 = vrcp.pop %v362
      %v365 = vmul.f32 %v354, %v363
      %v366 = vmul.f32 %v356, %v364
      %v367 = vpack.c.bf16 %v366, %v365
      %v369 = vsel %vm344, %v367, 0
      %371 = vmatprep.subr.bf16.mxu0 0
      %372 = vmatpush1.bf16.msra.mxu0 0
      %373 = vmatprep.subr.bf16.mxu0 0
      %374 = vmatpush1.bf16.msra.mxu0 0
      %375 = vmatprep.subr.bf16.mxu0 0
      %376 = vmatpush1.bf16.msra.mxu0 0
      %377 = vmatprep.subr.bf16.mxu0 0
      %378 = vmatpush1.bf16.msra.mxu0 0
      %379 = vmatprep.subr.bf16.mxu0 0
      %380 = vmatpush1.bf16.msra.mxu0 0
      %381 = vmatprep.subr.bf16.mxu0 0
      %382 = vmatpush1.bf16.msra.mxu0 0
      %383 = vmatprep.subr.bf16.mxu0 0
      %384 = vmatpush1.bf16.msra.mxu0 0
      %385 = vmatprep.subr.bf16.mxu0 0
      %386 = vmatpush1.bf16.msra.mxu0 %v284
      %387 = vmatprep.subr.bf16.mxu0 0
      %388 = vmatpush2.bf16.msra.mxu0 0
      %389 = vmatprep.subr.bf16.mxu0 0
      %390 = vmatpush2.bf16.msra.mxu0 0
      %391 = vmatprep.subr.bf16.mxu0 0
      %392 = vmatpush2.bf16.msra.mxu0 0
      %393 = vmatprep.subr.bf16.mxu0 0
      %394 = vmatpush2.bf16.msra.mxu0 0
      %395 = vmatprep.subr.bf16.mxu0 0
      %396 = vmatpush2.bf16.msra.mxu0 0
      %397 = vmatprep.subr.bf16.mxu0 0
      %398 = vmatpush2.bf16.msra.mxu0 0
      %399 = vmatprep.subr.bf16.mxu0 0
      %400 = vmatpush2.bf16.msra.mxu0 0
      %401 = vmatprep.subr.bf16.mxu0 0
      %402 = vmatpush2.bf16.msra.mxu0 0
      %403 = vmatprep.mubr.bf16.mxu0 0
      %404 = vmatmul.mubr.bf16.gmra.mxu0 %v369
      %v405 = vpop.f32.mrf.mxu0
      %v406 = vadd.f32 0.0, %v405
      %v407 = vpop.f32.mrf.mxu0
      %v408 = vpop.f32.mrf.mxu0
      %v409 = vadd.f32 0.0, %v408
      %v410 = vpop.f32.mrf.mxu0
      %411 = vdwg.mxu0
      %412 = vst.msk [vmem:[%s274] sm:$0xff] %vm285, %v406
      %413 = vst.msk [vmem:[%s274 + $0x8] sm:$0xff] %vm285, %v409
      %p414 = scmp.lt.s32.totalorder %s18, 1
      %s415 = scalar_select %p414, %s18, 1
      %p416 = scmp.lt.s32.totalorder %s19, 3
      %s417 = scalar_select %p416, %s19, 3
      %s418 = smul.addr %s417, 2
      %s419 = smul.addr %s415, 8
      %s420 = sadd.s32 %s418, %s419
      %s421 = smul.addr %s420, 8
      %s422 = scalar_lea.vmem %s3, %s421
      // Predicated region
      $region33: #{gpt_forward.16} parent=31 // pred_check
        %p423 = pneg %p130
      $region34: #{gpt_forward.16} parent=31 // pred_check_branch
        %425 = sbr.rel (%p423) target = $region36
      $region35: #{gpt_forward.16} parent=31 // pred_region
        _
      $region36: #{gpt_forward.16} parent=31 // pred_fallthru
        _
    $region32: #{gpt_forward.16} parent=5 // pred_fallthru
      _
    %p426 = scmp.le.s32.totalorder 2, %s9
    // Predicated region
    $region37: #{gpt_forward.16} parent=5 // pred_check
      %p427 = pneg %p426
    $region38: #{gpt_forward.16} parent=5 // pred_check_branch
      %429 = sbr.rel (%p427) target = $region40
    $region39: #{gpt_forward.16} parent=5 // pred_region
      %s430 = ssub.s32 %s9, 2
      // Predicated region
      $region41: #{gpt_forward.16} parent=39 // pred_check
        %p431 = pneg %p136
      $region42: #{gpt_forward.16} parent=39 // pred_check_branch
        %433 = sbr.rel (%p431) target = $region44
      $region43: #{gpt_forward.16} parent=39 // pred_region
        %p434 = scmp.lt.s32.totalorder %s20, 1
        %s435 = scalar_select %p434, %s20, 1
        %p436 = scmp.lt.s32.totalorder %s21, 3
        %s437 = scalar_select %p436, %s21, 3
        %s438 = smul.addr %s437, 2
        %s439 = smul.addr %s435, 8
        %s440 = sadd.s32 %s438, %s439
        %s441 = smul.addr %s440, 8
        %s442 = scalar_lea.vmem %s3, %s441
      $region44: #{gpt_forward.16} parent=39 // pred_fallthru
        _
    $region40: #{gpt_forward.16} parent=5 // pred_fallthru
      _
  $region6: #{gpt_forward.16} parent=0 // loop_footer
    %s13 = sadd.s32 1, %s9
  $region7: #{gpt_forward.16} parent=0 // loop_footer_branch
    %8 = sbr.rel target = $region3
  $region8: #{gpt_forward.16} parent=0 // loop_exit
    _

// kernel: gpt_forward.15
$region0: #{gpt_forward.15}
  #allocation0 [shape = 'u32[]', space=smem, size = 0x4, offset = 0x4, fixed_abs, tag = 'smem constant byte address 0x4 - core index']
  #allocation1 [shape = 'u32[144,128]{1,0:T(1,128)}', space=vmem, size = 0x12000, scoped, tag = 'internal scratch']
  #allocation2 [shape = 'f32[32,128]{1,0:T(8,128)}', space=vmem, size = 0x4000, scoped, tag = 'scratch operand']
  %s0 = inlined_call_operand.vmem [shape: f32[32,128], index: 0, kind: input, shape index: {}]
  %s1 = inlined_call_operand.vmem [shape: f32[1,128], index: 1, kind: input, shape index: {}]
  %s2 = inlined_call_operand.vmem [shape: f32[1,128], index: 2, kind: input, shape index: {}]
  %s3 = inlined_call_operand.vmem [shape: f32[128,384], index: 3, kind: input, shape index: {}]
  %s4 = inlined_call_operand.vmem [shape: f32[1,384], index: 4, kind: input, shape index: {}]
  %s5 = inlined_call_operand.vmem [shape: f32[32,384], index: 5, kind: output, shape index: {}]
  %s6 = sld [smem:[#allocation0]]
  $region133: #{gpt_forward.15} parent=0
    _
  %s8 = ssub.s32 1, %s6
  %s9 = scalar_select 0, %s8, %s6
  $region1: #{gpt_forward.15} parent=0
    #allocation3 [shape = 'u8[131072]{0}', space=vmem, size = 0x20000, scoped, tag = 'input window, operand 3']
    #allocation4 [shape = 'u8[32768]{0}', space=vmem, size = 0x8000, scoped, tag = 'output window, operand 0']
    loop: start=0, step=1, limit=5
    $region2: #{gpt_forward.15} parent=1 // loop_pre_header
      _
    $region3: #{gpt_forward.15} parent=1 // loop_header
      %s11 = sphi 0, %s15
      %p12 = scmp.ge.s32.totalorder %s11, 5
      %s18 = sphi 0, %s37
      %s19 = sphi 0, %s33
      %s20 = sphi 0, %s29
      %s21 = sphi 0, %s18
      %s22 = sphi 0, %s19
      %s23 = sphi 0, %s20
      %s24 = sphi 0, %s21
      %s25 = sphi 0, %s22
      %s26 = sphi 0, %s23
      %s42 = sphi 0, %s44
      %s45 = sphi 0, %s42
      %s46 = sphi 0, %s45
      %s62 = sphi 0, %s46
      %s66 = sphi 0, %s66
      %s68 = sphi 0, %s66
      %s69 = sphi 0, %s68
      %s83 = sphi 0, %s69
      %s87 = sphi 0, %s87
      %s89 = sphi 0, %s87
      %s90 = sphi 0, %s89
      %s104 = sphi 0, %s90
      %s112 = sphi 0, %s114
      %s115 = sphi 0, %s112
      %s116 = sphi 0, %s115
      %s132 = sphi 0, %s116
      %s138 = sphi 0, %s140
      %s141 = sphi 0, %s138
      %s142 = sphi 0, %s141
      %s158 = sphi 0, %s142
      %s166 = sphi 0, %s168
      %s169 = sphi 0, %s166
      %s170 = sphi 0, %s169
      %s186 = sphi 0, %s170
    $region4: #{gpt_forward.15} parent=1 // loop_header_branch
      %14 = sbr.rel (%p12) target = $region8
    $region5: #{gpt_forward.15} parent=1 // loop_body
      %s16 = ssub.s32 %s11, 1
      %s17 = ssub.s32 %s11, 2
      %s27 = sadd.s32 1, %s20
      %p28 = scmp.ge.s32.totalorder %s27, 1
      %s29 = scalar_select %p28, 0, %s27
      %s30 = sadd.s32 1, %s19
      %s31 = scalar_select %p28, %s30, %s19
      %p32 = scmp.ge.s32.totalorder %s31, 3
      %s33 = scalar_select %p32, 0, %s31
      %s34 = sadd.s32 1, %s18
      %s35 = scalar_select %p32, %s34, %s18
      %p36 = scmp.ge.s32.totalorder %s35, 1
      %s37 = scalar_select %p36, 0, %s35
      %s38 = ssub.s32 %s18, %s37
      %s39 = ssub.s32 %s20, %s29
      %s40 = sor.u32 %s38, %s39
      %p41 = scmp.eq.s32.totalorder %s40, 0
      %s43 = sadd.s32 %s42, 1
      %s44 = scalar_select %p41, %s42, %s43
      %p47 = pneg %p41
      %p48 = scmp.eq.s32.totalorder %s11, 2
      %p49 = por %p47, %p48
      %p50 = scmp.ne.s32.totalorder %s42, %s45
      %p51 = scmp.eq.s32.totalorder %s11, 0
      %p52 = por %p50, %p51
      %p53 = scmp.ne.s32.totalorder %s42, %s45
      %p54 = scmp.eq.s32.totalorder %s16, 2
      %p55 = por %p53, %p54
      %p56 = scmp.ne.s32.totalorder %s45, %s46
      %p57 = scmp.eq.s32.totalorder %s16, 0
      %p58 = por %p56, %p57
      %p59 = scmp.ne.s32.totalorder %s45, %s46
      %p60 = scmp.eq.s32.totalorder %s17, 2
      %p61 = por %p59, %p60
      %p63 = scmp.ne.s32.totalorder %s46, %s62
      %p64 = scmp.eq.s32.totalorder %s17, 0
      %p65 = por %p63, %p64
      %s67 = sadd.s32 %s66, 1
      %p70 = scmp.eq.s32.totalorder %s11, 2
      %p71 = scmp.ne.s32.totalorder %s66, %s68
      %p72 = scmp.eq.s32.totalorder %s11, 0
      %p73 = por %p71, %p72
      %p74 = scmp.ne.s32.totalorder %s66, %s68
      %p75 = scmp.eq.s32.totalorder %s16, 2
      %p76 = por %p74, %p75
      %p77 = scmp.ne.s32.totalorder %s68, %s69
      %p78 = scmp.eq.s32.totalorder %s16, 0
      %p79 = por %p77, %p78
      %p80 = scmp.ne.s32.totalorder %s68, %s69
      %p81 = scmp.eq.s32.totalorder %s17, 2
      %p82 = por %p80, %p81
      %p84 = scmp.ne.s32.totalorder %s69, %s83
      %p85 = scmp.eq.s32.totalorder %s17, 0
      %p86 = por %p84, %p85
      %s88 = sadd.s32 %s87, 1
      %p91 = scmp.eq.s32.totalorder %s11, 2
      %p92 = scmp.ne.s32.totalorder %s87, %s89
      %p93 = scmp.eq.s32.totalorder %s11, 0
      %p94 = por %p92, %p93
      %p95 = scmp.ne.s32.totalorder %s87, %s89
      %p96 = scmp.eq.s32.totalorder %s16, 2
      %p97 = por %p95, %p96
      %p98 = scmp.ne.s32.totalorder %s89, %s90
      %p99 = scmp.eq.s32.totalorder %s16, 0
      %p100 = por %p98, %p99
      %p101 = scmp.ne.s32.totalorder %s89, %s90
      %p102 = scmp.eq.s32.totalorder %s17, 2
      %p103 = por %p101, %p102
      %p105 = scmp.ne.s32.totalorder %s90, %s104
      %p106 = scmp.eq.s32.totalorder %s17, 0
      %p107 = por %p105, %p106
      %s108 = ssub.s32 %s20, %s29
      %s109 = ssub.s32 %s19, %s33
      %s110 = sor.u32 %s108, %s109
      %p111 = scmp.eq.s32.totalorder %s110, 0
      %s113 = sadd.s32 %s112, 1
      %s114 = scalar_select %p111, %s112, %s113
      %p117 = pneg %p111
      %p118 = scmp.eq.s32.totalorder %s11, 2
      %p119 = por %p117, %p118
      %p120 = scmp.ne.s32.totalorder %s112, %s115
      %p121 = scmp.eq.s32.totalorder %s11, 0
      %p122 = por %p120, %p121
      %p123 = scmp.ne.s32.totalorder %s112, %s115
      %p124 = scmp.eq.s32.totalorder %s16, 2
      %p125 = por %p123, %p124
      %p126 = scmp.ne.s32.totalorder %s115, %s116
      %p127 = scmp.eq.s32.totalorder %s16, 0
      %p128 = por %p126, %p127
      %p129 = scmp.ne.s32.totalorder %s115, %s116
      %p130 = scmp.eq.s32.totalorder %s17, 2
      %p131 = por %p129, %p130
      %p133 = scmp.ne.s32.totalorder %s116, %s132
      %p134 = scmp.eq.s32.totalorder %s17, 0
      %p135 = por %p133, %p134
      %s136 = ssub.s32 %s19, %s33
      %p137 = scmp.eq.s32.totalorder %s136, 0
      %s139 = sadd.s32 %s138, 1
      %s140 = scalar_select %p137, %s138, %s139
      %p143 = pneg %p137
      %p144 = scmp.eq.s32.totalorder %s11, 2
      %p145 = por %p143, %p144
      %p146 = scmp.ne.s32.totalorder %s138, %s141
      %p147 = scmp.eq.s32.totalorder %s11, 0
      %p148 = por %p146, %p147
      %p149 = scmp.ne.s32.totalorder %s138, %s141
      %p150 = scmp.eq.s32.totalorder %s16, 2
      %p151 = por %p149, %p150
      %p152 = scmp.ne.s32.totalorder %s141, %s142
      %p153 = scmp.eq.s32.totalorder %s16, 0
      %p154 = por %p152, %p153
      %p155 = scmp.ne.s32.totalorder %s141, %s142
      %p156 = scmp.eq.s32.totalorder %s17, 2
      %p157 = por %p155, %p156
      %p159 = scmp.ne.s32.totalorder %s142, %s158
      %p160 = scmp.eq.s32.totalorder %s17, 0
      %p161 = por %p159, %p160
      %s162 = ssub.s32 %s18, %s37
      %s163 = ssub.s32 %s19, %s33
      %s164 = sor.u32 %s162, %s163
      %p165 = scmp.eq.s32.totalorder %s164, 0
      %s167 = sadd.s32 %s166, 1
      %s168 = scalar_select %p165, %s166, %s167
      %p171 = pneg %p165
      %p172 = scmp.eq.s32.totalorder %s11, 2
      %p173 = por %p171, %p172
      %p174 = scmp.ne.s32.totalorder %s166, %s169
      %p175 = scmp.eq.s32.totalorder %s11, 0
      %p176 = por %p174, %p175
      %p177 = scmp.ne.s32.totalorder %s166, %s169
      %p178 = scmp.eq.s32.totalorder %s16, 2
      %p179 = por %p177, %p178
      %p180 = scmp.ne.s32.totalorder %s169, %s170
      %p181 = scmp.eq.s32.totalorder %s16, 0
      %p182 = por %p180, %p181
      %p183 = scmp.ne.s32.totalorder %s169, %s170
      %p184 = scmp.eq.s32.totalorder %s17, 2
      %p185 = por %p183, %p184
      %p187 = scmp.ne.s32.totalorder %s170, %s186
      %p188 = scmp.eq.s32.totalorder %s17, 0
      %p189 = por %p187, %p188
      %p190 = scmp.le.s32.totalorder 1, %s11
      %p191 = scmp.lt.s32.totalorder %s11, 4
      %p192 = pnand %p190, %p191
      %p193 = pneg %p192
      // Predicated region
      $region9: #{gpt_forward.15} parent=5 // pred_check
        _
      $region10: #{gpt_forward.15} parent=5 // pred_check_branch
        %195 = sbr.rel (%p192) target = $region12
      $region11: #{gpt_forward.15} parent=5 // pred_region
        %s196 = ssub.s32 %s11, 1
        // Predicated region
        $region13: #{gpt_forward.15} parent=11 // pred_check
          %p197 = pneg %p58
        $region14: #{gpt_forward.15} parent=11 // pred_check_branch
          %199 = sbr.rel (%p197) target = $region16
        $region15: #{gpt_forward.15} parent=11 // pred_region
          %s200 = smul.u32 4, %s21
          %p201 = scmp.lt.s32.totalorder %s200, 3
          %s202 = scalar_select %p201, %s200, 3
          %p203 = scmp.lt.s32.totalorder %s23, 0
          %s204 = scalar_select %p203, %s23, 0
          %s205 = sadd.s32 %s204, %s202
          %s206 = smul.addr %s205, 8
          %s207 = scalar_lea.vmem %s0, %s206
          %s208 = smul.u32 4, %s21
        $region16: #{gpt_forward.15} parent=11 // pred_fallthru
          _
        // Predicated region
        $region17: #{gpt_forward.15} parent=11 // pred_check
          %p209 = pneg %p79
        $region18: #{gpt_forward.15} parent=11 // pred_check_branch
          %211 = sbr.rel (%p209) target = $region20
        $region19: #{gpt_forward.15} parent=11 // pred_region
          _
        $region20: #{gpt_forward.15} parent=11 // pred_fallthru
          _
        // Predicated region
        $region21: #{gpt_forward.15} parent=11 // pred_check
          %p212 = pneg %p100
        $region22: #{gpt_forward.15} parent=11 // pred_check_branch
          %214 = sbr.rel (%p212) target = $region24
        $region23: #{gpt_forward.15} parent=11 // pred_region
          _
        $region24: #{gpt_forward.15} parent=11 // pred_fallthru
          _
      $region12: #{gpt_forward.15} parent=5 // pred_fallthru
        _
      %p215 = scmp.lt.s32.totalorder %s11, 3
      // Predicated region
      $region25: #{gpt_forward.15} parent=5 // pred_check
        %p216 = pneg %p215
      $region26: #{gpt_forward.15} parent=5 // pred_check_branch
        %218 = sbr.rel (%p216) target = $region28
      $region27: #{gpt_forward.15} parent=5 // pred_region
        // Predicated region
        $region29: #{gpt_forward.15} parent=27 // pred_check
          %p219 = pneg %p122
        $region30: #{gpt_forward.15} parent=27 // pred_check_branch
          %221 = sbr.rel (%p219) target = $region32
        $region31: #{gpt_forward.15} parent=27 // pred_region
          %s222 = sand.u32 %s112, 1
          %s223 = sand.u32 %s112, 1
          %s224 = smul.addr %s223, 128
          %s225 = scalar_lea.vmem [#allocation3], %s224
          %s226 = smul.u32 16, %s20
          %s227 = smul.addr %s226, 3
          %s228 = sadd.s32 %s19, %s227
          %s229 = smul.addr %s228, 8
          %s230 = scalar_lea.vmem %s3, %s229
          // Predicated region
          $region33: #{gpt_forward.15} parent=31 // pred_check
            _
          $region34: #{gpt_forward.15} parent=31 // pred_check_branch
            %232 = sbr.rel (0) target = $region36
          $region35: #{gpt_forward.15} parent=31 // pred_region
            // Predicated region
            $region37: #{gpt_forward.15} parent=35 // pred_check
              _
            $region38: #{gpt_forward.15} parent=35 // pred_check_branch
              %234 = sbr.rel (0) target = $region40
            $region39: #{gpt_forward.15} parent=35 // pred_region
              // Predicated region
              $region52: #{gpt_forward.15} parent=39 // pred_check
                _
              $region53: #{gpt_forward.15} parent=39 // pred_check_branch
                %280 = sbr.rel (0) target = $region55
              $region54: #{gpt_forward.15} parent=39 // pred_region
                loop: start=0, step=1, limit=1
                $region56: #{gpt_forward.15} parent=54 // loop_pre_header
                  _
                $region57: #{gpt_forward.15} parent=54 // loop_header
                  %s282 = sphi 0, %s286
                  %p283 = scmp.ge.s32.totalorder %s282, 1
                  %s287 = sphi %s230, %s230
                  %s288 = sphi %s225, %s225
                $region58: #{gpt_forward.15} parent=54 // loop_header_branch
                  %285 = sbr.rel (%p283) target = $region62
                $region59: #{gpt_forward.15} parent=54 // loop_body
                  %v289 = vld [vmem:[%s287] sm:$0xff]
                  %290 = vst [vmem:[%s288] sm:$0xff] %v289
                  %v291 = vld [vmem:[%s287 + $0x18] sm:$0xff]
                  %292 = vst [vmem:[%s288 + $0x8] sm:$0xff] %v291
                  %v293 = vld [vmem:[%s287 + $0x30] sm:$0xff]
                  %294 = vst [vmem:[%s288 + $0x10] sm:$0xff] %v293
                  %v295 = vld [vmem:[%s287 + $0x48] sm:$0xff]
                  %296 = vst [vmem:[%s288 + $0x18] sm:$0xff] %v295
                  %v297 = vld [vmem:[%s287 + $0x60] sm:$0xff]
                  %298 = vst [vmem:[%s288 + $0x20] sm:$0xff] %v297
                  %v299 = vld [vmem:[%s287 + $0x78] sm:$0xff]
                  %300 = vst [vmem:[%s288 + $0x28] sm:$0xff] %v299
                  %v301 = vld [vmem:[%s287 + $0x90] sm:$0xff]
                  %302 = vst [vmem:[%s288 + $0x30] sm:$0xff] %v301
                  %v303 = vld [vmem:[%s287 + $0xa8] sm:$0xff]
                  %304 = vst [vmem:[%s288 + $0x38] sm:$0xff] %v303
                  %v305 = vld [vmem:[%s287 + $0xc0] sm:$0xff]
                  %306 = vst [vmem:[%s288 + $0x40] sm:$0xff] %v305
                  %v307 = vld [vmem:[%s287 + $0xd8] sm:$0xff]
                  %308 = vst [vmem:[%s288 + $0x48] sm:$0xff] %v307
                  %v309 = vld [vmem:[%s287 + $0xf0] sm:$0xff]
                  %310 = vst [vmem:[%s288 + $0x50] sm:$0xff] %v309
                  %v311 = vld [vmem:[%s287 + $0x108] sm:$0xff]
                  %312 = vst [vmem:[%s288 + $0x58] sm:$0xff] %v311
                  %v313 = vld [vmem:[%s287 + $0x120] sm:$0xff]
                  %314 = vst [vmem:[%s288 + $0x60] sm:$0xff] %v313
                  %v315 = vld [vmem:[%s287 + $0x138] sm:$0xff]
                  %316 = vst [vmem:[%s288 + $0x68] sm:$0xff] %v315
                  %v317 = vld [vmem:[%s287 + $0x150] sm:$0xff]
                  %318 = vst [vmem:[%s288 + $0x70] sm:$0xff] %v317
                  %v319 = vld [vmem:[%s287 + $0x168] sm:$0xff]
                  %320 = vst [vmem:[%s288 + $0x78] sm:$0xff] %v319
                $region60: #{gpt_forward.15} parent=54 // loop_footer
                  %s286 = sadd.s32 1, %s282
                $region61: #{gpt_forward.15} parent=54 // loop_footer_branch
                  %281 = sbr.rel target = $region57
                $region62: #{gpt_forward.15} parent=54 // loop_exit
                  _
              $region55: #{gpt_forward.15} parent=39 // pred_fallthru
                _
              // Predicated region
              $region63: #{gpt_forward.15} parent=39 // pred_check
                _
              $region64: #{gpt_forward.15} parent=39 // pred_check_branch
                %322 = sbr.rel target = $region66
              $region65: #{gpt_forward.15} parent=39 // pred_region
                _
              $region66: #{gpt_forward.15} parent=39 // pred_fallthru
                _
            $region40: #{gpt_forward.15} parent=35 // pred_fallthru
              _
            // Predicated region
            $region41: #{gpt_forward.15} parent=35 // pred_check
              _
            $region42: #{gpt_forward.15} parent=35 // pred_check_branch
              %236 = sbr.rel target = $region44
            $region43: #{gpt_forward.15} parent=35 // pred_region
              %s238 = ssub.s32 256, 1
              loop: start=0, step=1, limit=1
              $region45: #{gpt_forward.15} parent=43 // loop_pre_header
                _
              $region46: #{gpt_forward.15} parent=43 // loop_header
                %s240 = sphi 0, %s244
                %p241 = scmp.ge.s32.totalorder %s240, 1
                %s245 = sphi %s230, %s230
                %s246 = sphi %s225, %s225
              $region47: #{gpt_forward.15} parent=43 // loop_header_branch
                %243 = sbr.rel (%p241) target = $region51
              $region48: #{gpt_forward.15} parent=43 // loop_body
                %v247 = vld [vmem:[%s245] sm:%s238]
                %248 = vst [vmem:[%s246] sm:%s238] %v247
                %v249 = vld [vmem:[%s245 + $0x18] sm:%s238]
                %250 = vst [vmem:[%s246 + $0x8] sm:%s238] %v249
                %v251 = vld [vmem:[%s245 + $0x30] sm:%s238]
                %252 = vst [vmem:[%s246 + $0x10] sm:%s238] %v251
                %v253 = vld [vmem:[%s245 + $0x48] sm:%s238]
                %254 = vst [vmem:[%s246 + $0x18] sm:%s238] %v253
                %v255 = vld [vmem:[%s245 + $0x60] sm:%s238]
                %256 = vst [vmem:[%s246 + $0x20] sm:%s238] %v255
                %v257 = vld [vmem:[%s245 + $0x78] sm:%s238]
                %258 = vst [vmem:[%s246 + $0x28] sm:%s238] %v257
                %v259 = vld [vmem:[%s245 + $0x90] sm:%s238]
                %260 = vst [vmem:[%s246 + $0x30] sm:%s238] %v259
                %v261 = vld [vmem:[%s245 + $0xa8] sm:%s238]
                %262 = vst [vmem:[%s246 + $0x38] sm:%s238] %v261
                %v263 = vld [vmem:[%s245 + $0xc0] sm:%s238]
                %264 = vst [vmem:[%s246 + $0x40] sm:%s238] %v263
                %v265 = vld [vmem:[%s245 + $0xd8] sm:%s238]
                %266 = vst [vmem:[%s246 + $0x48] sm:%s238] %v265
                %v267 = vld [vmem:[%s245 + $0xf0] sm:%s238]
                %268 = vst [vmem:[%s246 + $0x50] sm:%s238] %v267
                %v269 = vld [vmem:[%s245 + $0x108] sm:%s238]
                %270 = vst [vmem:[%s246 + $0x58] sm:%s238] %v269
                %v271 = vld [vmem:[%s245 + $0x120] sm:%s238]
                %272 = vst [vmem:[%s246 + $0x60] sm:%s238] %v271
                %v273 = vld [vmem:[%s245 + $0x138] sm:%s238]
                %274 = vst [vmem:[%s246 + $0x68] sm:%s238] %v273
                %v275 = vld [vmem:[%s245 + $0x150] sm:%s238]
                %276 = vst [vmem:[%s246 + $0x70] sm:%s238] %v275
                %v277 = vld [vmem:[%s245 + $0x168] sm:%s238]
                %278 = vst [vmem:[%s246 + $0x78] sm:%s238] %v277
              $region49: #{gpt_forward.15} parent=43 // loop_footer
                %s244 = sadd.s32 1, %s240
              $region50: #{gpt_forward.15} parent=43 // loop_footer_branch
                %239 = sbr.rel target = $region46
              $region51: #{gpt_forward.15} parent=43 // loop_exit
                _
            $region44: #{gpt_forward.15} parent=35 // pred_fallthru
              _
          $region36: #{gpt_forward.15} parent=31 // pred_fallthru
            _
          %323 = vnop
        $region32: #{gpt_forward.15} parent=27 // pred_fallthru
          _
        // Predicated region
        $region67: #{gpt_forward.15} parent=27 // pred_check
          %p324 = pneg %p148
        $region68: #{gpt_forward.15} parent=27 // pred_check_branch
          %326 = sbr.rel (%p324) target = $region70
        $region69: #{gpt_forward.15} parent=27 // pred_region
          %p327 = scmp.lt.s32.totalorder %s19, 2
          %s328 = scalar_select %p327, %s19, 2
          %s329 = scalar_lea.vmem %s4, %s328
        $region70: #{gpt_forward.15} parent=27 // pred_fallthru
          _
      $region28: #{gpt_forward.15} parent=5 // pred_fallthru
        _
      %p330 = scmp.le.s32.totalorder 1, %s11
      %p331 = scmp.lt.s32.totalorder %s11, 4
      %p332 = pnand %p330, %p331
      %p333 = pneg %p332
      // Predicated region
      $region71: #{gpt_forward.15} parent=5 // pred_check
        _
      $region72: #{gpt_forward.15} parent=5 // pred_check_branch
        %335 = sbr.rel (%p332) target = $region74
      $region73: #{gpt_forward.15} parent=5 // pred_region
        %s336 = ssub.s32 %s11, 1
        %s337 = sand.u32 %s115, 1
        %s338 = sand.u32 %s115, 1
        %s339 = smul.addr %s338, 128
        %s340 = scalar_lea.vmem [#allocation3], %s339
        // Predicated region
        $region75: #{gpt_forward.15} parent=73 // pred_check
          %p341 = pneg %p128
        $region76: #{gpt_forward.15} parent=73 // pred_check_branch
          %343 = sbr.rel (%p341) target = $region78
        $region77: #{gpt_forward.15} parent=73 // pred_region
          _
        $region78: #{gpt_forward.15} parent=73 // pred_fallthru
          _
        %s344 = smul.u32 4, %s21
        %p345 = scmp.lt.s32.totalorder %s344, 3
        %s346 = scalar_select %p345, %s344, 3
        %p347 = scmp.lt.s32.totalorder %s23, 0
        %s348 = scalar_select %p347, %s23, 0
        %s349 = sadd.s32 %s348, %s346
        %s350 = smul.addr %s349, 8
        %s351 = scalar_lea.vmem %s0, %s350
        %p352 = pneg %p58
        %p353 = pneg %p55
        %p354 = pneg %p79
        %p355 = pneg %p76
        %p356 = pneg %p100
        %p357 = pneg %p97
        %s358 = sand.u32 %s115, 1
        %s359 = sand.u32 %s115, 1
        %s360 = smul.addr %s359, 128
        %s361 = scalar_lea.vmem [#allocation3], %s360
        %p362 = pneg %p128
        %p363 = pneg %p125
        %p364 = scmp.lt.s32.totalorder %s22, 2
        %s365 = scalar_select %p364, %s22, 2
        %s366 = scalar_lea.vmem %s4, %s365
        %p367 = pneg %p154
        %p368 = pneg %p151
        %p369 = pneg %p182
        %p370 = pneg %p179
        %s371 = sand.u32 %s169, 1
        %s372 = sand.u32 %s169, 1
        %s373 = smul.addr %s372, 32
        %s374 = scalar_lea.vmem [#allocation4], %s373
        %s375 = smul.u32 4, %s21
        %p376 = scmp.lt.s32.totalorder %s375, 3
        %s377 = scalar_select %p376, %s375, 3
        %p378 = scmp.lt.s32.totalorder %s23, 0
        %s379 = scalar_select %p378, %s23, 0
        %s380 = sadd.s32 %s379, %s377
        %s381 = smul.addr %s380, 8
        %s382 = scalar_lea.vmem %s0, %s381
        %s383 = smul.u32 4, %s21
        %s384 = smul.u32 16, %s23
        %p385 = scmp.lt.s32.totalorder %s22, 2
        %s386 = scalar_select %p385, %s22, 2
        %s387 = scalar_lea.vmem %s4, %s386
        %s388 = smul.u32 4, %s21
        %p390 = scmp.eq.s32.totalorder %s23, 0
        // Predicated region
        $region79: #{gpt_forward.15} parent=73 // pred_check
          %p391 = pneg %p390
        $region80: #{gpt_forward.15} parent=73 // pred_check_branch
          %393 = sbr.rel (%p391) target = $region82
        $region81: #{gpt_forward.15} parent=73 // pred_region
          %394 = vst [vmem:[#allocation2] sm:$0xff] 0.0
          %395 = vst [vmem:[#allocation2 + $0x8] sm:$0xff] 0.0
          %396 = vst [vmem:[#allocation2 + $0x10] sm:$0xff] 0.0
          %397 = vst [vmem:[#allocation2 + $0x18] sm:$0xff] 0.0
        $region82: #{gpt_forward.15} parent=73 // pred_fallthru
          _
        %v398 = vld [vmem:[%s382] sm:$0xff]
        %v399 = vld [vmem:[%s382 + $0x8] sm:$0xff]
        %v400 = vld [vmem:[%s382 + $0x10] sm:$0xff]
        %v401 = vld [vmem:[%s382 + $0x18] sm:$0xff]
        %402 = vadd.xlane.f32.xlu0 %v398
        %v403 = vpop.xlane.xlu0 %402
        %404 = vadd.xlane.f32.xlu0 %v399
        %v405 = vpop.xlane.xlu0 %404
        %406 = vadd.xlane.f32.xlu0 %v400
        %v407 = vpop.xlane.xlu0 %406
        %408 = vadd.xlane.f32.xlu0 %v401
        %v409 = vpop.xlane.xlu0 %408
        %v410 = vrcp.pop 128.0
        %v411 = vmul.f32 %v403, %v410
        %v412 = vmul.f32 %v405, %v410
        %v413 = vmul.f32 %v407, %v410
        %v414 = vmul.f32 %v409, %v410
        %v415 = vsub.f32 %v398, %v411
        %v416 = vsub.f32 %v399, %v412
        %v417 = vsub.f32 %v400, %v413
        %v418 = vsub.f32 %v401, %v414
        %v419 = vmul.f32 %v415, %v415
        %v420 = vmul.f32 %v416, %v416
        %v421 = vmul.f32 %v417, %v417
        %v422 = vmul.f32 %v418, %v418
        %423 = vadd.xlane.f32.xlu0 %v419
        %v424 = vpop.xlane.xlu0 %423
        %425 = vadd.xlane.f32.xlu0 %v420
        %v426 = vpop.xlane.xlu0 %425
        %427 = vadd.xlane.f32.xlu0 %v421
        %v428 = vpop.xlane.xlu0 %427
        %429 = vadd.xlane.f32.xlu0 %v422
        %v430 = vpop.xlane.xlu0 %429
        %v431 = vmul.f32 %v424, %v410
        %v432 = vmul.f32 %v426, %v410
        %v433 = vmul.f32 %v428, %v410
        %v434 = vmul.f32 %v430, %v410
        %v435 = vadd.f32 %v431, 1e-05
        %v436 = vadd.f32 %v432, 1e-05
        %v437 = vadd.f32 %v433, 1e-05
        %v438 = vadd.f32 %v434, 1e-05
        %v439 = vrsqrt.pop %v435
        %v440 = vrsqrt.pop %v436
        %v441 = vrsqrt.pop %v437
        %v442 = vrsqrt.pop %v438
        %v443 = vmul.f32 %v415, %v439
        %v444 = vmul.f32 %v416, %v440
        %v445 = vmul.f32 %v417, %v441
        %v446 = vmul.f32 %v418, %v442
        %v447 = vld [vmem:[%s1] sm:$0x1]
        %v449 = vlaneseq
        %v450 = vshrl.u32 %v449, 7
        %v451 = vsub.s32 0, %v450
        %v452 = vrot.slane %v447, %v451
        %v454 = vmul.f32 %v443, %v452
        %v455 = vmul.f32 %v444, %v452
        %v456 = vmul.f32 %v445, %v452
        %v457 = vmul.f32 %v446, %v452
        %v458 = vld [vmem:[%s2] sm:$0x1]
        %v460 = vlaneseq
        %v461 = vshrl.u32 %v460, 7
        %v462 = vsub.s32 0, %v461
        %v463 = vrot.slane %v458, %v462
        %v465 = vadd.f32 %v454, %v463
        %v466 = vadd.f32 %v455, %v463
        %v467 = vadd.f32 %v456, %v463
        %v468 = vadd.f32 %v457, %v463
        %v469 = vld [vmem:[#allocation2] sm:$0xff]
        %v470 = vld [vmem:[#allocation2 + $0x8] sm:$0xff]
        %v471 = vld [vmem:[#allocation2 + $0x10] sm:$0xff]
        %v472 = vld [vmem:[#allocation2 + $0x18] sm:$0xff]
        %v473 = vpack.c.bf16 %v466, %v465
        %v474 = vpack.c.bf16 %v468, %v467
        %v475 = vld [vmem:[%s340] sm:$0xff]
        %v476 = vld [vmem:[%s340 + $0x8] sm:$0xff]
        %v477 = vld [vmem:[%s340 + $0x10] sm:$0xff]
        %v478 = vld [vmem:[%s340 + $0x18] sm:$0xff]
        %v479 = vld [vmem:[%s340 + $0x20] sm:$0xff]
        %v480 = vld [vmem:[%s340 + $0x28] sm:$0xff]
        %v481 = vld [vmem:[%s340 + $0x30] sm:$0xff]
        %v482 = vld [vmem:[%s340 + $0x38] sm:$0xff]
        %v483 = vld [vmem:[%s340 + $0x40] sm:$0xff]
        %v484 = vld [vmem:[%s340 + $0x48] sm:$0xff]
        %v485 = vld [vmem:[%s340 + $0x50] sm:$0xff]
        %v486 = vld [vmem:[%s340 + $0x58] sm:$0xff]
        %v487 = vld [vmem:[%s340 + $0x60] sm:$0xff]
        %v488 = vld [vmem:[%s340 + $0x68] sm:$0xff]
        %v489 = vld [vmem:[%s340 + $0x70] sm:$0xff]
        %v490 = vld [vmem:[%s340 + $0x78] sm:$0xff]
        %v491 = vpack.c.bf16 %v476, %v475
        %v492 = vpack.c.bf16 %v478, %v477
        %v493 = vpack.c.bf16 %v480, %v479
        %v494 = vpack.c.bf16 %v482, %v481
        %v495 = vpack.c.bf16 %v484, %v483
        %v496 = vpack.c.bf16 %v486, %v485
        %v497 = vpack.c.bf16 %v488, %v487
        %v498 = vpack.c.bf16 %v490, %v489
        %499 = vmatprep.subr.bf16.mxu0 0
        %500 = vmatpush1.bf16.msra.mxu0 %v498
        %501 = vmatprep.subr.bf16.mxu0 0
        %502 = vmatpush1.bf16.msra.mxu0 %v497
        %503 = vmatprep.subr.bf16.mxu0 0
        %504 = vmatpush1.bf16.msra.mxu0 %v496
        %505 = vmatprep.subr.bf16.mxu0 0
        %506 = vmatpush1.bf16.msra.mxu0 %v495
        %507 = vmatprep.subr.bf16.mxu0 0
        %508 = vmatpush1.bf16.msra.mxu0 %v494
        %509 = vmatprep.subr.bf16.mxu0 0
        %510 = vmatpush1.bf16.msra.mxu0 %v493
        %511 = vmatprep.subr.bf16.mxu0 0
        %512 = vmatpush1.bf16.msra.mxu0 %v492
        %513 = vmatprep.subr.bf16.mxu0 0
        %514 = vmatpush1.bf16.msra.mxu0 %v491
        %515 = vmatprep.subr.bf16.mxu0 0
        %516 = vmatpush2.bf16.msra.mxu0 0
        %517 = vmatprep.subr.bf16.mxu0 0
        %518 = vmatpush2.bf16.msra.mxu0 0
        %519 = vmatprep.subr.bf16.mxu0 0
        %520 = vmatpush2.bf16.msra.mxu0 0
        %521 = vmatprep.subr.bf16.mxu0 0
        %522 = vmatpush2.bf16.msra.mxu0 0
        %523 = vmatprep.subr.bf16.mxu0 0
        %524 = vmatpush2.bf16.msra.mxu0 0
        %525 = vmatprep.subr.bf16.mxu0 0
        %526 = vmatpush2.bf16.msra.mxu0 0
        %527 = vmatprep.subr.bf16.mxu0 0
        %528 = vmatpush2.bf16.msra.mxu0 0
        %529 = vmatprep.subr.bf16.mxu0 0
        %530 = vmatpush2.bf16.msra.mxu0 0
        %531 = vmatprep.mubr.bf16.mxu0 0
        %532 = vmatmul.mubr.bf16.gmra.mxu0 %v473
        %v533 = vpop.f32.mrf.mxu0
        %v534 = vadd.f32 0.0, %v533
        %v535 = vpop.f32.mrf.mxu0
        %v536 = vpop.f32.mrf.mxu0
        %v537 = vadd.f32 0.0, %v536
        %v538 = vpop.f32.mrf.mxu0
        %539 = vmatprep.mubr.bf16.mxu0 0
        %540 = vmatmul.mubr.bf16.gmra.mxu0 %v474
        %v541 = vpop.f32.mrf.mxu0
        %v542 = vadd.f32 0.0, %v541
        %v543 = vpop.f32.mrf.mxu0
        %v544 = vpop.f32.mrf.mxu0
        %v545 = vadd.f32 0.0, %v544
        %v546 = vpop.f32.mrf.mxu0
        %547 = vdwg.mxu0
        %v548 = vadd.f32 %v469, %v534
        %v549 = vadd.f32 %v470, %v537
        %v550 = vadd.f32 %v471, %v542
        %v551 = vadd.f32 %v472, %v545
        %552 = vst [vmem:[#allocation2] sm:$0xff] %v548
        %553 = vst [vmem:[#allocation2 + $0x8] sm:$0xff] %v549
        %554 = vst [vmem:[#allocation2 + $0x10] sm:$0xff] %v550
        %555 = vst [vmem:[#allocation2 + $0x18] sm:$0xff] %v551
        // Predicated region
        $region83: #{gpt_forward.15} parent=73 // pred_check
          %p556 = pneg %p390
        $region84: #{gpt_forward.15} parent=73 // pred_check_branch
          %558 = sbr.rel (%p556) target = $region86
        $region85: #{gpt_forward.15} parent=73 // pred_region
          %v559 = vld [vmem:[#allocation2] sm:$0xff]
          %v560 = vld [vmem:[#allocation2 + $0x8] sm:$0xff]
          %v561 = vld [vmem:[#allocation2 + $0x10] sm:$0xff]
          %v562 = vld [vmem:[#allocation2 + $0x18] sm:$0xff]
          %v563 = vld [vmem:[%s387] sm:$0x1]
          %v565 = vlaneseq
          %v566 = vshrl.u32 %v565, 7
          %v567 = vsub.s32 0, %v566
          %v568 = vrot.slane %v563, %v567
          %v570 = vadd.f32 %v559, %v568
          %v571 = vadd.f32 %v560, %v568
          %v572 = vadd.f32 %v561, %v568
          %v573 = vadd.f32 %v562, %v568
          %574 = vst [vmem:[%s374] sm:$0xff] %v570
          %575 = vst [vmem:[%s374 + $0x8] sm:$0xff] %v571
          %576 = vst [vmem:[%s374 + $0x10] sm:$0xff] %v572
          %577 = vst [vmem:[%s374 + $0x18] sm:$0xff] %v573
        $region86: #{gpt_forward.15} parent=73 // pred_fallthru
          _
        %s578 = sand.u32 %s169, 1
        %s579 = sand.u32 %s169, 1
        %s580 = smul.addr %s579, 32
        %s581 = scalar_lea.vmem [#allocation4], %s580
        // Predicated region
        $region87: #{gpt_forward.15} parent=73 // pred_check
          %p582 = pneg %p179
        $region88: #{gpt_forward.15} parent=73 // pred_check_branch
          %584 = sbr.rel (%p582) target = $region90
        $region89: #{gpt_forward.15} parent=73 // pred_region
          %s585 = smul.u32 4, %s21
          %s586 = smul.addr %s585, 3
          %s587 = sadd.s32 %s22, %s586
          %s588 = smul.addr %s587, 8
          %s589 = scalar_lea.vmem %s5, %s588
          // Predicated region
          $region91: #{gpt_forward.15} parent=89 // pred_check
            _
          $region92: #{gpt_forward.15} parent=89 // pred_check_branch
            %591 = sbr.rel (0) target = $region94
          $region93: #{gpt_forward.15} parent=89 // pred_region
            // Predicated region
            $region95: #{gpt_forward.15} parent=93 // pred_check
              _
            $region96: #{gpt_forward.15} parent=93 // pred_check_branch
              %593 = sbr.rel (0) target = $region98
            $region97: #{gpt_forward.15} parent=93 // pred_region
              // Predicated region
              $region110: #{gpt_forward.15} parent=97 // pred_check
                _
              $region111: #{gpt_forward.15} parent=97 // pred_check_branch
                %615 = sbr.rel (0) target = $region113
              $region112: #{gpt_forward.15} parent=97 // pred_region
                loop: start=0, step=1, limit=1
                $region114: #{gpt_forward.15} parent=112 // loop_pre_header
                  _
                $region115: #{gpt_forward.15} parent=112 // loop_header
                  %s617 = sphi 0, %s621
                  %p618 = scmp.ge.s32.totalorder %s617, 1
                  %s622 = sphi %s581, %s581
                  %s623 = sphi %s589, %s589
                $region116: #{gpt_forward.15} parent=112 // loop_header_branch
                  %620 = sbr.rel (%p618) target = $region120
                $region117: #{gpt_forward.15} parent=112 // loop_body
                  %v624 = vld [vmem:[%s622] sm:$0xff]
                  %625 = vst [vmem:[%s623] sm:$0xff] %v624
                  %v626 = vld [vmem:[%s622 + $0x8] sm:$0xff]
                  %627 = vst [vmem:[%s623 + $0x18] sm:$0xff] %v626
                  %v628 = vld [vmem:[%s622 + $0x10] sm:$0xff]
                  %629 = vst [vmem:[%s623 + $0x30] sm:$0xff] %v628
                  %v630 = vld [vmem:[%s622 + $0x18] sm:$0xff]
                  %631 = vst [vmem:[%s623 + $0x48] sm:$0xff] %v630
                $region118: #{gpt_forward.15} parent=112 // loop_footer
                  %s621 = sadd.s32 1, %s617
                $region119: #{gpt_forward.15} parent=112 // loop_footer_branch
                  %616 = sbr.rel target = $region115
                $region120: #{gpt_forward.15} parent=112 // loop_exit
                  _
              $region113: #{gpt_forward.15} parent=97 // pred_fallthru
                _
              // Predicated region
              $region121: #{gpt_forward.15} parent=97 // pred_check
                _
              $region122: #{gpt_forward.15} parent=97 // pred_check_branch
                %633 = sbr.rel target = $region124
              $region123: #{gpt_forward.15} parent=97 // pred_region
                _
              $region124: #{gpt_forward.15} parent=97 // pred_fallthru
                _
            $region98: #{gpt_forward.15} parent=93 // pred_fallthru
              _
            // Predicated region
            $region99: #{gpt_forward.15} parent=93 // pred_check
              _
            $region100: #{gpt_forward.15} parent=93 // pred_check_branch
              %595 = sbr.rel target = $region102
            $region101: #{gpt_forward.15} parent=93 // pred_region
              %s597 = ssub.s32 256, 1
              loop: start=0, step=1, limit=1
              $region103: #{gpt_forward.15} parent=101 // loop_pre_header
                _
              $region104: #{gpt_forward.15} parent=101 // loop_header
                %s599 = sphi 0, %s603
                %p600 = scmp.ge.s32.totalorder %s599, 1
                %s604 = sphi %s581, %s581
                %s605 = sphi %s589, %s589
              $region105: #{gpt_forward.15} parent=101 // loop_header_branch
                %602 = sbr.rel (%p600) target = $region109
              $region106: #{gpt_forward.15} parent=101 // loop_body
                %v606 = vld [vmem:[%s604] sm:%s597]
                %607 = vst [vmem:[%s605] sm:%s597] %v606
                %v608 = vld [vmem:[%s604 + $0x8] sm:%s597]
                %609 = vst [vmem:[%s605 + $0x18] sm:%s597] %v608
                %v610 = vld [vmem:[%s604 + $0x10] sm:%s597]
                %611 = vst [vmem:[%s605 + $0x30] sm:%s597] %v610
                %v612 = vld [vmem:[%s604 + $0x18] sm:%s597]
                %613 = vst [vmem:[%s605 + $0x48] sm:%s597] %v612
              $region107: #{gpt_forward.15} parent=101 // loop_footer
                %s603 = sadd.s32 1, %s599
              $region108: #{gpt_forward.15} parent=101 // loop_footer_branch
                %598 = sbr.rel target = $region104
              $region109: #{gpt_forward.15} parent=101 // loop_exit
                _
            $region102: #{gpt_forward.15} parent=93 // pred_fallthru
              _
          $region94: #{gpt_forward.15} parent=89 // pred_fallthru
            _
          %634 = vnop
        $region90: #{gpt_forward.15} parent=73 // pred_fallthru
          _
      $region74: #{gpt_forward.15} parent=5 // pred_fallthru
        _
      %p635 = scmp.le.s32.totalorder 2, %s11
      // Predicated region
      $region125: #{gpt_forward.15} parent=5 // pred_check
        %p636 = pneg %p635
      $region126: #{gpt_forward.15} parent=5 // pred_check_branch
        %638 = sbr.rel (%p636) target = $region128
      $region127: #{gpt_forward.15} parent=5 // pred_region
        %s639 = ssub.s32 %s11, 2
        // Predicated region
        $region129: #{gpt_forward.15} parent=127 // pred_check
          %p640 = pneg %p185
        $region130: #{gpt_forward.15} parent=127 // pred_check_branch
          %642 = sbr.rel (%p640) target = $region132
        $region131: #{gpt_forward.15} parent=127 // pred_region
          %s643 = sand.u32 %s170, 1
          %s644 = sand.u32 %s170, 1
          %s645 = smul.addr %s644, 32
          %s646 = scalar_lea.vmem [#allocation4], %s645
        $region132: #{gpt_forward.15} parent=127 // pred_fallthru
          _
      $region128: #{gpt_forward.15} parent=5 // pred_fallthru
        _
    $region6: #{gpt_forward.15} parent=1 // loop_footer
      %s15 = sadd.s32 1, %s11
    $region7: #{gpt_forward.15} parent=1 // loop_footer_branch
      %10 = sbr.rel target = $region3
    $region8: #{gpt_forward.15} parent=1 // loop_exit
      _

// kernel: gpt_forward.17
$region0: #{gpt_forward.17}
  #allocation0 [shape = 'u32[]', space=smem, size = 0x4, offset = 0x4, fixed_abs, tag = 'smem constant byte address 0x4 - core index']
  #allocation1 [shape = 'u32[144,128]{1,0:T(1,128)}', space=vmem, size = 0x12000, scoped, tag = 'internal scratch']
  #allocation2 [shape = 'f32[32,128]{1,0:T(8,128)}', space=vmem, size = 0x4000, scoped, tag = 'scratch operand']
  %s0 = inlined_call_operand.vmem [shape: f32[32,128], index: 0, kind: input, shape index: {}]
  %s1 = inlined_call_operand.vmem [shape: f32[128,128], index: 1, kind: input, shape index: {}]
  %s2 = inlined_call_operand.vmem [shape: f32[1,128], index: 2, kind: input, shape index: {}]
  %s3 = inlined_call_operand.vmem [shape: f32[32,128], index: 3, kind: input, shape index: {}]
  %s4 = inlined_call_operand.vmem [shape: f32[32,128], index: 4, kind: output, shape index: {}]
  %s5 = sld [smem:[#allocation0]]
  $region34: #{gpt_forward.17} parent=0
    _
  %s7 = ssub.s32 1, %s5
  %s8 = scalar_select 0, %s7, %s5
  // Predicated region
  $region2: #{gpt_forward.17} parent=0 // pred_check
    _
  $region3: #{gpt_forward.17} parent=0 // pred_check_branch
    %10 = sbr.rel (0) target = $region5
  $region4: #{gpt_forward.17} parent=0 // pred_region
    _
  $region5: #{gpt_forward.17} parent=0 // pred_fallthru
    _
  // Predicated region
  $region6: #{gpt_forward.17} parent=0 // pred_check
    _
  $region7: #{gpt_forward.17} parent=0 // pred_check_branch
    %12 = sbr.rel (0) target = $region9
  $region8: #{gpt_forward.17} parent=0 // pred_region
    _
  $region9: #{gpt_forward.17} parent=0 // pred_fallthru
    _
  // Predicated region
  $region10: #{gpt_forward.17} parent=0 // pred_check
    _
  $region11: #{gpt_forward.17} parent=0 // pred_check_branch
    %14 = sbr.rel (0) target = $region13
  $region12: #{gpt_forward.17} parent=0 // pred_region
    _
  $region13: #{gpt_forward.17} parent=0 // pred_fallthru
    _
  // Predicated region
  $region14: #{gpt_forward.17} parent=0 // pred_check
    _
  $region15: #{gpt_forward.17} parent=0 // pred_check_branch
    %16 = sbr.rel (0) target = $region17
  $region16: #{gpt_forward.17} parent=0 // pred_region
    _
  $region17: #{gpt_forward.17} parent=0 // pred_fallthru
    _
  %p18 = scmp.eq.s32.totalorder 0, 0
  // Predicated region
  $region18: #{gpt_forward.17} parent=0 // pred_check
    %p19 = pneg %p18
  $region19: #{gpt_forward.17} parent=0 // pred_check_branch
    %21 = sbr.rel (%p19) target = $region21
  $region20: #{gpt_forward.17} parent=0 // pred_region
    %22 = vst [vmem:[#allocation2] sm:$0xff] 0.0
    %23 = vst [vmem:[#allocation2 + $0x8] sm:$0xff] 0.0
    %24 = vst [vmem:[#allocation2 + $0x10] sm:$0xff] 0.0
    %25 = vst [vmem:[#allocation2 + $0x18] sm:$0xff] 0.0
  $region21: #{gpt_forward.17} parent=0 // pred_fallthru
    _
  %v26 = vld [vmem:[%s0] sm:$0xff]
  %v27 = vld [vmem:[%s0 + $0x8] sm:$0xff]
  %v28 = vld [vmem:[%s0 + $0x10] sm:$0xff]
  %v29 = vld [vmem:[%s0 + $0x18] sm:$0xff]
  %v30 = vld [vmem:[#allocation2] sm:$0xff]
  %v31 = vld [vmem:[#allocation2 + $0x8] sm:$0xff]
  %v32 = vld [vmem:[#allocation2 + $0x10] sm:$0xff]
  %v33 = vld [vmem:[#allocation2 + $0x18] sm:$0xff]
  %v34 = vpack.c.bf16 %v27, %v26
  %v35 = vpack.c.bf16 %v29, %v28
  %v36 = vld [vmem:[%s1] sm:$0xff]
  %v37 = vld [vmem:[%s1 + $0x8] sm:$0xff]
  %v38 = vld [vmem:[%s1 + $0x10] sm:$0xff]
  %v39 = vld [vmem:[%s1 + $0x18] sm:$0xff]
  %v40 = vld [vmem:[%s1 + $0x20] sm:$0xff]
  %v41 = vld [vmem:[%s1 + $0x28] sm:$0xff]
  %v42 = vld [vmem:[%s1 + $0x30] sm:$0xff]
  %v43 = vld [vmem:[%s1 + $0x38] sm:$0xff]
  %v44 = vld [vmem:[%s1 + $0x40] sm:$0xff]
  %v45 = vld [vmem:[%s1 + $0x48] sm:$0xff]
  %v46 = vld [vmem:[%s1 + $0x50] sm:$0xff]
  %v47 = vld [vmem:[%s1 + $0x58] sm:$0xff]
  %v48 = vld [vmem:[%s1 + $0x60] sm:$0xff]
  %v49 = vld [vmem:[%s1 + $0x68] sm:$0xff]
  %v50 = vld [vmem:[%s1 + $0x70] sm:$0xff]
  %v51 = vld [vmem:[%s1 + $0x78] sm:$0xff]
  %v52 = vpack.c.bf16 %v37, %v36
  %v53 = vpack.c.bf16 %v39, %v38
  %v54 = vpack.c.bf16 %v41, %v40
  %v55 = vpack.c.bf16 %v43, %v42
  %v56 = vpack.c.bf16 %v45, %v44
  %v57 = vpack.c.bf16 %v47, %v46
  %v58 = vpack.c.bf16 %v49, %v48
  %v59 = vpack.c.bf16 %v51, %v50
  %60 = vmatprep.subr.bf16.mxu0 0
  %61 = vmatpush1.bf16.msra.mxu0 %v59
  %62 = vmatprep.subr.bf16.mxu0 0
  %63 = vmatpush1.bf16.msra.mxu0 %v58
  %64 = vmatprep.subr.bf16.mxu0 0
  %65 = vmatpush1.bf16.msra.mxu0 %v57
  %66 = vmatprep.subr.bf16.mxu0 0
  %67 = vmatpush1.bf16.msra.mxu0 %v56
  %68 = vmatprep.subr.bf16.mxu0 0
  %69 = vmatpush1.bf16.msra.mxu0 %v55
  %70 = vmatprep.subr.bf16.mxu0 0
  %71 = vmatpush1.bf16.msra.mxu0 %v54
  %72 = vmatprep.subr.bf16.mxu0 0
  %73 = vmatpush1.bf16.msra.mxu0 %v53
  %74 = vmatprep.subr.bf16.mxu0 0
  %75 = vmatpush1.bf16.msra.mxu0 %v52
  %76 = vmatprep.subr.bf16.mxu0 0
  %77 = vmatpush2.bf16.msra.mxu0 0
  %78 = vmatprep.subr.bf16.mxu0 0
  %79 = vmatpush2.bf16.msra.mxu0 0
  %80 = vmatprep.subr.bf16.mxu0 0
  %81 = vmatpush2.bf16.msra.mxu0 0
  %82 = vmatprep.subr.bf16.mxu0 0
  %83 = vmatpush2.bf16.msra.mxu0 0
  %84 = vmatprep.subr.bf16.mxu0 0
  %85 = vmatpush2.bf16.msra.mxu0 0
  %86 = vmatprep.subr.bf16.mxu0 0
  %87 = vmatpush2.bf16.msra.mxu0 0
  %88 = vmatprep.subr.bf16.mxu0 0
  %89 = vmatpush2.bf16.msra.mxu0 0
  %90 = vmatprep.subr.bf16.mxu0 0
  %91 = vmatpush2.bf16.msra.mxu0 0
  %92 = vmatprep.mubr.bf16.mxu0 0
  %93 = vmatmul.mubr.bf16.gmra.mxu0 %v34
  %v94 = vpop.f32.mrf.mxu0
  %v95 = vadd.f32 0.0, %v94
  %v96 = vpop.f32.mrf.mxu0
  %v97 = vpop.f32.mrf.mxu0
  %v98 = vadd.f32 0.0, %v97
  %v99 = vpop.f32.mrf.mxu0
  %100 = vmatprep.mubr.bf16.mxu0 0
  %101 = vmatmul.mubr.bf16.gmra.mxu0 %v35
  %v102 = vpop.f32.mrf.mxu0
  %v103 = vadd.f32 0.0, %v102
  %v104 = vpop.f32.mrf.mxu0
  %v105 = vpop.f32.mrf.mxu0
  %v106 = vadd.f32 0.0, %v105
  %v107 = vpop.f32.mrf.mxu0
  %108 = vdwg.mxu0
  %v109 = vadd.f32 %v30, %v95
  %v110 = vadd.f32 %v31, %v98
  %v111 = vadd.f32 %v32, %v103
  %v112 = vadd.f32 %v33, %v106
  %113 = vst [vmem:[#allocation2] sm:$0xff] %v109
  %114 = vst [vmem:[#allocation2 + $0x8] sm:$0xff] %v110
  %115 = vst [vmem:[#allocation2 + $0x10] sm:$0xff] %v111
  %116 = vst [vmem:[#allocation2 + $0x18] sm:$0xff] %v112
  // Predicated region
  $region22: #{gpt_forward.17} parent=0 // pred_check
    %p117 = pneg %p18
  $region23: #{gpt_forward.17} parent=0 // pred_check_branch
    %119 = sbr.rel (%p117) target = $region25
  $region24: #{gpt_forward.17} parent=0 // pred_region
    %v120 = vld [vmem:[#allocation2] sm:$0xff]
    %v121 = vld [vmem:[#allocation2 + $0x8] sm:$0xff]
    %v122 = vld [vmem:[#allocation2 + $0x10] sm:$0xff]
    %v123 = vld [vmem:[#allocation2 + $0x18] sm:$0xff]
    %v124 = vld [vmem:[%s2] sm:$0x1]
    %v126 = vlaneseq
    %v127 = vshrl.u32 %v126, 7
    %v128 = vsub.s32 0, %v127
    %v129 = vrot.slane %v124, %v128
    %v131 = vadd.f32 %v120, %v129
    %v132 = vadd.f32 %v121, %v129
    %v133 = vadd.f32 %v122, %v129
    %v134 = vadd.f32 %v123, %v129
    %v135 = vld [vmem:[%s3] sm:$0xff]
    %v136 = vld [vmem:[%s3 + $0x8] sm:$0xff]
    %v137 = vld [vmem:[%s3 + $0x10] sm:$0xff]
    %v138 = vld [vmem:[%s3 + $0x18] sm:$0xff]
    %v139 = vadd.f32 %v131, %v135
    %v140 = vadd.f32 %v132, %v136
    %v141 = vadd.f32 %v133, %v137
    %v142 = vadd.f32 %v134, %v138
    %143 = vst [vmem:[%s4] sm:$0xff] %v139
    %144 = vst [vmem:[%s4 + $0x8] sm:$0xff] %v140
    %145 = vst [vmem:[%s4 + $0x10] sm:$0xff] %v141
    %146 = vst [vmem:[%s4 + $0x18] sm:$0xff] %v142
  $region25: #{gpt_forward.17} parent=0 // pred_fallthru
    _
  // Predicated region
  $region26: #{gpt_forward.17} parent=0 // pred_check
    _
  $region27: #{gpt_forward.17} parent=0 // pred_check_branch
    %148 = sbr.rel (0) target = $region29
  $region28: #{gpt_forward.17} parent=0 // pred_region
    _
  $region29: #{gpt_forward.17} parent=0 // pred_fallthru
    _
  // Predicated region
  $region30: #{gpt_forward.17} parent=0 // pred_check
    _
  $region31: #{gpt_forward.17} parent=0 // pred_check_branch
    %150 = sbr.rel (0) target = $region33
  $region32: #{gpt_forward.17} parent=0 // pred_region
    _
  $region33: #{gpt_forward.17} parent=0 // pred_fallthru
    _

// kernel: gpt_forward.18
$region0: #{gpt_forward.18}
  #allocation0 [shape = 'u32[]', space=smem, size = 0x4, offset = 0x4, fixed_abs, tag = 'smem constant byte address 0x4 - core index']
  #allocation1 [shape = 'u32[144,128]{1,0:T(1,128)}', space=vmem, size = 0x12000, scoped, tag = 'internal scratch']
  #allocation2 [shape = 'f32[32,256]{1,0:T(8,128)}', space=vmem, size = 0x8000, scoped, tag = 'scratch operand']
  %s0 = inlined_call_operand.vmem [shape: f32[32,128], index: 0, kind: input, shape index: {}]
  %s1 = inlined_call_operand.vmem [shape: f32[1,128], index: 1, kind: input, shape index: {}]
  %s2 = inlined_call_operand.vmem [shape: f32[1,128], index: 2, kind: input, shape index: {}]
  %s3 = inlined_call_operand.vmem [shape: f32[128,512], index: 3, kind: input, shape index: {}]
  %s4 = inlined_call_operand.vmem [shape: f32[1,512], index: 4, kind: input, shape index: {}]
  %s5 = inlined_call_operand.vmem [shape: f32[32,512], index: 5, kind: output, shape index: {}]
  %s6 = sld [smem:[#allocation0]]
  $region103: #{gpt_forward.18} parent=0
    _
  %s8 = ssub.s32 1, %s6
  %s9 = scalar_select 0, %s8, %s6
  $region1: #{gpt_forward.18} parent=0
    #allocation3 [shape = 'u8[262144]{0}', space=vmem, size = 0x40000, scoped, tag = 'input window, operand 3']
    #allocation4 [shape = 'u8[65536]{0}', space=vmem, size = 0x10000, scoped, tag = 'output window, operand 0']
    loop: start=0, step=1, limit=4
    $region2: #{gpt_forward.18} parent=1 // loop_pre_header
      _
    $region3: #{gpt_forward.18} parent=1 // loop_header
      %s11 = sphi 0, %s15
      %p12 = scmp.ge.s32.totalorder %s11, 4
      %s18 = sphi 0, %s37
      %s19 = sphi 0, %s33
      %s20 = sphi 0, %s29
      %s21 = sphi 0, %s18
      %s22 = sphi 0, %s19
      %s23 = sphi 0, %s20
      %s24 = sphi 0, %s21
      %s25 = sphi 0, %s22
      %s26 = sphi 0, %s23
      %s42 = sphi 0, %s44
      %s45 = sphi 0, %s42
      %s46 = sphi 0, %s45
      %s62 = sphi 0, %s46
      %s66 = sphi 0, %s66
      %s68 = sphi 0, %s66
      %s69 = sphi 0, %s68
      %s83 = sphi 0, %s69
      %s87 = sphi 0, %s87
      %s89 = sphi 0, %s87
      %s90 = sphi 0, %s89
      %s104 = sphi 0, %s90
      %s112 = sphi 0, %s114
      %s115 = sphi 0, %s112
      %s116 = sphi 0, %s115
      %s132 = sphi 0, %s116
      %s138 = sphi 0, %s140
      %s141 = sphi 0, %s138
      %s142 = sphi 0, %s141
      %s158 = sphi 0, %s142
      %s166 = sphi 0, %s168
      %s169 = sphi 0, %s166
      %s170 = sphi 0, %s169
      %s186 = sphi 0, %s170
    $region4: #{gpt_forward.18} parent=1 // loop_header_branch
      %14 = sbr.rel (%p12) target = $region8
    $region5: #{gpt_forward.18} parent=1 // loop_body
      %s16 = ssub.s32 %s11, 1
      %s17 = ssub.s32 %s11, 2
      %s27 = sadd.s32 1, %s20
      %p28 = scmp.ge.s32.totalorder %s27, 1
      %s29 = scalar_select %p28, 0, %s27
      %s30 = sadd.s32 1, %s19
      %s31 = scalar_select %p28, %s30, %s19
      %p32 = scmp.ge.s32.totalorder %s31, 2
      %s33 = scalar_select %p32, 0, %s31
      %s34 = sadd.s32 1, %s18
      %s35 = scalar_select %p32, %s34, %s18
      %p36 = scmp.ge.s32.totalorder %s35, 1
      %s37 = scalar_select %p36, 0, %s35
      %s38 = ssub.s32 %s18, %s37
      %s39 = ssub.s32 %s20, %s29
      %s40 = sor.u32 %s38, %s39
      %p41 = scmp.eq.s32.totalorder %s40, 0
      %s43 = sadd.s32 %s42, 1
      %s44 = scalar_select %p41, %s42, %s43
      %p47 = pneg %p41
      %p48 = scmp.eq.s32.totalorder %s11, 1
      %p49 = por %p47, %p48
      %p50 = scmp.ne.s32.totalorder %s42, %s45
      %p51 = scmp.eq.s32.totalorder %s11, 0
      %p52 = por %p50, %p51
      %p53 = scmp.ne.s32.totalorder %s42, %s45
      %p54 = scmp.eq.s32.totalorder %s16, 1
      %p55 = por %p53, %p54
      %p56 = scmp.ne.s32.totalorder %s45, %s46
      %p57 = scmp.eq.s32.totalorder %s16, 0
      %p58 = por %p56, %p57
      %p59 = scmp.ne.s32.totalorder %s45, %s46
      %p60 = scmp.eq.s32.totalorder %s17, 1
      %p61 = por %p59, %p60
      %p63 = scmp.ne.s32.totalorder %s46, %s62
      %p64 = scmp.eq.s32.totalorder %s17, 0
      %p65 = por %p63, %p64
      %s67 = sadd.s32 %s66, 1
      %p70 = scmp.eq.s32.totalorder %s11, 1
      %p71 = scmp.ne.s32.totalorder %s66, %s68
      %p72 = scmp.eq.s32.totalorder %s11, 0
      %p73 = por %p71, %p72
      %p74 = scmp.ne.s32.totalorder %s66, %s68
      %p75 = scmp.eq.s32.totalorder %s16, 1
      %p76 = por %p74, %p75
      %p77 = scmp.ne.s32.totalorder %s68, %s69
      %p78 = scmp.eq.s32.totalorder %s16, 0
      %p79 = por %p77, %p78
      %p80 = scmp.ne.s32.totalorder %s68, %s69
      %p81 = scmp.eq.s32.totalorder %s17, 1
      %p82 = por %p80, %p81
      %p84 = scmp.ne.s32.totalorder %s69, %s83
      %p85 = scmp.eq.s32.totalorder %s17, 0
      %p86 = por %p84, %p85
      %s88 = sadd.s32 %s87, 1
      %p91 = scmp.eq.s32.totalorder %s11, 1
      %p92 = scmp.ne.s32.totalorder %s87, %s89
      %p93 = scmp.eq.s32.totalorder %s11, 0
      %p94 = por %p92, %p93
      %p95 = scmp.ne.s32.totalorder %s87, %s89
      %p96 = scmp.eq.s32.totalorder %s16, 1
      %p97 = por %p95, %p96
      %p98 = scmp.ne.s32.totalorder %s89, %s90
      %p99 = scmp.eq.s32.totalorder %s16, 0
      %p100 = por %p98, %p99
      %p101 = scmp.ne.s32.totalorder %s89, %s90
      %p102 = scmp.eq.s32.totalorder %s17, 1
      %p103 = por %p101, %p102
      %p105 = scmp.ne.s32.totalorder %s90, %s104
      %p106 = scmp.eq.s32.totalorder %s17, 0
      %p107 = por %p105, %p106
      %s108 = ssub.s32 %s20, %s29
      %s109 = ssub.s32 %s19, %s33
      %s110 = sor.u32 %s108, %s109
      %p111 = scmp.eq.s32.totalorder %s110, 0
      %s113 = sadd.s32 %s112, 1
      %s114 = scalar_select %p111, %s112, %s113
      %p117 = pneg %p111
      %p118 = scmp.eq.s32.totalorder %s11, 1
      %p119 = por %p117, %p118
      %p120 = scmp.ne.s32.totalorder %s112, %s115
      %p121 = scmp.eq.s32.totalorder %s11, 0
      %p122 = por %p120, %p121
      %p123 = scmp.ne.s32.totalorder %s112, %s115
      %p124 = scmp.eq.s32.totalorder %s16, 1
      %p125 = por %p123, %p124
      %p126 = scmp.ne.s32.totalorder %s115, %s116
      %p127 = scmp.eq.s32.totalorder %s16, 0
      %p128 = por %p126, %p127
      %p129 = scmp.ne.s32.totalorder %s115, %s116
      %p130 = scmp.eq.s32.totalorder %s17, 1
      %p131 = por %p129, %p130
      %p133 = scmp.ne.s32.totalorder %s116, %s132
      %p134 = scmp.eq.s32.totalorder %s17, 0
      %p135 = por %p133, %p134
      %s136 = ssub.s32 %s19, %s33
      %p137 = scmp.eq.s32.totalorder %s136, 0
      %s139 = sadd.s32 %s138, 1
      %s140 = scalar_select %p137, %s138, %s139
      %p143 = pneg %p137
      %p144 = scmp.eq.s32.totalorder %s11, 1
      %p145 = por %p143, %p144
      %p146 = scmp.ne.s32.totalorder %s138, %s141
      %p147 = scmp.eq.s32.totalorder %s11, 0
      %p148 = por %p146, %p147
      %p149 = scmp.ne.s32.totalorder %s138, %s141
      %p150 = scmp.eq.s32.totalorder %s16, 1
      %p151 = por %p149, %p150
      %p152 = scmp.ne.s32.totalorder %s141, %s142
      %p153 = scmp.eq.s32.totalorder %s16, 0
      %p154 = por %p152, %p153
      %p155 = scmp.ne.s32.totalorder %s141, %s142
      %p156 = scmp.eq.s32.totalorder %s17, 1
      %p157 = por %p155, %p156
      %p159 = scmp.ne.s32.totalorder %s142, %s158
      %p160 = scmp.eq.s32.totalorder %s17, 0
      %p161 = por %p159, %p160
      %s162 = ssub.s32 %s18, %s37
      %s163 = ssub.s32 %s19, %s33
      %s164 = sor.u32 %s162, %s163
      %p165 = scmp.eq.s32.totalorder %s164, 0
      %s167 = sadd.s32 %s166, 1
      %s168 = scalar_select %p165, %s166, %s167
      %p171 = pneg %p165
      %p172 = scmp.eq.s32.totalorder %s11, 1
      %p173 = por %p171, %p172
      %p174 = scmp.ne.s32.totalorder %s166, %s169
      %p175 = scmp.eq.s32.totalorder %s11, 0
      %p176 = por %p174, %p175
      %p177 = scmp.ne.s32.totalorder %s166, %s169
      %p178 = scmp.eq.s32.totalorder %s16, 1
      %p179 = por %p177, %p178
      %p180 = scmp.ne.s32.totalorder %s169, %s170
      %p181 = scmp.eq.s32.totalorder %s16, 0
      %p182 = por %p180, %p181
      %p183 = scmp.ne.s32.totalorder %s169, %s170
      %p184 = scmp.eq.s32.totalorder %s17, 1
      %p185 = por %p183, %p184
      %p187 = scmp.ne.s32.totalorder %s170, %s186
      %p188 = scmp.eq.s32.totalorder %s17, 0
      %p189 = por %p187, %p188
      %p190 = scmp.le.s32.totalorder 1, %s11
      %p191 = scmp.lt.s32.totalorder %s11, 3
      %p192 = pnand %p190, %p191
      %p193 = pneg %p192
      // Predicated region
      $region9: #{gpt_forward.18} parent=5 // pred_check
        _
      $region10: #{gpt_forward.18} parent=5 // pred_check_branch
        %195 = sbr.rel (%p192) target = $region12
      $region11: #{gpt_forward.18} parent=5 // pred_region
        %s196 = ssub.s32 %s11, 1
        // Predicated region
        $region13: #{gpt_forward.18} parent=11 // pred_check
          %p197 = pneg %p58
        $region14: #{gpt_forward.18} parent=11 // pred_check_branch
          %199 = sbr.rel (%p197) target = $region16
        $region15: #{gpt_forward.18} parent=11 // pred_region
          %s200 = smul.u32 4, %s21
          %p201 = scmp.lt.s32.totalorder %s200, 3
          %s202 = scalar_select %p201, %s200, 3
          %p203 = scmp.lt.s32.totalorder %s23, 0
          %s204 = scalar_select %p203, %s23, 0
          %s205 = sadd.s32 %s204, %s202
          %s206 = smul.addr %s205, 8
          %s207 = scalar_lea.vmem %s0, %s206
          %s208 = smul.u32 4, %s21
        $region16: #{gpt_forward.18} parent=11 // pred_fallthru
          _
        // Predicated region
        $region17: #{gpt_forward.18} parent=11 // pred_check
          %p209 = pneg %p79
        $region18: #{gpt_forward.18} parent=11 // pred_check_branch
          %211 = sbr.rel (%p209) target = $region20
        $region19: #{gpt_forward.18} parent=11 // pred_region
          _
        $region20: #{gpt_forward.18} parent=11 // pred_fallthru
          _
        // Predicated region
        $region21: #{gpt_forward.18} parent=11 // pred_check
          %p212 = pneg %p100
        $region22: #{gpt_forward.18} parent=11 // pred_check_branch
          %214 = sbr.rel (%p212) target = $region24
        $region23: #{gpt_forward.18} parent=11 // pred_region
          _
        $region24: #{gpt_forward.18} parent=11 // pred_fallthru
          _
      $region12: #{gpt_forward.18} parent=5 // pred_fallthru
        _
      %p215 = scmp.lt.s32.totalorder %s11, 2
      // Predicated region
      $region25: #{gpt_forward.18} parent=5 // pred_check
        %p216 = pneg %p215
      $region26: #{gpt_forward.18} parent=5 // pred_check_branch
        %218 = sbr.rel (%p216) target = $region28
      $region27: #{gpt_forward.18} parent=5 // pred_region
        // Predicated region
        $region29: #{gpt_forward.18} parent=27 // pred_check
          %p219 = pneg %p122
        $region30: #{gpt_forward.18} parent=27 // pred_check_branch
          %221 = sbr.rel (%p219) target = $region32
        $region31: #{gpt_forward.18} parent=27 // pred_region
          %s222 = sand.u32 %s112, 1
          %s223 = sand.u32 %s112, 1
          %s224 = smul.addr %s223, 256
          %s225 = scalar_lea.vmem [#allocation3], %s224
          %s226 = smul.u32 16, %s20
          %s227 = smul.u32 2, %s19
          %s228 = smul.addr %s226, 4
          %s229 = sadd.s32 %s227, %s228
          %s230 = smul.addr %s229, 8
          %s231 = scalar_lea.vmem %s3, %s230
          // Predicated region
          $region33: #{gpt_forward.18} parent=31 // pred_check
            _
          $region34: #{gpt_forward.18} parent=31 // pred_check_branch
            %233 = sbr.rel (0) target = $region36
          $region35: #{gpt_forward.18} parent=31 // pred_region
            // Predicated region
            $region37: #{gpt_forward.18} parent=35 // pred_check
              _
            $region38: #{gpt_forward.18} parent=35 // pred_check_branch
              %235 = sbr.rel (0) target = $region40
            $region39: #{gpt_forward.18} parent=35 // pred_region
              loop: start=0, step=1, limit=1
              $region41: #{gpt_forward.18} parent=39 // loop_pre_header
                _
              $region42: #{gpt_forward.18} parent=39 // loop_header
                %s237 = sphi 0, %s241
                %p238 = scmp.ge.s32.totalorder %s237, 1
                %s242 = sphi %s231, %s231
                %s243 = sphi %s225, %s225
              $region43: #{gpt_forward.18} parent=39 // loop_header_branch
                %240 = sbr.rel (%p238) target = $region47
              $region44: #{gpt_forward.18} parent=39 // loop_body
                %v244 = vld [vmem:[%s242] sm:$0xff]
                %245 = vst [vmem:[%s243] sm:$0xff] %v244
                %v246 = vld [vmem:[%s242 + $0x8] sm:$0xff]
                %247 = vst [vmem:[%s243 + $0x8] sm:$0xff] %v246
                %v248 = vld [vmem:[%s242 + $0x20] sm:$0xff]
                %249 = vst [vmem:[%s243 + $0x10] sm:$0xff] %v248
                %v250 = vld [vmem:[%s242 + $0x28] sm:$0xff]
                %251 = vst [vmem:[%s243 + $0x18] sm:$0xff] %v250
                %v252 = vld [vmem:[%s242 + $0x40] sm:$0xff]
                %253 = vst [vmem:[%s243 + $0x20] sm:$0xff] %v252
                %v254 = vld [vmem:[%s242 + $0x48] sm:$0xff]
                %255 = vst [vmem:[%s243 + $0x28] sm:$0xff] %v254
                %v256 = vld [vmem:[%s242 + $0x60] sm:$0xff]
                %257 = vst [vmem:[%s243 + $0x30] sm:$0xff] %v256
                %v258 = vld [vmem:[%s242 + $0x68] sm:$0xff]
                %259 = vst [vmem:[%s243 + $0x38] sm:$0xff] %v258
                %v260 = vld [vmem:[%s242 + $0x80] sm:$0xff]
                %261 = vst [vmem:[%s243 + $0x40] sm:$0xff] %v260
                %v262 = vld [vmem:[%s242 + $0x88] sm:$0xff]
                %263 = vst [vmem:[%s243 + $0x48] sm:$0xff] %v262
                %v264 = vld [vmem:[%s242 + $0xa0] sm:$0xff]
                %265 = vst [vmem:[%s243 + $0x50] sm:$0xff] %v264
                %v266 = vld [vmem:[%s242 + $0xa8] sm:$0xff]
                %267 = vst [vmem:[%s243 + $0x58] sm:$0xff] %v266
                %v268 = vld [vmem:[%s242 + $0xc0] sm:$0xff]
                %269 = vst [vmem:[%s243 + $0x60] sm:$0xff] %v268
                %v270 = vld [vmem:[%s242 + $0xc8] sm:$0xff]
                %271 = vst [vmem:[%s243 + $0x68] sm:$0xff] %v270
                %v272 = vld [vmem:[%s242 + $0xe0] sm:$0xff]
                %273 = vst [vmem:[%s243 + $0x70] sm:$0xff] %v272
                %v274 = vld [vmem:[%s242 + $0xe8] sm:$0xff]
                %275 = vst [vmem:[%s243 + $0x78] sm:$0xff] %v274
                %v276 = vld [vmem:[%s242 + $0x100] sm:$0xff]
                %277 = vst [vmem:[%s243 + $0x80] sm:$0xff] %v276
                %v278 = vld [vmem:[%s242 + $0x108] sm:$0xff]
                %279 = vst [vmem:[%s243 + $0x88] sm:$0xff] %v278
                %v280 = vld [vmem:[%s242 + $0x120] sm:$0xff]
                %281 = vst [vmem:[%s243 + $0x90] sm:$0xff] %v280
                %v282 = vld [vmem:[%s242 + $0x128] sm:$0xff]
                %283 = vst [vmem:[%s243 + $0x98] sm:$0xff] %v282
                %v284 = vld [vmem:[%s242 + $0x140] sm:$0xff]
                %285 = vst [vmem:[%s243 + $0xa0] sm:$0xff] %v284
                %v286 = vld [vmem:[%s242 + $0x148] sm:$0xff]
                %287 = vst [vmem:[%s243 + $0xa8] sm:$0xff] %v286
                %v288 = vld [vmem:[%s242 + $0x160] sm:$0xff]
                %289 = vst [vmem:[%s243 + $0xb0] sm:$0xff] %v288
                %v290 = vld [vmem:[%s242 + $0x168] sm:$0xff]
                %291 = vst [vmem:[%s243 + $0xb8] sm:$0xff] %v290
                %v292 = vld [vmem:[%s242 + $0x180] sm:$0xff]
                %293 = vst [vmem:[%s243 + $0xc0] sm:$0xff] %v292
                %v294 = vld [vmem:[%s242 + $0x188] sm:$0xff]
                %295 = vst [vmem:[%s243 + $0xc8] sm:$0xff] %v294
                %v296 = vld [vmem:[%s242 + $0x1a0] sm:$0xff]
                %297 = vst [vmem:[%s243 + $0xd0] sm:$0xff] %v296
                %v298 = vld [vmem:[%s242 + $0x1a8] sm:$0xff]
                %299 = vst [vmem:[%s243 + $0xd8] sm:$0xff] %v298
                %v300 = vld [vmem:[%s242 + $0x1c0] sm:$0xff]
                %301 = vst [vmem:[%s243 + $0xe0] sm:$0xff] %v300
                %v302 = vld [vmem:[%s242 + $0x1c8] sm:$0xff]
                %303 = vst [vmem:[%s243 + $0xe8] sm:$0xff] %v302
                %v304 = vld [vmem:[%s242 + $0x1e0] sm:$0xff]
                %305 = vst [vmem:[%s243 + $0xf0] sm:$0xff] %v304
                %v306 = vld [vmem:[%s242 + $0x1e8] sm:$0xff]
                %307 = vst [vmem:[%s243 + $0xf8] sm:$0xff] %v306
              $region45: #{gpt_forward.18} parent=39 // loop_footer
                %s241 = sadd.s32 1, %s237
              $region46: #{gpt_forward.18} parent=39 // loop_footer_branch
                %236 = sbr.rel target = $region42
              $region47: #{gpt_forward.18} parent=39 // loop_exit
                _
            $region40: #{gpt_forward.18} parent=35 // pred_fallthru
              _
            // Predicated region
            $region48: #{gpt_forward.18} parent=35 // pred_check
              _
            $region49: #{gpt_forward.18} parent=35 // pred_check_branch
              %309 = sbr.rel target = $region51
            $region50: #{gpt_forward.18} parent=35 // pred_region
              _
            $region51: #{gpt_forward.18} parent=35 // pred_fallthru
              _
          $region36: #{gpt_forward.18} parent=31 // pred_fallthru
            _
          %310 = vnop
        $region32: #{gpt_forward.18} parent=27 // pred_fallthru
          _
        // Predicated region
        $region52: #{gpt_forward.18} parent=27 // pred_check
          %p311 = pneg %p148
        $region53: #{gpt_forward.18} parent=27 // pred_check_branch
          %313 = sbr.rel (%p311) target = $region55
        $region54: #{gpt_forward.18} parent=27 // pred_region
          %s314 = smul.u32 2, %s19
          %p315 = scmp.lt.s32.totalorder %s314, 3
          %s316 = scalar_select %p315, %s314, 3
          %s317 = scalar_lea.vmem %s4, %s316
          %s318 = smul.u32 2, %s19
        $region55: #{gpt_forward.18} parent=27 // pred_fallthru
          _
      $region28: #{gpt_forward.18} parent=5 // pred_fallthru
        _
      %p319 = scmp.le.s32.totalorder 1, %s11
      %p320 = scmp.lt.s32.totalorder %s11, 3
      %p321 = pnand %p319, %p320
      %p322 = pneg %p321
      // Predicated region
      $region56: #{gpt_forward.18} parent=5 // pred_check
        _
      $region57: #{gpt_forward.18} parent=5 // pred_check_branch
        %324 = sbr.rel (%p321) target = $region59
      $region58: #{gpt_forward.18} parent=5 // pred_region
        %s325 = ssub.s32 %s11, 1
        %s326 = sand.u32 %s115, 1
        %s327 = sand.u32 %s115, 1
        %s328 = smul.addr %s327, 256
        %s329 = scalar_lea.vmem [#allocation3], %s328
        // Predicated region
        $region60: #{gpt_forward.18} parent=58 // pred_check
          %p330 = pneg %p128
        $region61: #{gpt_forward.18} parent=58 // pred_check_branch
          %332 = sbr.rel (%p330) target = $region63
        $region62: #{gpt_forward.18} parent=58 // pred_region
          _
        $region63: #{gpt_forward.18} parent=58 // pred_fallthru
          _
        %s333 = smul.u32 4, %s21
        %p334 = scmp.lt.s32.totalorder %s333, 3
        %s335 = scalar_select %p334, %s333, 3
        %p336 = scmp.lt.s32.totalorder %s23, 0
        %s337 = scalar_select %p336, %s23, 0
        %s338 = sadd.s32 %s337, %s335
        %s339 = smul.addr %s338, 8
        %s340 = scalar_lea.vmem %s0, %s339
        %p341 = pneg %p58
        %p342 = pneg %p55
        %p343 = pneg %p79
        %p344 = pneg %p76
        %p345 = pneg %p100
        %p346 = pneg %p97
        %s347 = sand.u32 %s115, 1
        %s348 = sand.u32 %s115, 1
        %s349 = smul.addr %s348, 256
        %s350 = scalar_lea.vmem [#allocation3], %s349
        %p351 = pneg %p128
        %p352 = pneg %p125
        %s353 = smul.u32 2, %s22
        %p354 = scmp.lt.s32.totalorder %s353, 3
        %s355 = scalar_select %p354, %s353, 3
        %s356 = scalar_lea.vmem %s4, %s355
        %p357 = pneg %p154
        %p358 = pneg %p151
        %p359 = pneg %p182
        %p360 = pneg %p179
        %s361 = sand.u32 %s169, 1
        %s362 = sand.u32 %s169, 1
        %s363 = smul.addr %s362, 64
        %s364 = scalar_lea.vmem [#allocation4], %s363
        %s365 = smul.u32 4, %s21
        %p366 = scmp.lt.s32.totalorder %s365, 3
        %s367 = scalar_select %p366, %s365, 3
        %p368 = scmp.lt.s32.totalorder %s23, 0
        %s369 = scalar_select %p368, %s23, 0
        %s370 = sadd.s32 %s369, %s367
        %s371 = smul.addr %s370, 8
        %s372 = scalar_lea.vmem %s0, %s371
        %s373 = smul.u32 4, %s21
        %s374 = smul.u32 16, %s23
        %s375 = smul.u32 2, %s22
        %s376 = smul.u32 2, %s22
        %p377 = scmp.lt.s32.totalorder %s376, 3
        %s378 = scalar_select %p377, %s376, 3
        %s379 = scalar_lea.vmem %s4, %s378
        %s380 = smul.u32 2, %s22
        %s381 = smul.u32 4, %s21
        %s382 = smul.u32 2, %s22
        %p384 = scmp.eq.s32.totalorder %s23, 0
        // Predicated region
        $region64: #{gpt_forward.18} parent=58 // pred_check
          %p385 = pneg %p384
        $region65: #{gpt_forward.18} parent=58 // pred_check_branch
          %387 = sbr.rel (%p385) target = $region67
        $region66: #{gpt_forward.18} parent=58 // pred_region
          %388 = vst [vmem:[#allocation2] sm:$0xff] 0.0
          %389 = vst [vmem:[#allocation2 + $0x8] sm:$0xff] 0.0
          %390 = vst [vmem:[#allocation2 + $0x10] sm:$0xff] 0.0
          %391 = vst [vmem:[#allocation2 + $0x18] sm:$0xff] 0.0
          %392 = vst [vmem:[#allocation2 + $0x20] sm:$0xff] 0.0
          %393 = vst [vmem:[#allocation2 + $0x28] sm:$0xff] 0.0
          %394 = vst [vmem:[#allocation2 + $0x30] sm:$0xff] 0.0
          %395 = vst [vmem:[#allocation2 + $0x38] sm:$0xff] 0.0
        $region67: #{gpt_forward.18} parent=58 // pred_fallthru
          _
        %v396 = vld [vmem:[%s372] sm:$0xff]
        %v397 = vld [vmem:[%s372 + $0x8] sm:$0xff]
        %v398 = vld [vmem:[%s372 + $0x10] sm:$0xff]
        %v399 = vld [vmem:[%s372 + $0x18] sm:$0xff]
        %400 = vadd.xlane.f32.xlu0 %v396
        %v401 = vpop.xlane.xlu0 %400
        %402 = vadd.xlane.f32.xlu0 %v397
        %v403 = vpop.xlane.xlu0 %402
        %404 = vadd.xlane.f32.xlu0 %v398
        %v405 = vpop.xlane.xlu0 %404
        %406 = vadd.xlane.f32.xlu0 %v399
        %v407 = vpop.xlane.xlu0 %406
        %v408 = vrcp.pop 128.0
        %v409 = vmul.f32 %v401, %v408
        %v410 = vmul.f32 %v403, %v408
        %v411 = vmul.f32 %v405, %v408
        %v412 = vmul.f32 %v407, %v408
        %v413 = vsub.f32 %v396, %v409
        %v414 = vsub.f32 %v397, %v410
        %v415 = vsub.f32 %v398, %v411
        %v416 = vsub.f32 %v399, %v412
        %v417 = vmul.f32 %v413, %v413
        %v418 = vmul.f32 %v414, %v414
        %v419 = vmul.f32 %v415, %v415
        %v420 = vmul.f32 %v416, %v416
        %421 = vadd.xlane.f32.xlu0 %v417
        %v422 = vpop.xlane.xlu0 %421
        %423 = vadd.xlane.f32.xlu0 %v418
        %v424 = vpop.xlane.xlu0 %423
        %425 = vadd.xlane.f32.xlu0 %v419
        %v426 = vpop.xlane.xlu0 %425
        %427 = vadd.xlane.f32.xlu0 %v420
        %v428 = vpop.xlane.xlu0 %427
        %v429 = vmul.f32 %v422, %v408
        %v430 = vmul.f32 %v424, %v408
        %v431 = vmul.f32 %v426, %v408
        %v432 = vmul.f32 %v428, %v408
        %v433 = vadd.f32 %v429, 1e-05
        %v434 = vadd.f32 %v430, 1e-05
        %v435 = vadd.f32 %v431, 1e-05
        %v436 = vadd.f32 %v432, 1e-05
        %v437 = vrsqrt.pop %v433
        %v438 = vrsqrt.pop %v434
        %v439 = vrsqrt.pop %v435
        %v440 = vrsqrt.pop %v436
        %v441 = vmul.f32 %v413, %v437
        %v442 = vmul.f32 %v414, %v438
        %v443 = vmul.f32 %v415, %v439
        %v444 = vmul.f32 %v416, %v440
        %v445 = vld [vmem:[%s1] sm:$0x1]
        %v447 = vlaneseq
        %v448 = vshrl.u32 %v447, 7
        %v449 = vsub.s32 0, %v448
        %v450 = vrot.slane %v445, %v449
        %v452 = vmul.f32 %v441, %v450
        %v453 = vmul.f32 %v442, %v450
        %v454 = vmul.f32 %v443, %v450
        %v455 = vmul.f32 %v444, %v450
        %v456 = vld [vmem:[%s2] sm:$0x1]
        %v458 = vlaneseq
        %v459 = vshrl.u32 %v458, 7
        %v460 = vsub.s32 0, %v459
        %v461 = vrot.slane %v456, %v460
        %v463 = vadd.f32 %v452, %v461
        %v464 = vadd.f32 %v453, %v461
        %v465 = vadd.f32 %v454, %v461
        %v466 = vadd.f32 %v455, %v461
        %v467 = vld [vmem:[#allocation2] sm:$0xff]
        %v468 = vld [vmem:[#allocation2 + $0x8] sm:$0xff]
        %v469 = vld [vmem:[#allocation2 + $0x10] sm:$0xff]
        %v470 = vld [vmem:[#allocation2 + $0x18] sm:$0xff]
        %v471 = vld [vmem:[#allocation2 + $0x20] sm:$0xff]
        %v472 = vld [vmem:[#allocation2 + $0x28] sm:$0xff]
        %v473 = vld [vmem:[#allocation2 + $0x30] sm:$0xff]
        %v474 = vld [vmem:[#allocation2 + $0x38] sm:$0xff]
        %v475 = vpack.c.bf16 %v464, %v463
        %v476 = vpack.c.bf16 %v466, %v465
        %v477 = vld [vmem:[%s329] sm:$0xff]
        %v478 = vld [vmem:[%s329 + $0x8] sm:$0xff]
        %v479 = vld [vmem:[%s329 + $0x10] sm:$0xff]
        %v480 = vld [vmem:[%s329 + $0x18] sm:$0xff]
        %v481 = vld [vmem:[%s329 + $0x20] sm:$0xff]
        %v482 = vld [vmem:[%s329 + $0x28] sm:$0xff]
        %v483 = vld [vmem:[%s329 + $0x30] sm:$0xff]
        %v484 = vld [vmem:[%s329 + $0x38] sm:$0xff]
        %v485 = vld [vmem:[%s329 + $0x40] sm:$0xff]
        %v486 = vld [vmem:[%s329 + $0x48] sm:$0xff]
        %v487 = vld [vmem:[%s329 + $0x50] sm:$0xff]
        %v488 = vld [vmem:[%s329 + $0x58] sm:$0xff]
        %v489 = vld [vmem:[%s329 + $0x60] sm:$0xff]
        %v490 = vld [vmem:[%s329 + $0x68] sm:$0xff]
        %v491 = vld [vmem:[%s329 + $0x70] sm:$0xff]
        %v492 = vld [vmem:[%s329 + $0x78] sm:$0xff]
        %v493 = vld [vmem:[%s329 + $0x80] sm:$0xff]
        %v494 = vld [vmem:[%s329 + $0x88] sm:$0xff]
        %v495 = vld [vmem:[%s329 + $0x90] sm:$0xff]
        %v496 = vld [vmem:[%s329 + $0x98] sm:$0xff]
        %v497 = vld [vmem:[%s329 + $0xa0] sm:$0xff]
        %v498 = vld [vmem:[%s329 + $0xa8] sm:$0xff]
        %v499 = vld [vmem:[%s329 + $0xb0] sm:$0xff]
        %v500 = vld [vmem:[%s329 + $0xb8] sm:$0xff]
        %v501 = vld [vmem:[%s329 + $0xc0] sm:$0xff]
        %v502 = vld [vmem:[%s329 + $0xc8] sm:$0xff]
        %v503 = vld [vmem:[%s329 + $0xd0] sm:$0xff]
        %v504 = vld [vmem:[%s329 + $0xd8] sm:$0xff]
        %v505 = vld [vmem:[%s329 + $0xe0] sm:$0xff]
        %v506 = vld [vmem:[%s329 + $0xe8] sm:$0xff]
        %v507 = vld [vmem:[%s329 + $0xf0] sm:$0xff]
        %v508 = vld [vmem:[%s329 + $0xf8] sm:$0xff]
        %v509 = vpack.c.bf16 %v479, %v477
        %v510 = vpack.c.bf16 %v480, %v478
        %v511 = vpack.c.bf16 %v483, %v481
        %v512 = vpack.c.bf16 %v484, %v482
        %v513 = vpack.c.bf16 %v487, %v485
        %v514 = vpack.c.bf16 %v488, %v486
        %v515 = vpack.c.bf16 %v491, %v489
        %v516 = vpack.c.bf16 %v492, %v490
        %v517 = vpack.c.bf16 %v495, %v493
        %v518 = vpack.c.bf16 %v496, %v494
        %v519 = vpack.c.bf16 %v499, %v497
        %v520 = vpack.c.bf16 %v500, %v498
        %v521 = vpack.c.bf16 %v503, %v501
        %v522 = vpack.c.bf16 %v504, %v502
        %v523 = vpack.c.bf16 %v507, %v505
        %v524 = vpack.c.bf16 %v508, %v506
        %525 = vmatprep.subr.bf16.mxu0 %v524
        %526 = vmatpush1.bf16.msra.mxu0 %v523
        %527 = vmatprep.subr.bf16.mxu0 %v522
        %528 = vmatpush1.bf16.msra.mxu0 %v521
        %529 = vmatprep.subr.bf16.mxu0 %v520
        %530 = vmatpush1.bf16.msra.mxu0 %v519
        %531 = vmatprep.subr.bf16.mxu0 %v518
        %532 = vmatpush1.bf16.msra.mxu0 %v517
        %533 = vmatprep.subr.bf16.mxu0 %v516
        %534 = vmatpush1.bf16.msra.mxu0 %v515
        %535 = vmatprep.subr.bf16.mxu0 %v514
        %536 = vmatpush1.bf16.msra.mxu0 %v513
        %537 = vmatprep.subr.bf16.mxu0 %v512
        %538 = vmatpush1.bf16.msra.mxu0 %v511
        %539 = vmatprep.subr.bf16.mxu0 %v510
        %540 = vmatpush1.bf16.msra.mxu0 %v509
        %541 = vmatprep.subr.bf16.mxu0 0
        %542 = vmatpush2.bf16.msra.mxu0 0
        %543 = vmatprep.subr.bf16.mxu0 0
        %544 = vmatpush2.bf16.msra.mxu0 0
        %545 = vmatprep.subr.bf16.mxu0 0
        %546 = vmatpush2.bf16.msra.mxu0 0
        %547 = vmatprep.subr.bf16.mxu0 0
        %548 = vmatpush2.bf16.msra.mxu0 0
        %549 = vmatprep.subr.bf16.mxu0 0
        %550 = vmatpush2.bf16.msra.mxu0 0
        %551 = vmatprep.subr.bf16.mxu0 0
        %552 = vmatpush2.bf16.msra.mxu0 0
        %553 = vmatprep.subr.bf16.mxu0 0
        %554 = vmatpush2.bf16.msra.mxu0 0
        %555 = vmatprep.subr.bf16.mxu0 0
        %556 = vmatpush2.bf16.msra.mxu0 0
        %557 = vmatprep.mubr.bf16.mxu0 0
        %558 = vmatmul.mubr.bf16.gmra.mxu0 %v475
        %v559 = vpop.f32.mrf.mxu0
        %v560 = vadd.f32 0.0, %v559
        %v561 = vpop.f32.mrf.mxu0
        %v562 = vadd.f32 0.0, %v561
        %v563 = vpop.f32.mrf.mxu0
        %v564 = vadd.f32 0.0, %v563
        %v565 = vpop.f32.mrf.mxu0
        %v566 = vadd.f32 0.0, %v565
        %567 = vmatprep.mubr.bf16.mxu0 0
        %568 = vmatmul.mubr.bf16.gmra.mxu0 %v476
        %v569 = vpop.f32.mrf.mxu0
        %v570 = vadd.f32 0.0, %v569
        %v571 = vpop.f32.mrf.mxu0
        %v572 = vadd.f32 0.0, %v571
        %v573 = vpop.f32.mrf.mxu0
        %v574 = vadd.f32 0.0, %v573
        %v575 = vpop.f32.mrf.mxu0
        %v576 = vadd.f32 0.0, %v575
        %577 = vdwg.mxu0
        %v578 = vadd.f32 %v467, %v560
        %v579 = vadd.f32 %v468, %v562
        %v580 = vadd.f32 %v469, %v564
        %v581 = vadd.f32 %v470, %v566
        %v582 = vadd.f32 %v471, %v570
        %v583 = vadd.f32 %v472, %v572
        %v584 = vadd.f32 %v473, %v574
        %v585 = vadd.f32 %v474, %v576
        %586 = vst [vmem:[#allocation2] sm:$0xff] %v578
        %587 = vst [vmem:[#allocation2 + $0x8] sm:$0xff] %v579
        %588 = vst [vmem:[#allocation2 + $0x10] sm:$0xff] %v580
        %589 = vst [vmem:[#allocation2 + $0x18] sm:$0xff] %v581
        %590 = vst [vmem:[#allocation2 + $0x20] sm:$0xff] %v582
        %591 = vst [vmem:[#allocation2 + $0x28] sm:$0xff] %v583
        %592 = vst [vmem:[#allocation2 + $0x30] sm:$0xff] %v584
        %593 = vst [vmem:[#allocation2 + $0x38] sm:$0xff] %v585
        // Predicated region
        $region68: #{gpt_forward.18} parent=58 // pred_check
          %p594 = pneg %p384
        $region69: #{gpt_forward.18} parent=58 // pred_check_branch
          %596 = sbr.rel (%p594) target = $region71
        $region70: #{gpt_forward.18} parent=58 // pred_region
          %v597 = vld [vmem:[#allocation2] sm:$0xff]
          %v598 = vld [vmem:[#allocation2 + $0x8] sm:$0xff]
          %v599 = vld [vmem:[#allocation2 + $0x10] sm:$0xff]
          %v600 = vld [vmem:[#allocation2 + $0x18] sm:$0xff]
          %v601 = vld [vmem:[#allocation2 + $0x20] sm:$0xff]
          %v602 = vld [vmem:[#allocation2 + $0x28] sm:$0xff]
          %v603 = vld [vmem:[#allocation2 + $0x30] sm:$0xff]
          %v604 = vld [vmem:[#allocation2 + $0x38] sm:$0xff]
          %v605 = vld [vmem:[%s379] sm:$0x3]
          %v607 = vlaneseq
          %v608 = vshrl.u32 %v607, 7
          %v609 = vsub.s32 0, %v608
          %v610 = vrot.slane %v605, %v609
          %v611 = vlaneseq
          %v612 = vshrl.u32 %v611, 7
          %v613 = vsub.s32 1, %v612
          %v614 = vrot.slane %v605, %v613
          %v617 = vadd.f32 %v597, %v610
          %v618 = vadd.f32 %v598, %v614
          %v619 = vadd.f32 %v599, %v610
          %v620 = vadd.f32 %v600, %v614
          %v621 = vadd.f32 %v601, %v610
          %v622 = vadd.f32 %v602, %v614
          %v623 = vadd.f32 %v603, %v610
          %v624 = vadd.f32 %v604, %v614
          %v625 = vmul.f32 %v617, 0.5
          %v626 = vmul.f32 %v618, 0.5
          %v627 = vmul.f32 %v619, 0.5
          %v628 = vmul.f32 %v620, 0.5
          %v629 = vmul.f32 %v621, 0.5
          %v630 = vmul.f32 %v622, 0.5
          %v631 = vmul.f32 %v623, 0.5
          %v632 = vmul.f32 %v624, 0.5
          %v633 = vmul.f32 %v617, 0.70710677
          %v634 = vmul.f32 %v618, 0.70710677
          %v635 = vmul.f32 %v619, 0.70710677
          %v636 = vmul.f32 %v620, 0.70710677
          %v637 = vmul.f32 %v621, 0.70710677
          %v638 = vmul.f32 %v622, 0.70710677
          %v639 = vmul.f32 %v623, 0.70710677
          %v640 = vmul.f32 %v624, 0.70710677
          %vm641 = vcmp.lt.f32.partialorder %v633, 0.0
          %vm642 = vcmp.lt.f32.partialorder %v634, 0.0
          %vm643 = vcmp.lt.f32.partialorder %v635, 0.0
          %vm644 = vcmp.lt.f32.partialorder %v636, 0.0
          %vm645 = vcmp.lt.f32.partialorder %v637, 0.0
          %vm646 = vcmp.lt.f32.partialorder %v638, 0.0
          %vm647 = vcmp.lt.f32.partialorder %v639, 0.0
          %vm648 = vcmp.lt.f32.partialorder %v640, 0.0
          %v649 = vsel %vm641, -1.0, 1.0
          %v650 = vsel %vm642, -1.0, 1.0
          %v651 = vsel %vm643, -1.0, 1.0
          %v652 = vsel %vm644, -1.0, 1.0
          %v653 = vsel %vm645, -1.0, 1.0
          %v654 = vsel %vm646, -1.0, 1.0
          %v655 = vsel %vm647, -1.0, 1.0
          %v656 = vsel %vm648, -1.0, 1.0
          %v657 = vand.u32 2147483647, %v633
          %v658 = vand.u32 2147483647, %v634
          %v659 = vand.u32 2147483647, %v635
          %v660 = vand.u32 2147483647, %v636
          %v661 = vand.u32 2147483647, %v637
          %v662 = vand.u32 2147483647, %v638
          %v663 = vand.u32 2147483647, %v639
          %v664 = vand.u32 2147483647, %v640
          %v665 = vmul.f32 %v657, 0.3275911
          %v666 = vmul.f32 %v658, 0.3275911
          %v667 = vmul.f32 %v659, 0.3275911
          %v668 = vmul.f32 %v660, 0.3275911
          %v669 = vmul.f32 %v661, 0.3275911
          %v670 = vmul.f32 %v662, 0.3275911
          %v671 = vmul.f32 %v663, 0.3275911
          %v672 = vmul.f32 %v664, 0.3275911
          %v673 = vadd.f32 %v665, 1.0
          %v674 = vadd.f32 %v666, 1.0
          %v675 = vadd.f32 %v667, 1.0
          %v676 = vadd.f32 %v668, 1.0
          %v677 = vadd.f32 %v669, 1.0
          %v678 = vadd.f32 %v670, 1.0
          %v679 = vadd.f32 %v671, 1.0
          %v680 = vadd.f32 %v672, 1.0
          %v681 = vrcp.pop %v673
          %v682 = vmul.f32 1.0, %v681
          %v683 = vrcp.pop %v674
          %v684 = vmul.f32 1.0, %v683
          %v685 = vrcp.pop %v675
          %v686 = vmul.f32 1.0, %v685
          %v687 = vrcp.pop %v676
          %v688 = vmul.f32 1.0, %v687
          %v689 = vrcp.pop %v677
          %v690 = vmul.f32 1.0, %v689
          %v691 = vrcp.pop %v678
          %v692 = vmul.f32 1.0, %v691
          %v693 = vrcp.pop %v679
          %v694 = vmul.f32 1.0, %v693
          %v695 = vrcp.pop %v680
          %v696 = vmul.f32 1.0, %v695
          %v697 = vmul.f32 %v682, 1.0614054
          %v698 = vmul.f32 %v684, 1.0614054
          %v699 = vmul.f32 %v686, 1.0614054
          %v700 = vmul.f32 %v688, 1.0614054
          %v701 = vmul.f32 %v690, 1.0614054
          %v702 = vmul.f32 %v692, 1.0614054
          %v703 = vmul.f32 %v694, 1.0614054
          %v704 = vmul.f32 %v696, 1.0614054
          %v705 = vadd.f32 %v697, -1.4531521
          %v706 = vadd.f32 %v698, -1.4531521
          %v707 = vadd.f32 %v699, -1.4531521
          %v708 = vadd.f32 %v700, -1.4531521
          %v709 = vadd.f32 %v701, -1.4531521
          %v710 = vadd.f32 %v702, -1.4531521
          %v711 = vadd.f32 %v703, -1.4531521
          %v712 = vadd.f32 %v704, -1.4531521
          %v713 = vmul.f32 %v705, %v682
          %v714 = vmul.f32 %v706, %v684
          %v715 = vmul.f32 %v707, %v686
          %v716 = vmul.f32 %v708, %v688
          %v717 = vmul.f32 %v709, %v690
          %v718 = vmul.f32 %v710, %v692
          %v719 = vmul.f32 %v711, %v694
          %v720 = vmul.f32 %v712, %v696
          %v721 = vadd.f32 %v713, 1.4214138
          %v722 = vadd.f32 %v714, 1.4214138
          %v723 = vadd.f32 %v715, 1.4214138
          %v724 = vadd.f32 %v716, 1.4214138
          %v725 = vadd.f32 %v717, 1.4214138
          %v726 = vadd.f32 %v718, 1.4214138
          %v727 = vadd.f32 %v719, 1.4214138
          %v728 = vadd.f32 %v720, 1.4214138
          %v729 = vmul.f32 %v721, %v682
          %v730 = vmul.f32 %v722, %v684
          %v731 = vmul.f32 %v723, %v686
          %v732 = vmul.f32 %v724, %v688
          %v733 = vmul.f32 %v725, %v690
          %v734 = vmul.f32 %v726, %v692
          %v735 = vmul.f32 %v727, %v694
          %v736 = vmul.f32 %v728, %v696
          %v737 = vadd.f32 %v729, -0.28449672
          %v738 = vadd.f32 %v730, -0.28449672
          %v739 = vadd.f32 %v731, -0.28449672
          %v740 = vadd.f32 %v732, -0.28449672
          %v741 = vadd.f32 %v733, -0.28449672
          %v742 = vadd.f32 %v734, -0.28449672
          %v743 = vadd.f32 %v735, -0.28449672
          %v744 = vadd.f32 %v736, -0.28449672
          %v745 = vmul.f32 %v737, %v682
          %v746 = vmul.f32 %v738, %v684
          %v747 = vmul.f32 %v739, %v686
          %v748 = vmul.f32 %v740, %v688
          %v749 = vmul.f32 %v741, %v690
          %v750 = vmul.f32 %v742, %v692
          %v751 = vmul.f32 %v743, %v694
          %v752 = vmul.f32 %v744, %v696
          %v753 = vadd.f32 %v745, 0.2548296
          %v754 = vadd.f32 %v746, 0.2548296
          %v755 = vadd.f32 %v747, 0.2548296
          %v756 = vadd.f32 %v748, 0.2548296
          %v757 = vadd.f32 %v749, 0.2548296
          %v758 = vadd.f32 %v750, 0.2548296
          %v759 = vadd.f32 %v751, 0.2548296
          %v760 = vadd.f32 %v752, 0.2548296
          %v761 = vmul.f32 %v753, %v682
          %v762 = vmul.f32 %v754, %v684
          %v763 = vmul.f32 %v755, %v686
          %v764 = vmul.f32 %v756, %v688
          %v765 = vmul.f32 %v757, %v690
          %v766 = vmul.f32 %v758, %v692
          %v767 = vmul.f32 %v759, %v694
          %v768 = vmul.f32 %v760, %v696
          %v769 = vmul.f32 %v657, %v657
          %v770 = vmul.f32 %v658, %v658
          %v771 = vmul.f32 %v659, %v659
          %v772 = vmul.f32 %v660, %v660
          %v773 = vmul.f32 %v661, %v661
          %v774 = vmul.f32 %v662, %v662
          %v775 = vmul.f32 %v663, %v663
          %v776 = vmul.f32 %v664, %v664
          %v777 = vsub.f32 0.0, %v769
          %v778 = vsub.f32 0.0, %v770
          %v779 = vsub.f32 0.0, %v771
          %v780 = vsub.f32 0.0, %v772
          %v781 = vsub.f32 0.0, %v773
          %v782 = vsub.f32 0.0, %v774
          %v783 = vsub.f32 0.0, %v775
          %v784 = vsub.f32 0.0, %v776
          %v785 = vmul.f32 %v777, 1.442695
          %v786 = vpow.pop %v785
          %v787 = vmul.f32 %v778, 1.442695
          %v788 = vpow.pop %v787
          %v789 = vmul.f32 %v779, 1.442695
          %v790 = vpow.pop %v789
          %v791 = vmul.f32 %v780, 1.442695
          %v792 = vpow.pop %v791
          %v793 = vmul.f32 %v781, 1.442695
          %v794 = vpow.pop %v793
          %v795 = vmul.f32 %v782, 1.442695
          %v796 = vpow.pop %v795
          %v797 = vmul.f32 %v783, 1.442695
          %v798 = vpow.pop %v797
          %v799 = vmul.f32 %v784, 1.442695
          %v800 = vpow.pop %v799
          %v801 = vmul.f32 %v761, %v786
          %v802 = vmul.f32 %v762, %v788
          %v803 = vmul.f32 %v763, %v790
          %v804 = vmul.f32 %v764, %v792
          %v805 = vmul.f32 %v765, %v794
          %v806 = vmul.f32 %v766, %v796
          %v807 = vmul.f32 %v767, %v798
          %v808 = vmul.f32 %v768, %v800
          %v809 = vsub.f32 1.0, %v801
          %v810 = vsub.f32 1.0, %v802
          %v811 = vsub.f32 1.0, %v803
          %v812 = vsub.f32 1.0, %v804
          %v813 = vsub.f32 1.0, %v805
          %v814 = vsub.f32 1.0, %v806
          %v815 = vsub.f32 1.0, %v807
          %v816 = vsub.f32 1.0, %v808
          %v817 = vmul.f32 %v649, %v809
          %v818 = vmul.f32 %v650, %v810
          %v819 = vmul.f32 %v651, %v811
          %v820 = vmul.f32 %v652, %v812
          %v821 = vmul.f32 %v653, %v813
          %v822 = vmul.f32 %v654, %v814
          %v823 = vmul.f32 %v655, %v815
          %v824 = vmul.f32 %v656, %v816
          %v825 = vadd.f32 %v817, 1.0
          %v826 = vadd.f32 %v818, 1.0
          %v827 = vadd.f32 %v819, 1.0
          %v828 = vadd.f32 %v820, 1.0
          %v829 = vadd.f32 %v821, 1.0
          %v830 = vadd.f32 %v822, 1.0
          %v831 = vadd.f32 %v823, 1.0
          %v832 = vadd.f32 %v824, 1.0
          %v833 = vmul.f32 %v625, %v825
          %v834 = vmul.f32 %v626, %v826
          %v835 = vmul.f32 %v627, %v827
          %v836 = vmul.f32 %v628, %v828
          %v837 = vmul.f32 %v629, %v829
          %v838 = vmul.f32 %v630, %v830
          %v839 = vmul.f32 %v631, %v831
          %v840 = vmul.f32 %v632, %v832
          %841 = vst [vmem:[%s364] sm:$0xff] %v833
          %842 = vst [vmem:[%s364 + $0x8] sm:$0xff] %v834
          %843 = vst [vmem:[%s364 + $0x10] sm:$0xff] %v835
          %844 = vst [vmem:[%s364 + $0x18] sm:$0xff] %v836
          %845 = vst [vmem:[%s364 + $0x20] sm:$0xff] %v837
          %846 = vst [vmem:[%s364 + $0x28] sm:$0xff] %v838
          %847 = vst [vmem:[%s364 + $0x30] sm:$0xff] %v839
          %848 = vst [vmem:[%s364 + $0x38] sm:$0xff] %v840
        $region71: #{gpt_forward.18} parent=58 // pred_fallthru
          _
        %s849 = sand.u32 %s169, 1
        %s850 = sand.u32 %s169, 1
        %s851 = smul.addr %s850, 64
        %s852 = scalar_lea.vmem [#allocation4], %s851
        // Predicated region
        $region72: #{gpt_forward.18} parent=58 // pred_check
          %p853 = pneg %p179
        $region73: #{gpt_forward.18} parent=58 // pred_check_branch
          %855 = sbr.rel (%p853) target = $region75
        $region74: #{gpt_forward.18} parent=58 // pred_region
          %s856 = smul.u32 4, %s21
          %s857 = smul.u32 2, %s22
          %s858 = smul.addr %s856, 4
          %s859 = sadd.s32 %s857, %s858
          %s860 = smul.addr %s859, 8
          %s861 = scalar_lea.vmem %s5, %s860
          // Predicated region
          $region76: #{gpt_forward.18} parent=74 // pred_check
            _
          $region77: #{gpt_forward.18} parent=74 // pred_check_branch
            %863 = sbr.rel (0) target = $region79
          $region78: #{gpt_forward.18} parent=74 // pred_region
            // Predicated region
            $region80: #{gpt_forward.18} parent=78 // pred_check
              _
            $region81: #{gpt_forward.18} parent=78 // pred_check_branch
              %865 = sbr.rel (0) target = $region83
            $region82: #{gpt_forward.18} parent=78 // pred_region
              loop: start=0, step=1, limit=1
              $region84: #{gpt_forward.18} parent=82 // loop_pre_header
                _
              $region85: #{gpt_forward.18} parent=82 // loop_header
                %s867 = sphi 0, %s871
                %p868 = scmp.ge.s32.totalorder %s867, 1
                %s872 = sphi %s852, %s852
                %s873 = sphi %s861, %s861
              $region86: #{gpt_forward.18} parent=82 // loop_header_branch
                %870 = sbr.rel (%p868) target = $region90
              $region87: #{gpt_forward.18} parent=82 // loop_body
                %v874 = vld [vmem:[%s872] sm:$0xff]
                %875 = vst [vmem:[%s873] sm:$0xff] %v874
                %v876 = vld [vmem:[%s872 + $0x8] sm:$0xff]
                %877 = vst [vmem:[%s873 + $0x8] sm:$0xff] %v876
                %v878 = vld [vmem:[%s872 + $0x10] sm:$0xff]
                %879 = vst [vmem:[%s873 + $0x20] sm:$0xff] %v878
                %v880 = vld [vmem:[%s872 + $0x18] sm:$0xff]
                %881 = vst [vmem:[%s873 + $0x28] sm:$0xff] %v880
                %v882 = vld [vmem:[%s872 + $0x20] sm:$0xff]
                %883 = vst [vmem:[%s873 + $0x40] sm:$0xff] %v882
                %v884 = vld [vmem:[%s872 + $0x28] sm:$0xff]
                %885 = vst [vmem:[%s873 + $0x48] sm:$0xff] %v884
                %v886 = vld [vmem:[%s872 + $0x30] sm:$0xff]
                %887 = vst [vmem:[%s873 + $0x60] sm:$0xff] %v886
                %v888 = vld [vmem:[%s872 + $0x38] sm:$0xff]
                %889 = vst [vmem:[%s873 + $0x68] sm:$0xff] %v888
              $region88: #{gpt_forward.18} parent=82 // loop_footer
                %s871 = sadd.s32 1, %s867
              $region89: #{gpt_forward.18} parent=82 // loop_footer_branch
                %866 = sbr.rel target = $region85
              $region90: #{gpt_forward.18} parent=82 // loop_exit
                _
            $region83: #{gpt_forward.18} parent=78 // pred_fallthru
              _
            // Predicated region
            $region91: #{gpt_forward.18} parent=78 // pred_check
              _
            $region92: #{gpt_forward.18} parent=78 // pred_check_branch
              %891 = sbr.rel target = $region94
            $region93: #{gpt_forward.18} parent=78 // pred_region
              _
            $region94: #{gpt_forward.18} parent=78 // pred_fallthru
              _
          $region79: #{gpt_forward.18} parent=74 // pred_fallthru
            _
          %892 = vnop
        $region75: #{gpt_forward.18} parent=58 // pred_fallthru
          _
      $region59: #{gpt_forward.18} parent=5 // pred_fallthru
        _
      %p893 = scmp.le.s32.totalorder 2, %s11
      // Predicated region
      $region95: #{gpt_forward.18} parent=5 // pred_check
        %p894 = pneg %p893
      $region96: #{gpt_forward.18} parent=5 // pred_check_branch
        %896 = sbr.rel (%p894) target = $region98
      $region97: #{gpt_forward.18} parent=5 // pred_region
        %s897 = ssub.s32 %s11, 2
        // Predicated region
        $region99: #{gpt_forward.18} parent=97 // pred_check
          %p898 = pneg %p185
        $region100: #{gpt_forward.18} parent=97 // pred_check_branch
          %900 = sbr.rel (%p898) target = $region102
        $region101: #{gpt_forward.18} parent=97 // pred_region
          %s901 = sand.u32 %s170, 1
          %s902 = sand.u32 %s170, 1
          %s903 = smul.addr %s902, 64
          %s904 = scalar_lea.vmem [#allocation4], %s903
        $region102: #{gpt_forward.18} parent=97 // pred_fallthru
          _
      $region98: #{gpt_forward.18} parent=5 // pred_fallthru
        _
    $region6: #{gpt_forward.18} parent=1 // loop_footer
      %s15 = sadd.s32 1, %s11
    $region7: #{gpt_forward.18} parent=1 // loop_footer_branch
      %10 = sbr.rel target = $region3
    $region8: #{gpt_forward.18} parent=1 // loop_exit
      _

// kernel: gpt_forward.19
$region0: #{gpt_forward.19}
  #allocation0 [shape = 'u32[]', space=smem, size = 0x4, offset = 0x4, fixed_abs, tag = 'smem constant byte address 0x4 - core index']
  #allocation1 [shape = 'u32[144,128]{1,0:T(1,128)}', space=vmem, size = 0x12000, scoped, tag = 'internal scratch']
  #allocation2 [shape = 'f32[32,128]{1,0:T(8,128)}', space=vmem, size = 0x4000, scoped, tag = 'scratch operand']
  %s0 = inlined_call_operand.vmem [shape: f32[32,512], index: 0, kind: input, shape index: {}]
  %s1 = inlined_call_operand.vmem [shape: f32[512,128], index: 1, kind: input, shape index: {}]
  %s2 = inlined_call_operand.vmem [shape: f32[1,128], index: 2, kind: input, shape index: {}]
  %s3 = inlined_call_operand.vmem [shape: f32[32,128], index: 3, kind: output, shape index: {}]
  %s4 = sld [smem:[#allocation0]]
  $region30: #{gpt_forward.19} parent=0
    _
  %s6 = ssub.s32 1, %s4
  %s7 = scalar_select 0, %s6, %s4
  // Predicated region
  $region2: #{gpt_forward.19} parent=0 // pred_check
    _
  $region3: #{gpt_forward.19} parent=0 // pred_check_branch
    %9 = sbr.rel (0) target = $region5
  $region4: #{gpt_forward.19} parent=0 // pred_region
    _
  $region5: #{gpt_forward.19} parent=0 // pred_fallthru
    _
  // Predicated region
  $region6: #{gpt_forward.19} parent=0 // pred_check
    _
  $region7: #{gpt_forward.19} parent=0 // pred_check_branch
    %11 = sbr.rel (0) target = $region9
  $region8: #{gpt_forward.19} parent=0 // pred_region
    _
  $region9: #{gpt_forward.19} parent=0 // pred_fallthru
    _
  // Predicated region
  $region10: #{gpt_forward.19} parent=0 // pred_check
    _
  $region11: #{gpt_forward.19} parent=0 // pred_check_branch
    %13 = sbr.rel (0) target = $region13
  $region12: #{gpt_forward.19} parent=0 // pred_region
    _
  $region13: #{gpt_forward.19} parent=0 // pred_fallthru
    _
  %p15 = scmp.eq.s32.totalorder 0, 0
  // Predicated region
  $region14: #{gpt_forward.19} parent=0 // pred_check
    %p16 = pneg %p15
  $region15: #{gpt_forward.19} parent=0 // pred_check_branch
    %18 = sbr.rel (%p16) target = $region17
  $region16: #{gpt_forward.19} parent=0 // pred_region
    %19 = vst [vmem:[#allocation2] sm:$0xff] 0.0
    %20 = vst [vmem:[#allocation2 + $0x8] sm:$0xff] 0.0
    %21 = vst [vmem:[#allocation2 + $0x10] sm:$0xff] 0.0
    %22 = vst [vmem:[#allocation2 + $0x18] sm:$0xff] 0.0
  $region17: #{gpt_forward.19} parent=0 // pred_fallthru
    _
  %v23 = vld [vmem:[%s0] sm:$0xff]
  %v24 = vld [vmem:[%s0 + $0x8] sm:$0xff]
  %v25 = vld [vmem:[%s0 + $0x10] sm:$0xff]
  %v26 = vld [vmem:[%s0 + $0x18] sm:$0xff]
  %v27 = vld [vmem:[%s0 + $0x20] sm:$0xff]
  %v28 = vld [vmem:[%s0 + $0x28] sm:$0xff]
  %v29 = vld [vmem:[%s0 + $0x30] sm:$0xff]
  %v30 = vld [vmem:[%s0 + $0x38] sm:$0xff]
  %v31 = vld [vmem:[%s0 + $0x40] sm:$0xff]
  %v32 = vld [vmem:[%s0 + $0x48] sm:$0xff]
  %v33 = vld [vmem:[%s0 + $0x50] sm:$0xff]
  %v34 = vld [vmem:[%s0 + $0x58] sm:$0xff]
  %v35 = vld [vmem:[%s0 + $0x60] sm:$0xff]
  %v36 = vld [vmem:[%s0 + $0x68] sm:$0xff]
  %v37 = vld [vmem:[%s0 + $0x70] sm:$0xff]
  %v38 = vld [vmem:[%s0 + $0x78] sm:$0xff]
  %v39 = vld [vmem:[#allocation2] sm:$0xff]
  %v40 = vld [vmem:[#allocation2 + $0x8] sm:$0xff]
  %v41 = vld [vmem:[#allocation2 + $0x10] sm:$0xff]
  %v42 = vld [vmem:[#allocation2 + $0x18] sm:$0xff]
  %v43 = vpack.c.bf16 %v27, %v23
  %v44 = vpack.c.bf16 %v28, %v24
  %v45 = vpack.c.bf16 %v29, %v25
  %v46 = vpack.c.bf16 %v30, %v26
  %v47 = vpack.c.bf16 %v35, %v31
  %v48 = vpack.c.bf16 %v36, %v32
  %v49 = vpack.c.bf16 %v37, %v33
  %v50 = vpack.c.bf16 %v38, %v34
  %v51 = vld [vmem:[%s1] sm:$0xff]
  %v52 = vld [vmem:[%s1 + $0x8] sm:$0xff]
  %v53 = vld [vmem:[%s1 + $0x10] sm:$0xff]
  %v54 = vld [vmem:[%s1 + $0x18] sm:$0xff]
  %v55 = vld [vmem:[%s1 + $0x20] sm:$0xff]
  %v56 = vld [vmem:[%s1 + $0x28] sm:$0xff]
  %v57 = vld [vmem:[%s1 + $0x30] sm:$0xff]
  %v58 = vld [vmem:[%s1 + $0x38] sm:$0xff]
  %v59 = vld [vmem:[%s1 + $0x40] sm:$0xff]
  %v60 = vld [vmem:[%s1 + $0x48] sm:$0xff]
  %v61 = vld [vmem:[%s1 + $0x50] sm:$0xff]
  %v62 = vld [vmem:[%s1 + $0x58] sm:$0xff]
  %v63 = vld [vmem:[%s1 + $0x60] sm:$0xff]
  %v64 = vld [vmem:[%s1 + $0x68] sm:$0xff]
  %v65 = vld [vmem:[%s1 + $0x70] sm:$0xff]
  %v66 = vld [vmem:[%s1 + $0x78] sm:$0xff]
  %v67 = vld [vmem:[%s1 + $0x80] sm:$0xff]
  %v68 = vld [vmem:[%s1 + $0x88] sm:$0xff]
  %v69 = vld [vmem:[%s1 + $0x90] sm:$0xff]
  %v70 = vld [vmem:[%s1 + $0x98] sm:$0xff]
  %v71 = vld [vmem:[%s1 + $0xa0] sm:$0xff]
  %v72 = vld [vmem:[%s1 + $0xa8] sm:$0xff]
  %v73 = vld [vmem:[%s1 + $0xb0] sm:$0xff]
  %v74 = vld [vmem:[%s1 + $0xb8] sm:$0xff]
  %v75 = vld [vmem:[%s1 + $0xc0] sm:$0xff]
  %v76 = vld [vmem:[%s1 + $0xc8] sm:$0xff]
  %v77 = vld [vmem:[%s1 + $0xd0] sm:$0xff]
  %v78 = vld [vmem:[%s1 + $0xd8] sm:$0xff]
  %v79 = vld [vmem:[%s1 + $0xe0] sm:$0xff]
  %v80 = vld [vmem:[%s1 + $0xe8] sm:$0xff]
  %v81 = vld [vmem:[%s1 + $0xf0] sm:$0xff]
  %v82 = vld [vmem:[%s1 + $0xf8] sm:$0xff]
  %v83 = vld [vmem:[%s1 + $0x100] sm:$0xff]
  %v84 = vld [vmem:[%s1 + $0x108] sm:$0xff]
  %v85 = vld [vmem:[%s1 + $0x110] sm:$0xff]
  %v86 = vld [vmem:[%s1 + $0x118] sm:$0xff]
  %v87 = vld [vmem:[%s1 + $0x120] sm:$0xff]
  %v88 = vld [vmem:[%s1 + $0x128] sm:$0xff]
  %v89 = vld [vmem:[%s1 + $0x130] sm:$0xff]
  %v90 = vld [vmem:[%s1 + $0x138] sm:$0xff]
  %v91 = vld [vmem:[%s1 + $0x140] sm:$0xff]
  %v92 = vld [vmem:[%s1 + $0x148] sm:$0xff]
  %v93 = vld [vmem:[%s1 + $0x150] sm:$0xff]
  %v94 = vld [vmem:[%s1 + $0x158] sm:$0xff]
  %v95 = vld [vmem:[%s1 + $0x160] sm:$0xff]
  %v96 = vld [vmem:[%s1 + $0x168] sm:$0xff]
  %v97 = vld [vmem:[%s1 + $0x170] sm:$0xff]
  %v98 = vld [vmem:[%s1 + $0x178] sm:$0xff]
  %v99 = vld [vmem:[%s1 + $0x180] sm:$0xff]
  %v100 = vld [vmem:[%s1 + $0x188] sm:$0xff]
  %v101 = vld [vmem:[%s1 + $0x190] sm:$0xff]
  %v102 = vld [vmem:[%s1 + $0x198] sm:$0xff]
  %v103 = vld [vmem:[%s1 + $0x1a0] sm:$0xff]
  %v104 = vld [vmem:[%s1 + $0x1a8] sm:$0xff]
  %v105 = vld [vmem:[%s1 + $0x1b0] sm:$0xff]
  %v106 = vld [vmem:[%s1 + $0x1b8] sm:$0xff]
  %v107 = vld [vmem:[%s1 + $0x1c0] sm:$0xff]
  %v108 = vld [vmem:[%s1 + $0x1c8] sm:$0xff]
  %v109 = vld [vmem:[%s1 + $0x1d0] sm:$0xff]
  %v110 = vld [vmem:[%s1 + $0x1d8] sm:$0xff]
  %v111 = vld [vmem:[%s1 + $0x1e0] sm:$0xff]
  %v112 = vld [vmem:[%s1 + $0x1e8] sm:$0xff]
  %v113 = vld [vmem:[%s1 + $0x1f0] sm:$0xff]
  %v114 = vld [vmem:[%s1 + $0x1f8] sm:$0xff]
  %v115 = vpack.c.bf16 %v52, %v51
  %v116 = vpack.c.bf16 %v54, %v53
  %v117 = vpack.c.bf16 %v56, %v55
  %v118 = vpack.c.bf16 %v58, %v57
  %v119 = vpack.c.bf16 %v60, %v59
  %v120 = vpack.c.bf16 %v62, %v61
  %v121 = vpack.c.bf16 %v64, %v63
  %v122 = vpack.c.bf16 %v66, %v65
  %v123 = vpack.c.bf16 %v68, %v67
  %v124 = vpack.c.bf16 %v70, %v69
  %v125 = vpack.c.bf16 %v72, %v71
  %v126 = vpack.c.bf16 %v74, %v73
  %v127 = vpack.c.bf16 %v76, %v75
  %v128 = vpack.c.bf16 %v78, %v77
  %v129 = vpack.c.bf16 %v80, %v79
  %v130 = vpack.c.bf16 %v82, %v81
  %v131 = vpack.c.bf16 %v84, %v83
  %v132 = vpack.c.bf16 %v86, %v85
  %v133 = vpack.c.bf16 %v88, %v87
  %v134 = vpack.c.bf16 %v90, %v89
  %v135 = vpack.c.bf16 %v92, %v91
  %v136 = vpack.c.bf16 %v94, %v93
  %v137 = vpack.c.bf16 %v96, %v95
  %v138 = vpack.c.bf16 %v98, %v97
  %v139 = vpack.c.bf16 %v100, %v99
  %v140 = vpack.c.bf16 %v102, %v101
  %v141 = vpack.c.bf16 %v104, %v103
  %v142 = vpack.c.bf16 %v106, %v105
  %v143 = vpack.c.bf16 %v108, %v107
  %v144 = vpack.c.bf16 %v110, %v109
  %v145 = vpack.c.bf16 %v112, %v111
  %v146 = vpack.c.bf16 %v114, %v113
  %147 = vmatprep.subr.bf16.mxu0 0
  %148 = vmatpush1.bf16.msra.mxu0 %v122
  %149 = vmatprep.subr.bf16.mxu0 0
  %150 = vmatpush1.bf16.msra.mxu0 %v121
  %151 = vmatprep.subr.bf16.mxu0 0
  %152 = vmatpush1.bf16.msra.mxu0 %v120
  %153 = vmatprep.subr.bf16.mxu0 0
  %154 = vmatpush1.bf16.msra.mxu0 %v119
  %155 = vmatprep.subr.bf16.mxu0 0
  %156 = vmatpush1.bf16.msra.mxu0 %v118
  %157 = vmatprep.subr.bf16.mxu0 0
  %158 = vmatpush1.bf16.msra.mxu0 %v117
  %159 = vmatprep.subr.bf16.mxu0 0
  %160 = vmatpush1.bf16.msra.mxu0 %v116
  %161 = vmatprep.subr.bf16.mxu0 0
  %162 = vmatpush1.bf16.msra.mxu0 %v115
  %163 = vmatprep.subr.bf16.mxu0 0
  %164 = vmatpush2.bf16.msra.mxu0 %v130
  %165 = vmatprep.subr.bf16.mxu0 0
  %166 = vmatpush2.bf16.msra.mxu0 %v129
  %167 = vmatprep.subr.bf16.mxu0 0
  %168 = vmatpush2.bf16.msra.mxu0 %v128
  %169 = vmatprep.subr.bf16.mxu0 0
  %170 = vmatpush2.bf16.msra.mxu0 %v127
  %171 = vmatprep.subr.bf16.mxu0 0
  %172 = vmatpush2.bf16.msra.mxu0 %v126
  %173 = vmatprep.subr.bf16.mxu0 0
  %174 = vmatpush2.bf16.msra.mxu0 %v125
  %175 = vmatprep.subr.bf16.mxu0 0
  %176 = vmatpush2.bf16.msra.mxu0 %v124
  %177 = vmatprep.subr.bf16.mxu0 0
  %178 = vmatpush2.bf16.msra.mxu0 %v123
  %179 = vmatprep.mubr.bf16.mxu0 %v44
  %180 = vmatmul.mubr.bf16.gmra.mxu0 %v43
  %v181 = vpop.f32.mrf.mxu0
  %v182 = vadd.f32 0.0, %v181
  %v183 = vpop.f32.mrf.mxu0
  %v184 = vpop.f32.mrf.mxu0
  %v185 = vadd.f32 0.0, %v184
  %v186 = vpop.f32.mrf.mxu0
  %187 = vmatprep.mubr.bf16.mxu0 %v48
  %188 = vmatmul.mubr.bf16.gmra.mxu0 %v47
  %v189 = vpop.f32.mrf.mxu0
  %v190 = vadd.f32 0.0, %v189
  %v191 = vpop.f32.mrf.mxu0
  %v192 = vpop.f32.mrf.mxu0
  %v193 = vadd.f32 0.0, %v192
  %v194 = vpop.f32.mrf.mxu0
  %195 = vdwg.mxu0
  %196 = vmatprep.subr.bf16.mxu0 0
  %197 = vmatpush1.bf16.msra.mxu0 %v138
  %198 = vmatprep.subr.bf16.mxu0 0
  %199 = vmatpush1.bf16.msra.mxu0 %v137
  %200 = vmatprep.subr.bf16.mxu0 0
  %201 = vmatpush1.bf16.msra.mxu0 %v136
  %202 = vmatprep.subr.bf16.mxu0 0
  %203 = vmatpush1.bf16.msra.mxu0 %v135
  %204 = vmatprep.subr.bf16.mxu0 0
  %205 = vmatpush1.bf16.msra.mxu0 %v134
  %206 = vmatprep.subr.bf16.mxu0 0
  %207 = vmatpush1.bf16.msra.mxu0 %v133
  %208 = vmatprep.subr.bf16.mxu0 0
  %209 = vmatpush1.bf16.msra.mxu0 %v132
  %210 = vmatprep.subr.bf16.mxu0 0
  %211 = vmatpush1.bf16.msra.mxu0 %v131
  %212 = vmatprep.subr.bf16.mxu0 0
  %213 = vmatpush2.bf16.msra.mxu0 %v146
  %214 = vmatprep.subr.bf16.mxu0 0
  %215 = vmatpush2.bf16.msra.mxu0 %v145
  %216 = vmatprep.subr.bf16.mxu0 0
  %217 = vmatpush2.bf16.msra.mxu0 %v144
  %218 = vmatprep.subr.bf16.mxu0 0
  %219 = vmatpush2.bf16.msra.mxu0 %v143
  %220 = vmatprep.subr.bf16.mxu0 0
  %221 = vmatpush2.bf16.msra.mxu0 %v142
  %222 = vmatprep.subr.bf16.mxu0 0
  %223 = vmatpush2.bf16.msra.mxu0 %v141
  %224 = vmatprep.subr.bf16.mxu0 0
  %225 = vmatpush2.bf16.msra.mxu0 %v140
  %226 = vmatprep.subr.bf16.mxu0 0
  %227 = vmatpush2.bf16.msra.mxu0 %v139
  %228 = vmatprep.mubr.bf16.mxu0 %v46
  %229 = vmatmul.mubr.bf16.gmra.mxu0 %v45
  %v230 = vpop.f32.mrf.mxu0
  %v231 = vadd.f32 %v182, %v230
  %v232 = vpop.f32.mrf.mxu0
  %v233 = vpop.f32.mrf.mxu0
  %v234 = vadd.f32 %v185, %v233
  %v235 = vpop.f32.mrf.mxu0
  %236 = vmatprep.mubr.bf16.mxu0 %v50
  %237 = vmatmul.mubr.bf16.gmra.mxu0 %v49
  %v238 = vpop.f32.mrf.mxu0
  %v239 = vadd.f32 %v190, %v238
  %v240 = vpop.f32.mrf.mxu0
  %v241 = vpop.f32.mrf.mxu0
  %v242 = vadd.f32 %v193, %v241
  %v243 = vpop.f32.mrf.mxu0
  %244 = vdwg.mxu0
  %v245 = vadd.f32 %v39, %v231
  %v246 = vadd.f32 %v40, %v234
  %v247 = vadd.f32 %v41, %v239
  %v248 = vadd.f32 %v42, %v242
  %249 = vst [vmem:[#allocation2] sm:$0xff] %v245
  %250 = vst [vmem:[#allocation2 + $0x8] sm:$0xff] %v246
  %251 = vst [vmem:[#allocation2 + $0x10] sm:$0xff] %v247
  %252 = vst [vmem:[#allocation2 + $0x18] sm:$0xff] %v248
  // Predicated region
  $region18: #{gpt_forward.19} parent=0 // pred_check
    %p253 = pneg %p15
  $region19: #{gpt_forward.19} parent=0 // pred_check_branch
    %255 = sbr.rel (%p253) target = $region21
  $region20: #{gpt_forward.19} parent=0 // pred_region
    %v256 = vld [vmem:[#allocation2] sm:$0xff]
    %v257 = vld [vmem:[#allocation2 + $0x8] sm:$0xff]
    %v258 = vld [vmem:[#allocation2 + $0x10] sm:$0xff]
    %v259 = vld [vmem:[#allocation2 + $0x18] sm:$0xff]
    %v260 = vld [vmem:[%s2] sm:$0x1]
    %v262 = vlaneseq
    %v263 = vshrl.u32 %v262, 7
    %v264 = vsub.s32 0, %v263
    %v265 = vrot.slane %v260, %v264
    %v267 = vadd.f32 %v256, %v265
    %v268 = vadd.f32 %v257, %v265
    %v269 = vadd.f32 %v258, %v265
    %v270 = vadd.f32 %v259, %v265
    %271 = vst [vmem:[%s3] sm:$0xff] %v267
    %272 = vst [vmem:[%s3 + $0x8] sm:$0xff] %v268
    %273 = vst [vmem:[%s3 + $0x10] sm:$0xff] %v269
    %274 = vst [vmem:[%s3 + $0x18] sm:$0xff] %v270
  $region21: #{gpt_forward.19} parent=0 // pred_fallthru
    _
  // Predicated region
  $region22: #{gpt_forward.19} parent=0 // pred_check
    _
  $region23: #{gpt_forward.19} parent=0 // pred_check_branch
    %276 = sbr.rel (0) target = $region25
  $region24: #{gpt_forward.19} parent=0 // pred_region
    _
  $region25: #{gpt_forward.19} parent=0 // pred_fallthru
    _
  // Predicated region
  $region26: #{gpt_forward.19} parent=0 // pred_check
    _
  $region27: #{gpt_forward.19} parent=0 // pred_check_branch
    %278 = sbr.rel (0) target = $region29
  $region28: #{gpt_forward.19} parent=0 // pred_region
    _
  $region29: #{gpt_forward.19} parent=0 // pred_fallthru
    _

// kernel: gpt_forward.20
$region0: #{gpt_forward.20}
  #allocation0 [shape = 'u32[]', space=smem, size = 0x4, offset = 0x4, fixed_abs, tag = 'smem constant byte address 0x4 - core index']
  #allocation1 [shape = 'u32[144,128]{1,0:T(1,128)}', space=vmem, size = 0x12000, scoped, tag = 'internal scratch']
  #allocation2 [shape = 'f32[32,256]{1,0:T(8,128)}', space=vmem, size = 0x8000, scoped, tag = 'scratch operand']
  %s0 = inlined_call_operand.vmem [shape: f32[32,128], index: 0, kind: input, shape index: {}]
  %s1 = inlined_call_operand.vmem [shape: f32[128,1024], index: 1, kind: input, shape index: {}]
  %s2 = inlined_call_operand.vmem [shape: f32[1,1024], index: 2, kind: input, shape index: {}]
  %s3 = inlined_call_operand.vmem [shape: f32[32,1024], index: 3, kind: output, shape index: {}]
  %s4 = sld [smem:[#allocation0]]
  $region95: #{gpt_forward.20} parent=0
    _
  %s6 = ssub.s32 1, %s4
  %s7 = scalar_select 0, %s6, %s4
  $region1: #{gpt_forward.20} parent=0
    #allocation3 [shape = 'u8[262144]{0}', space=vmem, size = 0x40000, scoped, tag = 'input window, operand 1']
    #allocation4 [shape = 'u8[65536]{0}', space=vmem, size = 0x10000, scoped, tag = 'output window, operand 0']
    loop: start=0, step=1, limit=6
    $region2: #{gpt_forward.20} parent=1 // loop_pre_header
      _
    $region3: #{gpt_forward.20} parent=1 // loop_header
      %s9 = sphi 0, %s13
      %p10 = scmp.ge.s32.totalorder %s9, 6
      %s16 = sphi 0, %s35
      %s17 = sphi 0, %s31
      %s18 = sphi 0, %s27
      %s19 = sphi 0, %s16
      %s20 = sphi 0, %s17
      %s21 = sphi 0, %s18
      %s22 = sphi 0, %s19
      %s23 = sphi 0, %s20
      %s24 = sphi 0, %s21
      %s40 = sphi 0, %s42
      %s43 = sphi 0, %s40
      %s44 = sphi 0, %s43
      %s60 = sphi 0, %s44
      %s68 = sphi 0, %s70
      %s71 = sphi 0, %s68
      %s72 = sphi 0, %s71
      %s88 = sphi 0, %s72
      %s94 = sphi 0, %s96
      %s97 = sphi 0, %s94
      %s98 = sphi 0, %s97
      %s114 = sphi 0, %s98
      %s122 = sphi 0, %s124
      %s125 = sphi 0, %s122
      %s126 = sphi 0, %s125
      %s142 = sphi 0, %s126
    $region4: #{gpt_forward.20} parent=1 // loop_header_branch
      %12 = sbr.rel (%p10) target = $region8
    $region5: #{gpt_forward.20} parent=1 // loop_body
      %s14 = ssub.s32 %s9, 1
      %s15 = ssub.s32 %s9, 2
      %s25 = sadd.s32 1, %s18
      %p26 = scmp.ge.s32.totalorder %s25, 1
      %s27 = scalar_select %p26, 0, %s25
      %s28 = sadd.s32 1, %s17
      %s29 = scalar_select %p26, %s28, %s17
      %p30 = scmp.ge.s32.totalorder %s29, 4
      %s31 = scalar_select %p30, 0, %s29
      %s32 = sadd.s32 1, %s16
      %s33 = scalar_select %p30, %s32, %s16
      %p34 = scmp.ge.s32.totalorder %s33, 1
      %s35 = scalar_select %p34, 0, %s33
      %s36 = ssub.s32 %s16, %s35
      %s37 = ssub.s32 %s18, %s27
      %s38 = sor.u32 %s36, %s37
      %p39 = scmp.eq.s32.totalorder %s38, 0
      %s41 = sadd.s32 %s40, 1
      %s42 = scalar_select %p39, %s40, %s41
      %p45 = pneg %p39
      %p46 = scmp.eq.s32.totalorder %s9, 3
      %p47 = por %p45, %p46
      %p48 = scmp.ne.s32.totalorder %s40, %s43
      %p49 = scmp.eq.s32.totalorder %s9, 0
      %p50 = por %p48, %p49
      %p51 = scmp.ne.s32.totalorder %s40, %s43
      %p52 = scmp.eq.s32.totalorder %s14, 3
      %p53 = por %p51, %p52
      %p54 = scmp.ne.s32.totalorder %s43, %s44
      %p55 = scmp.eq.s32.totalorder %s14, 0
      %p56 = por %p54, %p55
      %p57 = scmp.ne.s32.totalorder %s43, %s44
      %p58 = scmp.eq.s32.totalorder %s15, 3
      %p59 = por %p57, %p58
      %p61 = scmp.ne.s32.totalorder %s44, %s60
      %p62 = scmp.eq.s32.totalorder %s15, 0
      %p63 = por %p61, %p62
      %s64 = ssub.s32 %s18, %s27
      %s65 = ssub.s32 %s17, %s31
      %s66 = sor.u32 %s64, %s65
      %p67 = scmp.eq.s32.totalorder %s66, 0
      %s69 = sadd.s32 %s68, 1
      %s70 = scalar_select %p67, %s68, %s69
      %p73 = pneg %p67
      %p74 = scmp.eq.s32.totalorder %s9, 3
      %p75 = por %p73, %p74
      %p76 = scmp.ne.s32.totalorder %s68, %s71
      %p77 = scmp.eq.s32.totalorder %s9, 0
      %p78 = por %p76, %p77
      %p79 = scmp.ne.s32.totalorder %s68, %s71
      %p80 = scmp.eq.s32.totalorder %s14, 3
      %p81 = por %p79, %p80
      %p82 = scmp.ne.s32.totalorder %s71, %s72
      %p83 = scmp.eq.s32.totalorder %s14, 0
      %p84 = por %p82, %p83
      %p85 = scmp.ne.s32.totalorder %s71, %s72
      %p86 = scmp.eq.s32.totalorder %s15, 3
      %p87 = por %p85, %p86
      %p89 = scmp.ne.s32.totalorder %s72, %s88
      %p90 = scmp.eq.s32.totalorder %s15, 0
      %p91 = por %p89, %p90
      %s92 = ssub.s32 %s17, %s31
      %p93 = scmp.eq.s32.totalorder %s92, 0
      %s95 = sadd.s32 %s94, 1
      %s96 = scalar_select %p93, %s94, %s95
      %p99 = pneg %p93
      %p100 = scmp.eq.s32.totalorder %s9, 3
      %p101 = por %p99, %p100
      %p102 = scmp.ne.s32.totalorder %s94, %s97
      %p103 = scmp.eq.s32.totalorder %s9, 0
      %p104 = por %p102, %p103
      %p105 = scmp.ne.s32.totalorder %s94, %s97
      %p106 = scmp.eq.s32.totalorder %s14, 3
      %p107 = por %p105, %p106
      %p108 = scmp.ne.s32.totalorder %s97, %s98
      %p109 = scmp.eq.s32.totalorder %s14, 0
      %p110 = por %p108, %p109
      %p111 = scmp.ne.s32.totalorder %s97, %s98
      %p112 = scmp.eq.s32.totalorder %s15, 3
      %p113 = por %p111, %p112
      %p115 = scmp.ne.s32.totalorder %s98, %s114
      %p116 = scmp.eq.s32.totalorder %s15, 0
      %p117 = por %p115, %p116
      %s118 = ssub.s32 %s16, %s35
      %s119 = ssub.s32 %s17, %s31
      %s120 = sor.u32 %s118, %s119
      %p121 = scmp.eq.s32.totalorder %s120, 0
      %s123 = sadd.s32 %s122, 1
      %s124 = scalar_select %p121, %s122, %s123
      %p127 = pneg %p121
      %p128 = scmp.eq.s32.totalorder %s9, 3
      %p129 = por %p127, %p128
      %p130 = scmp.ne.s32.totalorder %s122, %s125
      %p131 = scmp.eq.s32.totalorder %s9, 0
      %p132 = por %p130, %p131
      %p133 = scmp.ne.s32.totalorder %s122, %s125
      %p134 = scmp.eq.s32.totalorder %s14, 3
      %p135 = por %p133, %p134
      %p136 = scmp.ne.s32.totalorder %s125, %s126
      %p137 = scmp.eq.s32.totalorder %s14, 0
      %p138 = por %p136, %p137
      %p139 = scmp.ne.s32.totalorder %s125, %s126
      %p140 = scmp.eq.s32.totalorder %s15, 3
      %p141 = por %p139, %p140
      %p143 = scmp.ne.s32.totalorder %s126, %s142
      %p144 = scmp.eq.s32.totalorder %s15, 0
      %p145 = por %p143, %p144
      %p146 = scmp.le.s32.totalorder 1, %s9
      %p147 = scmp.lt.s32.totalorder %s9, 5
      %p148 = pnand %p146, %p147
      %p149 = pneg %p148
      // Predicated region
      $region9: #{gpt_forward.20} parent=5 // pred_check
        _
      $region10: #{gpt_forward.20} parent=5 // pred_check_branch
        %151 = sbr.rel (%p148) target = $region12
      $region11: #{gpt_forward.20} parent=5 // pred_region
        %s152 = ssub.s32 %s9, 1
        // Predicated region
        $region13: #{gpt_forward.20} parent=11 // pred_check
          %p153 = pneg %p56
        $region14: #{gpt_forward.20} parent=11 // pred_check_branch
          %155 = sbr.rel (%p153) target = $region16
        $region15: #{gpt_forward.20} parent=11 // pred_region
          %s156 = smul.u32 4, %s19
          %p157 = scmp.lt.s32.totalorder %s156, 3
          %s158 = scalar_select %p157, %s156, 3
          %p159 = scmp.lt.s32.totalorder %s21, 0
          %s160 = scalar_select %p159, %s21, 0
          %s161 = sadd.s32 %s160, %s158
          %s162 = smul.addr %s161, 8
          %s163 = scalar_lea.vmem %s0, %s162
          %s164 = smul.u32 4, %s19
        $region16: #{gpt_forward.20} parent=11 // pred_fallthru
          _
      $region12: #{gpt_forward.20} parent=5 // pred_fallthru
        _
      %p165 = scmp.lt.s32.totalorder %s9, 4
      // Predicated region
      $region17: #{gpt_forward.20} parent=5 // pred_check
        %p166 = pneg %p165
      $region18: #{gpt_forward.20} parent=5 // pred_check_branch
        %168 = sbr.rel (%p166) target = $region20
      $region19: #{gpt_forward.20} parent=5 // pred_region
        // Predicated region
        $region21: #{gpt_forward.20} parent=19 // pred_check
          %p169 = pneg %p78
        $region22: #{gpt_forward.20} parent=19 // pred_check_branch
          %171 = sbr.rel (%p169) target = $region24
        $region23: #{gpt_forward.20} parent=19 // pred_region
          %s172 = sand.u32 %s68, 1
          %s173 = sand.u32 %s68, 1
          %s174 = smul.addr %s173, 256
          %s175 = scalar_lea.vmem [#allocation3], %s174
          %s176 = smul.u32 16, %s18
          %s177 = smul.u32 2, %s17
          %s178 = smul.addr %s176, 8
          %s179 = sadd.s32 %s177, %s178
          %s180 = smul.addr %s179, 8
          %s181 = scalar_lea.vmem %s1, %s180
          // Predicated region
          $region25: #{gpt_forward.20} parent=23 // pred_check
            _
          $region26: #{gpt_forward.20} parent=23 // pred_check_branch
            %183 = sbr.rel (0) target = $region28
          $region27: #{gpt_forward.20} parent=23 // pred_region
            // Predicated region
            $region29: #{gpt_forward.20} parent=27 // pred_check
              _
            $region30: #{gpt_forward.20} parent=27 // pred_check_branch
              %185 = sbr.rel (0) target = $region32
            $region31: #{gpt_forward.20} parent=27 // pred_region
              loop: start=0, step=1, limit=1
              $region33: #{gpt_forward.20} parent=31 // loop_pre_header
                _
              $region34: #{gpt_forward.20} parent=31 // loop_header
                %s187 = sphi 0, %s191
                %p188 = scmp.ge.s32.totalorder %s187, 1
                %s192 = sphi %s181, %s181
                %s193 = sphi %s175, %s175
              $region35: #{gpt_forward.20} parent=31 // loop_header_branch
                %190 = sbr.rel (%p188) target = $region39
              $region36: #{gpt_forward.20} parent=31 // loop_body
                %v194 = vld [vmem:[%s192] sm:$0xff]
                %195 = vst [vmem:[%s193] sm:$0xff] %v194
                %v196 = vld [vmem:[%s192 + $0x8] sm:$0xff]
                %197 = vst [vmem:[%s193 + $0x8] sm:$0xff] %v196
                %v198 = vld [vmem:[%s192 + $0x40] sm:$0xff]
                %199 = vst [vmem:[%s193 + $0x10] sm:$0xff] %v198
                %v200 = vld [vmem:[%s192 + $0x48] sm:$0xff]
                %201 = vst [vmem:[%s193 + $0x18] sm:$0xff] %v200
                %v202 = vld [vmem:[%s192 + $0x80] sm:$0xff]
                %203 = vst [vmem:[%s193 + $0x20] sm:$0xff] %v202
                %v204 = vld [vmem:[%s192 + $0x88] sm:$0xff]
                %205 = vst [vmem:[%s193 + $0x28] sm:$0xff] %v204
                %v206 = vld [vmem:[%s192 + $0xc0] sm:$0xff]
                %207 = vst [vmem:[%s193 + $0x30] sm:$0xff] %v206
                %v208 = vld [vmem:[%s192 + $0xc8] sm:$0xff]
                %209 = vst [vmem:[%s193 + $0x38] sm:$0xff] %v208
                %v210 = vld [vmem:[%s192 + $0x100] sm:$0xff]
                %211 = vst [vmem:[%s193 + $0x40] sm:$0xff] %v210
                %v212 = vld [vmem:[%s192 + $0x108] sm:$0xff]
                %213 = vst [vmem:[%s193 + $0x48] sm:$0xff] %v212
                %v214 = vld [vmem:[%s192 + $0x140] sm:$0xff]
                %215 = vst [vmem:[%s193 + $0x50] sm:$0xff] %v214
                %v216 = vld [vmem:[%s192 + $0x148] sm:$0xff]
                %217 = vst [vmem:[%s193 + $0x58] sm:$0xff] %v216
                %v218 = vld [vmem:[%s192 + $0x180] sm:$0xff]
                %219 = vst [vmem:[%s193 + $0x60] sm:$0xff] %v218
                %v220 = vld [vmem:[%s192 + $0x188] sm:$0xff]
                %221 = vst [vmem:[%s193 + $0x68] sm:$0xff] %v220
                %v222 = vld [vmem:[%s192 + $0x1c0] sm:$0xff]
                %223 = vst [vmem:[%s193 + $0x70] sm:$0xff] %v222
                %v224 = vld [vmem:[%s192 + $0x1c8] sm:$0xff]
                %225 = vst [vmem:[%s193 + $0x78] sm:$0xff] %v224
                %v226 = vld [vmem:[%s192 + $0x200] sm:$0xff]
                %227 = vst [vmem:[%s193 + $0x80] sm:$0xff] %v226
                %v228 = vld [vmem:[%s192 + $0x208] sm:$0xff]
                %229 = vst [vmem:[%s193 + $0x88] sm:$0xff] %v228
                %v230 = vld [vmem:[%s192 + $0x240] sm:$0xff]
                %231 = vst [vmem:[%s193 + $0x90] sm:$0xff] %v230
                %v232 = vld [vmem:[%s192 + $0x248] sm:$0xff]
                %233 = vst [vmem:[%s193 + $0x98] sm:$0xff] %v232
                %v234 = vld [vmem:[%s192 + $0x280] sm:$0xff]
                %235 = vst [vmem:[%s193 + $0xa0] sm:$0xff] %v234
                %v236 = vld [vmem:[%s192 + $0x288] sm:$0xff]
                %237 = vst [vmem:[%s193 + $0xa8] sm:$0xff] %v236
                %v238 = vld [vmem:[%s192 + $0x2c0] sm:$0xff]
                %239 = vst [vmem:[%s193 + $0xb0] sm:$0xff] %v238
                %v240 = vld [vmem:[%s192 + $0x2c8] sm:$0xff]
                %241 = vst [vmem:[%s193 + $0xb8] sm:$0xff] %v240
                %v242 = vld [vmem:[%s192 + $0x300] sm:$0xff]
                %243 = vst [vmem:[%s193 + $0xc0] sm:$0xff] %v242
                %v244 = vld [vmem:[%s192 + $0x308] sm:$0xff]
                %245 = vst [vmem:[%s193 + $0xc8] sm:$0xff] %v244
                %v246 = vld [vmem:[%s192 + $0x340] sm:$0xff]
                %247 = vst [vmem:[%s193 + $0xd0] sm:$0xff] %v246
                %v248 = vld [vmem:[%s192 + $0x348] sm:$0xff]
                %249 = vst [vmem:[%s193 + $0xd8] sm:$0xff] %v248
                %v250 = vld [vmem:[%s192 + $0x380] sm:$0xff]
                %251 = vst [vmem:[%s193 + $0xe0] sm:$0xff] %v250
                %v252 = vld [vmem:[%s192 + $0x388] sm:$0xff]
                %253 = vst [vmem:[%s193 + $0xe8] sm:$0xff] %v252
                %v254 = vld [vmem:[%s192 + $0x3c0] sm:$0xff]
                %255 = vst [vmem:[%s193 + $0xf0] sm:$0xff] %v254
                %v256 = vld [vmem:[%s192 + $0x3c8] sm:$0xff]
                %257 = vst [vmem:[%s193 + $0xf8] sm:$0xff] %v256
              $region37: #{gpt_forward.20} parent=31 // loop_footer
                %s191 = sadd.s32 1, %s187
              $region38: #{gpt_forward.20} parent=31 // loop_footer_branch
                %186 = sbr.rel target = $region34
              $region39: #{gpt_forward.20} parent=31 // loop_exit
                _
            $region32: #{gpt_forward.20} parent=27 // pred_fallthru
              _
            // Predicated region
            $region40: #{gpt_forward.20} parent=27 // pred_check
              _
            $region41: #{gpt_forward.20} parent=27 // pred_check_branch
              %259 = sbr.rel target = $region43
            $region42: #{gpt_forward.20} parent=27 // pred_region
              _
            $region43: #{gpt_forward.20} parent=27 // pred_fallthru
              _
          $region28: #{gpt_forward.20} parent=23 // pred_fallthru
            _
          %260 = vnop
        $region24: #{gpt_forward.20} parent=19 // pred_fallthru
          _
        // Predicated region
        $region44: #{gpt_forward.20} parent=19 // pred_check
          %p261 = pneg %p104
        $region45: #{gpt_forward.20} parent=19 // pred_check_branch
          %263 = sbr.rel (%p261) target = $region47
        $region46: #{gpt_forward.20} parent=19 // pred_region
          %s264 = smul.u32 2, %s17
          %p265 = scmp.lt.s32.totalorder %s264, 7
          %s266 = scalar_select %p265, %s264, 7
          %s267 = scalar_lea.vmem %s2, %s266
          %s268 = smul.u32 2, %s17
        $region47: #{gpt_forward.20} parent=19 // pred_fallthru
          _
      $region20: #{gpt_forward.20} parent=5 // pred_fallthru
        _
      %p269 = scmp.le.s32.totalorder 1, %s9
      %p270 = scmp.lt.s32.totalorder %s9, 5
      %p271 = pnand %p269, %p270
      %p272 = pneg %p271
      // Predicated region
      $region48: #{gpt_forward.20} parent=5 // pred_check
        _
      $region49: #{gpt_forward.20} parent=5 // pred_check_branch
        %274 = sbr.rel (%p271) target = $region51
      $region50: #{gpt_forward.20} parent=5 // pred_region
        %s275 = ssub.s32 %s9, 1
        %s276 = sand.u32 %s71, 1
        %s277 = sand.u32 %s71, 1
        %s278 = smul.addr %s277, 256
        %s279 = scalar_lea.vmem [#allocation3], %s278
        // Predicated region
        $region52: #{gpt_forward.20} parent=50 // pred_check
          %p280 = pneg %p84
        $region53: #{gpt_forward.20} parent=50 // pred_check_branch
          %282 = sbr.rel (%p280) target = $region55
        $region54: #{gpt_forward.20} parent=50 // pred_region
          _
        $region55: #{gpt_forward.20} parent=50 // pred_fallthru
          _
        %s283 = smul.u32 4, %s19
        %p284 = scmp.lt.s32.totalorder %s283, 3
        %s285 = scalar_select %p284, %s283, 3
        %p286 = scmp.lt.s32.totalorder %s21, 0
        %s287 = scalar_select %p286, %s21, 0
        %s288 = sadd.s32 %s287, %s285
        %s289 = smul.addr %s288, 8
        %s290 = scalar_lea.vmem %s0, %s289
        %p291 = pneg %p56
        %p292 = pneg %p53
        %s293 = sand.u32 %s71, 1
        %s294 = sand.u32 %s71, 1
        %s295 = smul.addr %s294, 256
        %s296 = scalar_lea.vmem [#allocation3], %s295
        %p297 = pneg %p84
        %p298 = pneg %p81
        %s299 = smul.u32 2, %s20
        %p300 = scmp.lt.s32.totalorder %s299, 7
        %s301 = scalar_select %p300, %s299, 7
        %s302 = scalar_lea.vmem %s2, %s301
        %p303 = pneg %p110
        %p304 = pneg %p107
        %p305 = pneg %p138
        %p306 = pneg %p135
        %s307 = sand.u32 %s125, 1
        %s308 = sand.u32 %s125, 1
        %s309 = smul.addr %s308, 64
        %s310 = scalar_lea.vmem [#allocation4], %s309
        %s311 = smul.u32 4, %s19
        %p312 = scmp.lt.s32.totalorder %s311, 3
        %s313 = scalar_select %p312, %s311, 3
        %p314 = scmp.lt.s32.totalorder %s21, 0
        %s315 = scalar_select %p314, %s21, 0
        %s316 = sadd.s32 %s315, %s313
        %s317 = smul.addr %s316, 8
        %s318 = scalar_lea.vmem %s0, %s317
        %s319 = smul.u32 4, %s19
        %s320 = smul.u32 16, %s21
        %s321 = smul.u32 2, %s20
        %s322 = smul.u32 2, %s20
        %p323 = scmp.lt.s32.totalorder %s322, 7
        %s324 = scalar_select %p323, %s322, 7
        %s325 = scalar_lea.vmem %s2, %s324
        %s326 = smul.u32 2, %s20
        %s327 = smul.u32 4, %s19
        %s328 = smul.u32 2, %s20
        %p330 = scmp.eq.s32.totalorder %s21, 0
        // Predicated region
        $region56: #{gpt_forward.20} parent=50 // pred_check
          %p331 = pneg %p330
        $region57: #{gpt_forward.20} parent=50 // pred_check_branch
          %333 = sbr.rel (%p331) target = $region59
        $region58: #{gpt_forward.20} parent=50 // pred_region
          %334 = vst [vmem:[#allocation2] sm:$0xff] 0.0
          %335 = vst [vmem:[#allocation2 + $0x8] sm:$0xff] 0.0
          %336 = vst [vmem:[#allocation2 + $0x10] sm:$0xff] 0.0
          %337 = vst [vmem:[#allocation2 + $0x18] sm:$0xff] 0.0
          %338 = vst [vmem:[#allocation2 + $0x20] sm:$0xff] 0.0
          %339 = vst [vmem:[#allocation2 + $0x28] sm:$0xff] 0.0
          %340 = vst [vmem:[#allocation2 + $0x30] sm:$0xff] 0.0
          %341 = vst [vmem:[#allocation2 + $0x38] sm:$0xff] 0.0
        $region59: #{gpt_forward.20} parent=50 // pred_fallthru
          _
        %v342 = vld [vmem:[%s318] sm:$0xff]
        %v343 = vld [vmem:[%s318 + $0x8] sm:$0xff]
        %v344 = vld [vmem:[%s318 + $0x10] sm:$0xff]
        %v345 = vld [vmem:[%s318 + $0x18] sm:$0xff]
        %v346 = vld [vmem:[#allocation2] sm:$0xff]
        %v347 = vld [vmem:[#allocation2 + $0x8] sm:$0xff]
        %v348 = vld [vmem:[#allocation2 + $0x10] sm:$0xff]
        %v349 = vld [vmem:[#allocation2 + $0x18] sm:$0xff]
        %v350 = vld [vmem:[#allocation2 + $0x20] sm:$0xff]
        %v351 = vld [vmem:[#allocation2 + $0x28] sm:$0xff]
        %v352 = vld [vmem:[#allocation2 + $0x30] sm:$0xff]
        %v353 = vld [vmem:[#allocation2 + $0x38] sm:$0xff]
        %v354 = vpack.c.bf16 %v343, %v342
        %v355 = vpack.c.bf16 %v345, %v344
        %v356 = vld [vmem:[%s279] sm:$0xff]
        %v357 = vld [vmem:[%s279 + $0x8] sm:$0xff]
        %v358 = vld [vmem:[%s279 + $0x10] sm:$0xff]
        %v359 = vld [vmem:[%s279 + $0x18] sm:$0xff]
        %v360 = vld [vmem:[%s279 + $0x20] sm:$0xff]
        %v361 = vld [vmem:[%s279 + $0x28] sm:$0xff]
        %v362 = vld [vmem:[%s279 + $0x30] sm:$0xff]
        %v363 = vld [vmem:[%s279 + $0x38] sm:$0xff]
        %v364 = vld [vmem:[%s279 + $0x40] sm:$0xff]
        %v365 = vld [vmem:[%s279 + $0x48] sm:$0xff]
        %v366 = vld [vmem:[%s279 + $0x50] sm:$0xff]
        %v367 = vld [vmem:[%s279 + $0x58] sm:$0xff]
        %v368 = vld [vmem:[%s279 + $0x60] sm:$0xff]
        %v369 = vld [vmem:[%s279 + $0x68] sm:$0xff]
        %v370 = vld [vmem:[%s279 + $0x70] sm:$0xff]
        %v371 = vld [vmem:[%s279 + $0x78] sm:$0xff]
        %v372 = vld [vmem:[%s279 + $0x80] sm:$0xff]
        %v373 = vld [vmem:[%s279 + $0x88] sm:$0xff]
        %v374 = vld [vmem:[%s279 + $0x90] sm:$0xff]
        %v375 = vld [vmem:[%s279 + $0x98] sm:$0xff]
        %v376 = vld [vmem:[%s279 + $0xa0] sm:$0xff]
        %v377 = vld [vmem:[%s279 + $0xa8] sm:$0xff]
        %v378 = vld [vmem:[%s279 + $0xb0] sm:$0xff]
        %v379 = vld [vmem:[%s279 + $0xb8] sm:$0xff]
        %v380 = vld [vmem:[%s279 + $0xc0] sm:$0xff]
        %v381 = vld [vmem:[%s279 + $0xc8] sm:$0xff]
        %v382 = vld [vmem:[%s279 + $0xd0] sm:$0xff]
        %v383 = vld [vmem:[%s279 + $0xd8] sm:$0xff]
        %v384 = vld [vmem:[%s279 + $0xe0] sm:$0xff]
        %v385 = vld [vmem:[%s279 + $0xe8] sm:$0xff]
        %v386 = vld [vmem:[%s279 + $0xf0] sm:$0xff]
        %v387 = vld [vmem:[%s279 + $0xf8] sm:$0xff]
        %v388 = vpack.c.bf16 %v358, %v356
        %v389 = vpack.c.bf16 %v359, %v357
        %v390 = vpack.c.bf16 %v362, %v360
        %v391 = vpack.c.bf16 %v363, %v361
        %v392 = vpack.c.bf16 %v366, %v364
        %v393 = vpack.c.bf16 %v367, %v365
        %v394 = vpack.c.bf16 %v370, %v368
        %v395 = vpack.c.bf16 %v371, %v369
        %v396 = vpack.c.bf16 %v374, %v372
        %v397 = vpack.c.bf16 %v375, %v373
        %v398 = vpack.c.bf16 %v378, %v376
        %v399 = vpack.c.bf16 %v379, %v377
        %v400 = vpack.c.bf16 %v382, %v380
        %v401 = vpack.c.bf16 %v383, %v381
        %v402 = vpack.c.bf16 %v386, %v384
        %v403 = vpack.c.bf16 %v387, %v385
        %404 = vmatprep.subr.bf16.mxu0 %v403
        %405 = vmatpush1.bf16.msra.mxu0 %v402
        %406 = vmatprep.subr.bf16.mxu0 %v401
        %407 = vmatpush1.bf16.msra.mxu0 %v400
        %408 = vmatprep.subr.bf16.mxu0 %v399
        %409 = vmatpush1.bf16.msra.mxu0 %v398
        %410 = vmatprep.subr.bf16.mxu0 %v397
        %411 = vmatpush1.bf16.msra.mxu0 %v396
        %412 = vmatprep.subr.bf16.mxu0 %v395
        %413 = vmatpush1.bf16.msra.mxu0 %v394
        %414 = vmatprep.subr.bf16.mxu0 %v393
        %415 = vmatpush1.bf16.msra.mxu0 %v392
        %416 = vmatprep.subr.bf16.mxu0 %v391
        %417 = vmatpush1.bf16.msra.mxu0 %v390
        %418 = vmatprep.subr.bf16.mxu0 %v389
        %419 = vmatpush1.bf16.msra.mxu0 %v388
        %420 = vmatprep.subr.bf16.mxu0 0
        %421 = vmatpush2.bf16.msra.mxu0 0
        %422 = vmatprep.subr.bf16.mxu0 0
        %423 = vmatpush2.bf16.msra.mxu0 0
        %424 = vmatprep.subr.bf16.mxu0 0
        %425 = vmatpush2.bf16.msra.mxu0 0
        %426 = vmatprep.subr.bf16.mxu0 0
        %427 = vmatpush2.bf16.msra.mxu0 0
        %428 = vmatprep.subr.bf16.mxu0 0
        %429 = vmatpush2.bf16.msra.mxu0 0
        %430 = vmatprep.subr.bf16.mxu0 0
        %431 = vmatpush2.bf16.msra.mxu0 0
        %432 = vmatprep.subr.bf16.mxu0 0
        %433 = vmatpush2.bf16.msra.mxu0 0
        %434 = vmatprep.subr.bf16.mxu0 0
        %435 = vmatpush2.bf16.msra.mxu0 0
        %436 = vmatprep.mubr.bf16.mxu0 0
        %437 = vmatmul.mubr.bf16.gmra.mxu0 %v354
        %v438 = vpop.f32.mrf.mxu0
        %v439 = vadd.f32 0.0, %v438
        %v440 = vpop.f32.mrf.mxu0
        %v441 = vadd.f32 0.0, %v440
        %v442 = vpop.f32.mrf.mxu0
        %v443 = vadd.f32 0.0, %v442
        %v444 = vpop.f32.mrf.mxu0
        %v445 = vadd.f32 0.0, %v444
        %446 = vmatprep.mubr.bf16.mxu0 0
        %447 = vmatmul.mubr.bf16.gmra.mxu0 %v355
        %v448 = vpop.f32.mrf.mxu0
        %v449 = vadd.f32 0.0, %v448
        %v450 = vpop.f32.mrf.mxu0
        %v451 = vadd.f32 0.0, %v450
        %v452 = vpop.f32.mrf.mxu0
        %v453 = vadd.f32 0.0, %v452
        %v454 = vpop.f32.mrf.mxu0
        %v455 = vadd.f32 0.0, %v454
        %456 = vdwg.mxu0
        %v457 = vadd.f32 %v346, %v439
        %v458 = vadd.f32 %v347, %v441
        %v459 = vadd.f32 %v348, %v443
        %v460 = vadd.f32 %v349, %v445
        %v461 = vadd.f32 %v350, %v449
        %v462 = vadd.f32 %v351, %v451
        %v463 = vadd.f32 %v352, %v453
        %v464 = vadd.f32 %v353, %v455
        %465 = vst [vmem:[#allocation2] sm:$0xff] %v457
        %466 = vst [vmem:[#allocation2 + $0x8] sm:$0xff] %v458
        %467 = vst [vmem:[#allocation2 + $0x10] sm:$0xff] %v459
        %468 = vst [vmem:[#allocation2 + $0x18] sm:$0xff] %v460
        %469 = vst [vmem:[#allocation2 + $0x20] sm:$0xff] %v461
        %470 = vst [vmem:[#allocation2 + $0x28] sm:$0xff] %v462
        %471 = vst [vmem:[#allocation2 + $0x30] sm:$0xff] %v463
        %472 = vst [vmem:[#allocation2 + $0x38] sm:$0xff] %v464
        // Predicated region
        $region60: #{gpt_forward.20} parent=50 // pred_check
          %p473 = pneg %p330
        $region61: #{gpt_forward.20} parent=50 // pred_check_branch
          %475 = sbr.rel (%p473) target = $region63
        $region62: #{gpt_forward.20} parent=50 // pred_region
          %v476 = vld [vmem:[#allocation2] sm:$0xff]
          %v477 = vld [vmem:[#allocation2 + $0x8] sm:$0xff]
          %v478 = vld [vmem:[#allocation2 + $0x10] sm:$0xff]
          %v479 = vld [vmem:[#allocation2 + $0x18] sm:$0xff]
          %v480 = vld [vmem:[#allocation2 + $0x20] sm:$0xff]
          %v481 = vld [vmem:[#allocation2 + $0x28] sm:$0xff]
          %v482 = vld [vmem:[#allocation2 + $0x30] sm:$0xff]
          %v483 = vld [vmem:[#allocation2 + $0x38] sm:$0xff]
          %v484 = vld [vmem:[%s325] sm:$0x3]
          %v486 = vlaneseq
          %v487 = vshrl.u32 %v486, 7
          %v488 = vsub.s32 0, %v487
          %v489 = vrot.slane %v484, %v488
          %v490 = vlaneseq
          %v491 = vshrl.u32 %v490, 7
          %v492 = vsub.s32 1, %v491
          %v493 = vrot.slane %v484, %v492
          %v496 = vadd.f32 %v476, %v489
          %v497 = vadd.f32 %v477, %v493
          %v498 = vadd.f32 %v478, %v489
          %v499 = vadd.f32 %v479, %v493
          %v500 = vadd.f32 %v480, %v489
          %v501 = vadd.f32 %v481, %v493
          %v502 = vadd.f32 %v482, %v489
          %v503 = vadd.f32 %v483, %v493
          %v504 = vmul.f32 %v496, 0.5
          %v505 = vmul.f32 %v497, 0.5
          %v506 = vmul.f32 %v498, 0.5
          %v507 = vmul.f32 %v499, 0.5
          %v508 = vmul.f32 %v500, 0.5
          %v509 = vmul.f32 %v501, 0.5
          %v510 = vmul.f32 %v502, 0.5
          %v511 = vmul.f32 %v503, 0.5
          %v512 = vmul.f32 %v496, %v496
          %v513 = vmul.f32 %v497, %v497
          %v514 = vmul.f32 %v498, %v498
          %v515 = vmul.f32 %v499, %v499
          %v516 = vmul.f32 %v500, %v500
          %v517 = vmul.f32 %v501, %v501
          %v518 = vmul.f32 %v502, %v502
          %v519 = vmul.f32 %v503, %v503
          %v520 = vmul.f32 %v512, %v496
          %v521 = vmul.f32 %v513, %v497
          %v522 = vmul.f32 %v514, %v498
          %v523 = vmul.f32 %v515, %v499
          %v524 = vmul.f32 %v516, %v500
          %v525 = vmul.f32 %v517, %v501
          %v526 = vmul.f32 %v518, %v502
          %v527 = vmul.f32 %v519, %v503
          %v528 = vmul.f32 %v520, 0.044715
          %v529 = vmul.f32 %v521, 0.044715
          %v530 = vmul.f32 %v522, 0.044715
          %v531 = vmul.f32 %v523, 0.044715
          %v532 = vmul.f32 %v524, 0.044715
          %v533 = vmul.f32 %v525, 0.044715
          %v534 = vmul.f32 %v526, 0.044715
          %v535 = vmul.f32 %v527, 0.044715
          %v536 = vadd.f32 %v496, %v528
          %v537 = vadd.f32 %v497, %v529
          %v538 = vadd.f32 %v498, %v530
          %v539 = vadd.f32 %v499, %v531
          %v540 = vadd.f32 %v500, %v532
          %v541 = vadd.f32 %v501, %v533
          %v542 = vadd.f32 %v502, %v534
          %v543 = vadd.f32 %v503, %v535
          %v544 = vmul.f32 %v536, 0.7978846
          %v545 = vmul.f32 %v537, 0.7978846
          %v546 = vmul.f32 %v538, 0.7978846
          %v547 = vmul.f32 %v539, 0.7978846
          %v548 = vmul.f32 %v540, 0.7978846
          %v549 = vmul.f32 %v541, 0.7978846
          %v550 = vmul.f32 %v542, 0.7978846
          %v551 = vmul.f32 %v543, 0.7978846
          %v552 = vtanh.pop %v544
          %v553 = vtanh.pop %v545
          %v554 = vtanh.pop %v546
          %v555 = vtanh.pop %v547
          %v556 = vtanh.pop %v548
          %v557 = vtanh.pop %v549
          %v558 = vtanh.pop %v550
          %v559 = vtanh.pop %v551
          %v560 = vadd.f32 %v552, 1.0
          %v561 = vadd.f32 %v553, 1.0
          %v562 = vadd.f32 %v554, 1.0
          %v563 = vadd.f32 %v555, 1.0
          %v564 = vadd.f32 %v556, 1.0
          %v565 = vadd.f32 %v557, 1.0
          %v566 = vadd.f32 %v558, 1.0
          %v567 = vadd.f32 %v559, 1.0
          %v568 = vmul.f32 %v504, %v560
          %v569 = vmul.f32 %v505, %v561
          %v570 = vmul.f32 %v506, %v562
          %v571 = vmul.f32 %v507, %v563
          %v572 = vmul.f32 %v508, %v564
          %v573 = vmul.f32 %v509, %v565
          %v574 = vmul.f32 %v510, %v566
          %v575 = vmul.f32 %v511, %v567
          %576 = vst [vmem:[%s310] sm:$0xff] %v568
          %577 = vst [vmem:[%s310 + $0x8] sm:$0xff] %v569
          %578 = vst [vmem:[%s310 + $0x10] sm:$0xff] %v570
          %579 = vst [vmem:[%s310 + $0x18] sm:$0xff] %v571
          %580 = vst [vmem:[%s310 + $0x20] sm:$0xff] %v572
          %581 = vst [vmem:[%s310 + $0x28] sm:$0xff] %v573
          %582 = vst [vmem:[%s310 + $0x30] sm:$0xff] %v574
          %583 = vst [vmem:[%s310 + $0x38] sm:$0xff] %v575
        $region63: #{gpt_forward.20} parent=50 // pred_fallthru
          _
        %s584 = sand.u32 %s125, 1
        %s585 = sand.u32 %s125, 1
        %s586 = smul.addr %s585, 64
        %s587 = scalar_lea.vmem [#allocation4], %s586
        // Predicated region
        $region64: #{gpt_forward.20} parent=50 // pred_check
          %p588 = pneg %p135
        $region65: #{gpt_forward.20} parent=50 // pred_check_branch
          %590 = sbr.rel (%p588) target = $region67
        $region66: #{gpt_forward.20} parent=50 // pred_region
          %s591 = smul.u32 4, %s19
          %s592 = smul.u32 2, %s20
          %s593 = smul.addr %s591, 8
          %s594 = sadd.s32 %s592, %s593
          %s595 = smul.addr %s594, 8
          %s596 = scalar_lea.vmem %s3, %s595
          // Predicated region
          $region68: #{gpt_forward.20} parent=66 // pred_check
            _
          $region69: #{gpt_forward.20} parent=66 // pred_check_branch
            %598 = sbr.rel (0) target = $region71
          $region70: #{gpt_forward.20} parent=66 // pred_region
            // Predicated region
            $region72: #{gpt_forward.20} parent=70 // pred_check
              _
            $region73: #{gpt_forward.20} parent=70 // pred_check_branch
              %600 = sbr.rel (0) target = $region75
            $region74: #{gpt_forward.20} parent=70 // pred_region
              loop: start=0, step=1, limit=1
              $region76: #{gpt_forward.20} parent=74 // loop_pre_header
                _
              $region77: #{gpt_forward.20} parent=74 // loop_header
                %s602 = sphi 0, %s606
                %p603 = scmp.ge.s32.totalorder %s602, 1
                %s607 = sphi %s587, %s587
                %s608 = sphi %s596, %s596
              $region78: #{gpt_forward.20} parent=74 // loop_header_branch
                %605 = sbr.rel (%p603) target = $region82
              $region79: #{gpt_forward.20} parent=74 // loop_body
                %v609 = vld [vmem:[%s607] sm:$0xff]
                %610 = vst [vmem:[%s608] sm:$0xff] %v609
                %v611 = vld [vmem:[%s607 + $0x8] sm:$0xff]
                %612 = vst [vmem:[%s608 + $0x8] sm:$0xff] %v611
                %v613 = vld [vmem:[%s607 + $0x10] sm:$0xff]
                %614 = vst [vmem:[%s608 + $0x40] sm:$0xff] %v613
                %v615 = vld [vmem:[%s607 + $0x18] sm:$0xff]
                %616 = vst [vmem:[%s608 + $0x48] sm:$0xff] %v615
                %v617 = vld [vmem:[%s607 + $0x20] sm:$0xff]
                %618 = vst [vmem:[%s608 + $0x80] sm:$0xff] %v617
                %v619 = vld [vmem:[%s607 + $0x28] sm:$0xff]
                %620 = vst [vmem:[%s608 + $0x88] sm:$0xff] %v619
                %v621 = vld [vmem:[%s607 + $0x30] sm:$0xff]
                %622 = vst [vmem:[%s608 + $0xc0] sm:$0xff] %v621
                %v623 = vld [vmem:[%s607 + $0x38] sm:$0xff]
                %624 = vst [vmem:[%s608 + $0xc8] sm:$0xff] %v623
              $region80: #{gpt_forward.20} parent=74 // loop_footer
                %s606 = sadd.s32 1, %s602
              $region81: #{gpt_forward.20} parent=74 // loop_footer_branch
                %601 = sbr.rel target = $region77
              $region82: #{gpt_forward.20} parent=74 // loop_exit
                _
            $region75: #{gpt_forward.20} parent=70 // pred_fallthru
              _
            // Predicated region
            $region83: #{gpt_forward.20} parent=70 // pred_check
              _
            $region84: #{gpt_forward.20} parent=70 // pred_check_branch
              %626 = sbr.rel target = $region86
            $region85: #{gpt_forward.20} parent=70 // pred_region
              _
            $region86: #{gpt_forward.20} parent=70 // pred_fallthru
              _
          $region71: #{gpt_forward.20} parent=66 // pred_fallthru
            _
          %627 = vnop
        $region67: #{gpt_forward.20} parent=50 // pred_fallthru
          _
      $region51: #{gpt_forward.20} parent=5 // pred_fallthru
        _
      %p628 = scmp.le.s32.totalorder 2, %s9
      // Predicated region
      $region87: #{gpt_forward.20} parent=5 // pred_check
        %p629 = pneg %p628
      $region88: #{gpt_forward.20} parent=5 // pred_check_branch
        %631 = sbr.rel (%p629) target = $region90
      $region89: #{gpt_forward.20} parent=5 // pred_region
        %s632 = ssub.s32 %s9, 2
        // Predicated region
        $region91: #{gpt_forward.20} parent=89 // pred_check
          %p633 = pneg %p141
        $region92: #{gpt_forward.20} parent=89 // pred_check_branch
          %635 = sbr.rel (%p633) target = $region94
        $region93: #{gpt_forward.20} parent=89 // pred_region
          %s636 = sand.u32 %s126, 1
          %s637 = sand.u32 %s126, 1
          %s638 = smul.addr %s637, 64
          %s639 = scalar_lea.vmem [#allocation4], %s638
        $region94: #{gpt_forward.20} parent=89 // pred_fallthru
          _
      $region90: #{gpt_forward.20} parent=5 // pred_fallthru
        _
    $region6: #{gpt_forward.20} parent=1 // loop_footer
      %s13 = sadd.s32 1, %s9
    $region7: #{gpt_forward.20} parent=1 // loop_footer_branch
      %8 = sbr.rel target = $region3
    $region8: #{gpt_forward.20} parent=1 // loop_exit
      _

// kernel: gpt_forward.21
$region0: #{gpt_forward.21}
  #allocation0 [shape = 'u32[]', space=smem, size = 0x4, offset = 0x4, fixed_abs, tag = 'smem constant byte address 0x4 - core index']
  #allocation1 [shape = 'u32[144,128]{1,0:T(1,128)}', space=vmem, size = 0x12000, scoped, tag = 'internal scratch']
  #allocation2 [shape = 'f32[32,128]{1,0:T(8,128)}', space=vmem, size = 0x4000, scoped, tag = 'scratch operand']
  %s0 = inlined_call_operand.vmem [shape: f32[32,1024], index: 0, kind: input, shape index: {}]
  %s1 = inlined_call_operand.vmem [shape: f32[1024,128], index: 1, kind: input, shape index: {}]
  %s2 = inlined_call_operand.vmem [shape: f32[1,128], index: 2, kind: input, shape index: {}]
  %s3 = inlined_call_operand.vmem [shape: f32[32,128], index: 3, kind: input, shape index: {}]
  %s4 = inlined_call_operand.vmem [shape: f32[32,128], index: 4, kind: output, shape index: {}]
  %s5 = sld [smem:[#allocation0]]
  $region80: #{gpt_forward.21} parent=0
    _
  %s7 = ssub.s32 1, %s5
  %s8 = scalar_select 0, %s7, %s5
  $region1: #{gpt_forward.21} parent=0
    #allocation3 [shape = 'u8[131072]{0}', space=vmem, size = 0x20000, scoped, tag = 'input window, operand 0']
    loop: start=0, step=1, limit=4
    $region2: #{gpt_forward.21} parent=1 // loop_pre_header
      _
    $region3: #{gpt_forward.21} parent=1 // loop_header
      %s10 = sphi 0, %s14
      %p11 = scmp.ge.s32.totalorder %s10, 4
      %s17 = sphi 0, %s36
      %s18 = sphi 0, %s32
      %s19 = sphi 0, %s28
      %s20 = sphi 0, %s17
      %s21 = sphi 0, %s18
      %s22 = sphi 0, %s19
      %s23 = sphi 0, %s20
      %s24 = sphi 0, %s21
      %s25 = sphi 0, %s22
      %s41 = sphi 0, %s43
      %s44 = sphi 0, %s41
      %s45 = sphi 0, %s44
      %s61 = sphi 0, %s45
      %s69 = sphi 0, %s71
      %s72 = sphi 0, %s69
      %s73 = sphi 0, %s72
      %s89 = sphi 0, %s73
      %s95 = sphi 0, %s97
      %s98 = sphi 0, %s95
      %s99 = sphi 0, %s98
      %s115 = sphi 0, %s99
      %s123 = sphi 0, %s125
      %s126 = sphi 0, %s123
      %s127 = sphi 0, %s126
      %s143 = sphi 0, %s127
      %s151 = sphi 0, %s153
      %s154 = sphi 0, %s151
      %s155 = sphi 0, %s154
      %s171 = sphi 0, %s155
    $region4: #{gpt_forward.21} parent=1 // loop_header_branch
      %13 = sbr.rel (%p11) target = $region8
    $region5: #{gpt_forward.21} parent=1 // loop_body
      %s15 = ssub.s32 %s10, 1
      %s16 = ssub.s32 %s10, 2
      %s26 = sadd.s32 1, %s19
      %p27 = scmp.ge.s32.totalorder %s26, 2
      %s28 = scalar_select %p27, 0, %s26
      %s29 = sadd.s32 1, %s18
      %s30 = scalar_select %p27, %s29, %s18
      %p31 = scmp.ge.s32.totalorder %s30, 1
      %s32 = scalar_select %p31, 0, %s30
      %s33 = sadd.s32 1, %s17
      %s34 = scalar_select %p31, %s33, %s17
      %p35 = scmp.ge.s32.totalorder %s34, 1
      %s36 = scalar_select %p35, 0, %s34
      %s37 = ssub.s32 %s17, %s36
      %s38 = ssub.s32 %s19, %s28
      %s39 = sor.u32 %s37, %s38
      %p40 = scmp.eq.s32.totalorder %s39, 0
      %s42 = sadd.s32 %s41, 1
      %s43 = scalar_select %p40, %s41, %s42
      %p46 = pneg %p40
      %p47 = scmp.eq.s32.totalorder %s10, 1
      %p48 = por %p46, %p47
      %p49 = scmp.ne.s32.totalorder %s41, %s44
      %p50 = scmp.eq.s32.totalorder %s10, 0
      %p51 = por %p49, %p50
      %p52 = scmp.ne.s32.totalorder %s41, %s44
      %p53 = scmp.eq.s32.totalorder %s15, 1
      %p54 = por %p52, %p53
      %p55 = scmp.ne.s32.totalorder %s44, %s45
      %p56 = scmp.eq.s32.totalorder %s15, 0
      %p57 = por %p55, %p56
      %p58 = scmp.ne.s32.totalorder %s44, %s45
      %p59 = scmp.eq.s32.totalorder %s16, 1
      %p60 = por %p58, %p59
      %p62 = scmp.ne.s32.totalorder %s45, %s61
      %p63 = scmp.eq.s32.totalorder %s16, 0
      %p64 = por %p62, %p63
      %s65 = ssub.s32 %s19, %s28
      %s66 = ssub.s32 %s18, %s32
      %s67 = sor.u32 %s65, %s66
      %p68 = scmp.eq.s32.totalorder %s67, 0
      %s70 = sadd.s32 %s69, 1
      %s71 = scalar_select %p68, %s69, %s70
      %p74 = pneg %p68
      %p75 = scmp.eq.s32.totalorder %s10, 1
      %p76 = por %p74, %p75
      %p77 = scmp.ne.s32.totalorder %s69, %s72
      %p78 = scmp.eq.s32.totalorder %s10, 0
      %p79 = por %p77, %p78
      %p80 = scmp.ne.s32.totalorder %s69, %s72
      %p81 = scmp.eq.s32.totalorder %s15, 1
      %p82 = por %p80, %p81
      %p83 = scmp.ne.s32.totalorder %s72, %s73
      %p84 = scmp.eq.s32.totalorder %s15, 0
      %p85 = por %p83, %p84
      %p86 = scmp.ne.s32.totalorder %s72, %s73
      %p87 = scmp.eq.s32.totalorder %s16, 1
      %p88 = por %p86, %p87
      %p90 = scmp.ne.s32.totalorder %s73, %s89
      %p91 = scmp.eq.s32.totalorder %s16, 0
      %p92 = por %p90, %p91
      %s93 = ssub.s32 %s18, %s32
      %p94 = scmp.eq.s32.totalorder %s93, 0
      %s96 = sadd.s32 %s95, 1
      %s97 = scalar_select %p94, %s95, %s96
      %p100 = pneg %p94
      %p101 = scmp.eq.s32.totalorder %s10, 1
      %p102 = por %p100, %p101
      %p103 = scmp.ne.s32.totalorder %s95, %s98
      %p104 = scmp.eq.s32.totalorder %s10, 0
      %p105 = por %p103, %p104
      %p106 = scmp.ne.s32.totalorder %s95, %s98
      %p107 = scmp.eq.s32.totalorder %s15, 1
      %p108 = por %p106, %p107
      %p109 = scmp.ne.s32.totalorder %s98, %s99
      %p110 = scmp.eq.s32.totalorder %s15, 0
      %p111 = por %p109, %p110
      %p112 = scmp.ne.s32.totalorder %s98, %s99
      %p113 = scmp.eq.s32.totalorder %s16, 1
      %p114 = por %p112, %p113
      %p116 = scmp.ne.s32.totalorder %s99, %s115
      %p117 = scmp.eq.s32.totalorder %s16, 0
      %p118 = por %p116, %p117
      %s119 = ssub.s32 %s17, %s36
      %s120 = ssub.s32 %s18, %s32
      %s121 = sor.u32 %s119, %s120
      %p122 = scmp.eq.s32.totalorder %s121, 0
      %s124 = sadd.s32 %s123, 1
      %s125 = scalar_select %p122, %s123, %s124
      %p128 = pneg %p122
      %p129 = scmp.eq.s32.totalorder %s10, 1
      %p130 = por %p128, %p129
      %p131 = scmp.ne.s32.totalorder %s123, %s126
      %p132 = scmp.eq.s32.totalorder %s10, 0
      %p133 = por %p131, %p132
      %p134 = scmp.ne.s32.totalorder %s123, %s126
      %p135 = scmp.eq.s32.totalorder %s15, 1
      %p136 = por %p134, %p135
      %p137 = scmp.ne.s32.totalorder %s126, %s127
      %p138 = scmp.eq.s32.totalorder %s15, 0
      %p139 = por %p137, %p138
      %p140 = scmp.ne.s32.totalorder %s126, %s127
      %p141 = scmp.eq.s32.totalorder %s16, 1
      %p142 = por %p140, %p141
      %p144 = scmp.ne.s32.totalorder %s127, %s143
      %p145 = scmp.eq.s32.totalorder %s16, 0
      %p146 = por %p144, %p145
      %s147 = ssub.s32 %s17, %s36
      %s148 = ssub.s32 %s18, %s32
      %s149 = sor.u32 %s147, %s148
      %p150 = scmp.eq.s32.totalorder %s149, 0
      %s152 = sadd.s32 %s151, 1
      %s153 = scalar_select %p150, %s151, %s152
      %p156 = pneg %p150
      %p157 = scmp.eq.s32.totalorder %s10, 1
      %p158 = por %p156, %p157
      %p159 = scmp.ne.s32.totalorder %s151, %s154
      %p160 = scmp.eq.s32.totalorder %s10, 0
      %p161 = por %p159, %p160
      %p162 = scmp.ne.s32.totalorder %s151, %s154
      %p163 = scmp.eq.s32.totalorder %s15, 1
      %p164 = por %p162, %p163
      %p165 = scmp.ne.s32.totalorder %s154, %s155
      %p166 = scmp.eq.s32.totalorder %s15, 0
      %p167 = por %p165, %p166
      %p168 = scmp.ne.s32.totalorder %s154, %s155
      %p169 = scmp.eq.s32.totalorder %s16, 1
      %p170 = por %p168, %p169
      %p172 = scmp.ne.s32.totalorder %s155, %s171
      %p173 = scmp.eq.s32.totalorder %s16, 0
      %p174 = por %p172, %p173
      %p175 = scmp.le.s32.totalorder 1, %s10
      %p176 = scmp.lt.s32.totalorder %s10, 3
      %p177 = pnand %p175, %p176
      %p178 = pneg %p177
      // Predicated region
      $region9: #{gpt_forward.21} parent=5 // pred_check
        _
      $region10: #{gpt_forward.21} parent=5 // pred_check_branch
        %180 = sbr.rel (%p177) target = $region12
      $region11: #{gpt_forward.21} parent=5 // pred_region
        %s181 = ssub.s32 %s10, 1
        // Predicated region
        $region13: #{gpt_forward.21} parent=11 // pred_check
          %p182 = pneg %p111
        $region14: #{gpt_forward.21} parent=11 // pred_check_branch
          %184 = sbr.rel (%p182) target = $region16
        $region15: #{gpt_forward.21} parent=11 // pred_region
          %p185 = scmp.lt.s32.totalorder %s21, 0
          %s186 = scalar_select %p185, %s21, 0
          %s187 = scalar_lea.vmem %s2, %s186
        $region16: #{gpt_forward.21} parent=11 // pred_fallthru
          _
        // Predicated region
        $region17: #{gpt_forward.21} parent=11 // pred_check
          %p188 = pneg %p139
        $region18: #{gpt_forward.21} parent=11 // pred_check_branch
          %190 = sbr.rel (%p188) target = $region20
        $region19: #{gpt_forward.21} parent=11 // pred_region
          %s191 = smul.u32 4, %s20
          %p192 = scmp.lt.s32.totalorder %s191, 3
          %s193 = scalar_select %p192, %s191, 3
          %p194 = scmp.lt.s32.totalorder %s21, 0
          %s195 = scalar_select %p194, %s21, 0
          %s196 = sadd.s32 %s195, %s193
          %s197 = smul.addr %s196, 8
          %s198 = scalar_lea.vmem %s3, %s197
          %s199 = smul.u32 4, %s20
        $region20: #{gpt_forward.21} parent=11 // pred_fallthru
          _
      $region12: #{gpt_forward.21} parent=5 // pred_fallthru
        _
      %p200 = scmp.lt.s32.totalorder %s10, 2
      // Predicated region
      $region21: #{gpt_forward.21} parent=5 // pred_check
        %p201 = pneg %p200
      $region22: #{gpt_forward.21} parent=5 // pred_check_branch
        %203 = sbr.rel (%p201) target = $region24
      $region23: #{gpt_forward.21} parent=5 // pred_region
        // Predicated region
        $region25: #{gpt_forward.21} parent=23 // pred_check
          %p204 = pneg %p51
        $region26: #{gpt_forward.21} parent=23 // pred_check_branch
          %206 = sbr.rel (%p204) target = $region28
        $region27: #{gpt_forward.21} parent=23 // pred_region
          %s207 = sand.u32 %s41, 1
          %s208 = sand.u32 %s41, 1
          %s209 = smul.addr %s208, 128
          %s210 = scalar_lea.vmem [#allocation3], %s209
          %s211 = smul.u32 4, %s17
          %s212 = smul.u32 4, %s19
          %s213 = smul.addr %s211, 8
          %s214 = sadd.s32 %s212, %s213
          %s215 = smul.addr %s214, 8
          %s216 = scalar_lea.vmem %s0, %s215
          // Predicated region
          $region29: #{gpt_forward.21} parent=27 // pred_check
            _
          $region30: #{gpt_forward.21} parent=27 // pred_check_branch
            %218 = sbr.rel (0) target = $region32
          $region31: #{gpt_forward.21} parent=27 // pred_region
            // Predicated region
            $region33: #{gpt_forward.21} parent=31 // pred_check
              _
            $region34: #{gpt_forward.21} parent=31 // pred_check_branch
              %220 = sbr.rel (0) target = $region36
            $region35: #{gpt_forward.21} parent=31 // pred_region
              loop: start=0, step=1, limit=1
              $region37: #{gpt_forward.21} parent=35 // loop_pre_header
                _
              $region38: #{gpt_forward.21} parent=35 // loop_header
                %s222 = sphi 0, %s226
                %p223 = scmp.ge.s32.totalorder %s222, 1
                %s227 = sphi %s216, %s216
                %s228 = sphi %s210, %s210
              $region39: #{gpt_forward.21} parent=35 // loop_header_branch
                %225 = sbr.rel (%p223) target = $region43
              $region40: #{gpt_forward.21} parent=35 // loop_body
                %v229 = vld [vmem:[%s227] sm:$0xff]
                %230 = vst [vmem:[%s228] sm:$0xff] %v229
                %v231 = vld [vmem:[%s227 + $0x8] sm:$0xff]
                %232 = vst [vmem:[%s228 + $0x8] sm:$0xff] %v231
                %v233 = vld [vmem:[%s227 + $0x10] sm:$0xff]
                %234 = vst [vmem:[%s228 + $0x10] sm:$0xff] %v233
                %v235 = vld [vmem:[%s227 + $0x18] sm:$0xff]
                %236 = vst [vmem:[%s228 + $0x18] sm:$0xff] %v235
                %v237 = vld [vmem:[%s227 + $0x40] sm:$0xff]
                %238 = vst [vmem:[%s228 + $0x20] sm:$0xff] %v237
                %v239 = vld [vmem:[%s227 + $0x48] sm:$0xff]
                %240 = vst [vmem:[%s228 + $0x28] sm:$0xff] %v239
                %v241 = vld [vmem:[%s227 + $0x50] sm:$0xff]
                %242 = vst [vmem:[%s228 + $0x30] sm:$0xff] %v241
                %v243 = vld [vmem:[%s227 + $0x58] sm:$0xff]
                %244 = vst [vmem:[%s228 + $0x38] sm:$0xff] %v243
                %v245 = vld [vmem:[%s227 + $0x80] sm:$0xff]
                %246 = vst [vmem:[%s228 + $0x40] sm:$0xff] %v245
                %v247 = vld [vmem:[%s227 + $0x88] sm:$0xff]
                %248 = vst [vmem:[%s228 + $0x48] sm:$0xff] %v247
                %v249 = vld [vmem:[%s227 + $0x90] sm:$0xff]
                %250 = vst [vmem:[%s228 + $0x50] sm:$0xff] %v249
                %v251 = vld [vmem:[%s227 + $0x98] sm:$0xff]
                %252 = vst [vmem:[%s228 + $0x58] sm:$0xff] %v251
                %v253 = vld [vmem:[%s227 + $0xc0] sm:$0xff]
                %254 = vst [vmem:[%s228 + $0x60] sm:$0xff] %v253
                %v255 = vld [vmem:[%s227 + $0xc8] sm:$0xff]
                %256 = vst [vmem:[%s228 + $0x68] sm:$0xff] %v255
                %v257 = vld [vmem:[%s227 + $0xd0] sm:$0xff]
                %258 = vst [vmem:[%s228 + $0x70] sm:$0xff] %v257
                %v259 = vld [vmem:[%s227 + $0xd8] sm:$0xff]
                %260 = vst [vmem:[%s228 + $0x78] sm:$0xff] %v259
              $region41: #{gpt_forward.21} parent=35 // loop_footer
                %s226 = sadd.s32 1, %s222
              $region42: #{gpt_forward.21} parent=35 // loop_footer_branch
                %221 = sbr.rel target = $region38
              $region43: #{gpt_forward.21} parent=35 // loop_exit
                _
            $region36: #{gpt_forward.21} parent=31 // pred_fallthru
              _
            // Predicated region
            $region44: #{gpt_forward.21} parent=31 // pred_check
              _
            $region45: #{gpt_forward.21} parent=31 // pred_check_branch
              %262 = sbr.rel target = $region47
            $region46: #{gpt_forward.21} parent=31 // pred_region
              _
            $region47: #{gpt_forward.21} parent=31 // pred_fallthru
              _
          $region32: #{gpt_forward.21} parent=27 // pred_fallthru
            _
          %263 = vnop
        $region28: #{gpt_forward.21} parent=23 // pred_fallthru
          _
        // Predicated region
        $region48: #{gpt_forward.21} parent=23 // pred_check
          %p264 = pneg %p79
        $region49: #{gpt_forward.21} parent=23 // pred_check_branch
          %266 = sbr.rel (%p264) target = $region51
        $region50: #{gpt_forward.21} parent=23 // pred_region
          %s267 = smul.u32 64, %s19
          %p268 = scmp.lt.s32.totalorder %s267, 127
          %s269 = scalar_select %p268, %s267, 127
          %p270 = scmp.lt.s32.totalorder %s18, 0
          %s271 = scalar_select %p270, %s18, 0
          %s272 = sadd.s32 %s271, %s269
          %s273 = smul.addr %s272, 8
          %s274 = scalar_lea.vmem %s1, %s273
          %s275 = smul.u32 64, %s19
        $region51: #{gpt_forward.21} parent=23 // pred_fallthru
          _
      $region24: #{gpt_forward.21} parent=5 // pred_fallthru
        _
      %p276 = scmp.le.s32.totalorder 1, %s10
      %p277 = scmp.lt.s32.totalorder %s10, 3
      %p278 = pnand %p276, %p277
      %p279 = pneg %p278
      // Predicated region
      $region52: #{gpt_forward.21} parent=5 // pred_check
        _
      $region53: #{gpt_forward.21} parent=5 // pred_check_branch
        %281 = sbr.rel (%p278) target = $region55
      $region54: #{gpt_forward.21} parent=5 // pred_region
        %s282 = ssub.s32 %s10, 1
        %s283 = sand.u32 %s44, 1
        %s284 = sand.u32 %s44, 1
        %s285 = smul.addr %s284, 128
        %s286 = scalar_lea.vmem [#allocation3], %s285
        // Predicated region
        $region56: #{gpt_forward.21} parent=54 // pred_check
          %p287 = pneg %p57
        $region57: #{gpt_forward.21} parent=54 // pred_check_branch
          %289 = sbr.rel (%p287) target = $region59
        $region58: #{gpt_forward.21} parent=54 // pred_region
          _
        $region59: #{gpt_forward.21} parent=54 // pred_fallthru
          _
        %s290 = sand.u32 %s44, 1
        %s291 = sand.u32 %s44, 1
        %s292 = smul.addr %s291, 128
        %s293 = scalar_lea.vmem [#allocation3], %s292
        %p294 = pneg %p57
        %p295 = pneg %p54
        %s296 = smul.u32 64, %s22
        %p297 = scmp.lt.s32.totalorder %s296, 127
        %s298 = scalar_select %p297, %s296, 127
        %p299 = scmp.lt.s32.totalorder %s21, 0
        %s300 = scalar_select %p299, %s21, 0
        %s301 = sadd.s32 %s300, %s298
        %s302 = smul.addr %s301, 8
        %s303 = scalar_lea.vmem %s1, %s302
        %p304 = pneg %p85
        %p305 = pneg %p82
        %p306 = scmp.lt.s32.totalorder %s21, 0
        %s307 = scalar_select %p306, %s21, 0
        %s308 = scalar_lea.vmem %s2, %s307
        %p309 = pneg %p111
        %p310 = pneg %p108
        %s311 = smul.u32 4, %s20
        %p312 = scmp.lt.s32.totalorder %s311, 3
        %s313 = scalar_select %p312, %s311, 3
        %p314 = scmp.lt.s32.totalorder %s21, 0
        %s315 = scalar_select %p314, %s21, 0
        %s316 = sadd.s32 %s315, %s313
        %s317 = smul.addr %s316, 8
        %s318 = scalar_lea.vmem %s3, %s317
        %p319 = pneg %p139
        %p320 = pneg %p136
        %p321 = pneg %p167
        %p322 = pneg %p164
        %s323 = smul.u32 4, %s20
        %p324 = scmp.lt.s32.totalorder %s323, 3
        %s325 = scalar_select %p324, %s323, 3
        %p326 = scmp.lt.s32.totalorder %s21, 0
        %s327 = scalar_select %p326, %s21, 0
        %s328 = sadd.s32 %s327, %s325
        %s329 = smul.addr %s328, 8
        %s330 = scalar_lea.vmem %s4, %s329
        %s331 = smul.u32 4, %s20
        %s332 = smul.u32 4, %s22
        %s333 = smul.u32 64, %s22
        %p334 = scmp.lt.s32.totalorder %s333, 127
        %s335 = scalar_select %p334, %s333, 127
        %p336 = scmp.lt.s32.totalorder %s21, 0
        %s337 = scalar_select %p336, %s21, 0
        %s338 = sadd.s32 %s337, %s335
        %s339 = smul.addr %s338, 8
        %s340 = scalar_lea.vmem %s1, %s339
        %s341 = smul.u32 64, %s22
        %p342 = scmp.lt.s32.totalorder %s21, 0
        %s343 = scalar_select %p342, %s21, 0
        %s344 = scalar_lea.vmem %s2, %s343
        %s345 = smul.u32 4, %s20
        %p346 = scmp.lt.s32.totalorder %s345, 3
        %s347 = scalar_select %p346, %s345, 3
        %p348 = scmp.lt.s32.totalorder %s21, 0
        %s349 = scalar_select %p348, %s21, 0
        %s350 = sadd.s32 %s349, %s347
        %s351 = smul.addr %s350, 8
        %s352 = scalar_lea.vmem %s3, %s351
        %s353 = smul.u32 4, %s20
        %s354 = smul.u32 4, %s20
        %p355 = scmp.lt.s32.totalorder %s354, 3
        %s356 = scalar_select %p355, %s354, 3
        %p357 = scmp.lt.s32.totalorder %s21, 0
        %s358 = scalar_select %p357, %s21, 0
        %s359 = sadd.s32 %s358, %s356
        %s360 = smul.addr %s359, 8
        %s361 = scalar_lea.vmem %s4, %s360
        %s362 = smul.u32 4, %s20
        %p364 = scmp.eq.s32.totalorder %s22, 0
        // Predicated region
        $region60: #{gpt_forward.21} parent=54 // pred_check
          %p365 = pneg %p364
        $region61: #{gpt_forward.21} parent=54 // pred_check_branch
          %367 = sbr.rel (%p365) target = $region63
        $region62: #{gpt_forward.21} parent=54 // pred_region
          %368 = vst [vmem:[#allocation2] sm:$0xff] 0.0
          %369 = vst [vmem:[#allocation2 + $0x8] sm:$0xff] 0.0
          %370 = vst [vmem:[#allocation2 + $0x10] sm:$0xff] 0.0
          %371 = vst [vmem:[#allocation2 + $0x18] sm:$0xff] 0.0
        $region63: #{gpt_forward.21} parent=54 // pred_fallthru
          _
        %v372 = vld [vmem:[%s286] sm:$0xff]
        %v373 = vld [vmem:[%s286 + $0x8] sm:$0xff]
        %v374 = vld [vmem:[%s286 + $0x10] sm:$0xff]
        %v375 = vld [vmem:[%s286 + $0x18] sm:$0xff]
        %v376 = vld [vmem:[%s286 + $0x20] sm:$0xff]
        %v377 = vld [vmem:[%s286 + $0x28] sm:$0xff]
        %v378 = vld [vmem:[%s286 + $0x30] sm:$0xff]
        %v379 = vld [vmem:[%s286 + $0x38] sm:$0xff]
        %v380 = vld [vmem:[%s286 + $0x40] sm:$0xff]
        %v381 = vld [vmem:[%s286 + $0x48] sm:$0xff]
        %v382 = vld [vmem:[%s286 + $0x50] sm:$0xff]
        %v383 = vld [vmem:[%s286 + $0x58] sm:$0xff]
        %v384 = vld [vmem:[%s286 + $0x60] sm:$0xff]
        %v385 = vld [vmem:[%s286 + $0x68] sm:$0xff]
        %v386 = vld [vmem:[%s286 + $0x70] sm:$0xff]
        %v387 = vld [vmem:[%s286 + $0x78] sm:$0xff]
        %v388 = vld [vmem:[#allocation2] sm:$0xff]
        %v389 = vld [vmem:[#allocation2 + $0x8] sm:$0xff]
        %v390 = vld [vmem:[#allocation2 + $0x10] sm:$0xff]
        %v391 = vld [vmem:[#allocation2 + $0x18] sm:$0xff]
        %v392 = vpack.c.bf16 %v376, %v372
        %v393 = vpack.c.bf16 %v377, %v373
        %v394 = vpack.c.bf16 %v378, %v374
        %v395 = vpack.c.bf16 %v379, %v375
        %v396 = vpack.c.bf16 %v384, %v380
        %v397 = vpack.c.bf16 %v385, %v381
        %v398 = vpack.c.bf16 %v386, %v382
        %v399 = vpack.c.bf16 %v387, %v383
        %v400 = vld [vmem:[%s340] sm:$0xff]
        %v401 = vld [vmem:[%s340 + $0x8] sm:$0xff]
        %v402 = vld [vmem:[%s340 + $0x10] sm:$0xff]
        %v403 = vld [vmem:[%s340 + $0x18] sm:$0xff]
        %v404 = vld [vmem:[%s340 + $0x20] sm:$0xff]
        %v405 = vld [vmem:[%s340 + $0x28] sm:$0xff]
        %v406 = vld [vmem:[%s340 + $0x30] sm:$0xff]
        %v407 = vld [vmem:[%s340 + $0x38] sm:$0xff]
        %v408 = vld [vmem:[%s340 + $0x40] sm:$0xff]
        %v409 = vld [vmem:[%s340 + $0x48] sm:$0xff]
        %v410 = vld [vmem:[%s340 + $0x50] sm:$0xff]
        %v411 = vld [vmem:[%s340 + $0x58] sm:$0xff]
        %v412 = vld [vmem:[%s340 + $0x60] sm:$0xff]
        %v413 = vld [vmem:[%s340 + $0x68] sm:$0xff]
        %v414 = vld [vmem:[%s340 + $0x70] sm:$0xff]
        %v415 = vld [vmem:[%s340 + $0x78] sm:$0xff]
        %v416 = vld [vmem:[%s340 + $0x80] sm:$0xff]
        %v417 = vld [vmem:[%s340 + $0x88] sm:$0xff]
        %v418 = vld [vmem:[%s340 + $0x90] sm:$0xff]
        %v419 = vld [vmem:[%s340 + $0x98] sm:$0xff]
        %v420 = vld [vmem:[%s340 + $0xa0] sm:$0xff]
        %v421 = vld [vmem:[%s340 + $0xa8] sm:$0xff]
        %v422 = vld [vmem:[%s340 + $0xb0] sm:$0xff]
        %v423 = vld [vmem:[%s340 + $0xb8] sm:$0xff]
        %v424 = vld [vmem:[%s340 + $0xc0] sm:$0xff]
        %v425 = vld [vmem:[%s340 + $0xc8] sm:$0xff]
        %v426 = vld [vmem:[%s340 + $0xd0] sm:$0xff]
        %v427 = vld [vmem:[%s340 + $0xd8] sm:$0xff]
        %v428 = vld [vmem:[%s340 + $0xe0] sm:$0xff]
        %v429 = vld [vmem:[%s340 + $0xe8] sm:$0xff]
        %v430 = vld [vmem:[%s340 + $0xf0] sm:$0xff]
        %v431 = vld [vmem:[%s340 + $0xf8] sm:$0xff]
        %v432 = vld [vmem:[%s340 + $0x100] sm:$0xff]
        %v433 = vld [vmem:[%s340 + $0x108] sm:$0xff]
        %v434 = vld [vmem:[%s340 + $0x110] sm:$0xff]
        %v435 = vld [vmem:[%s340 + $0x118] sm:$0xff]
        %v436 = vld [vmem:[%s340 + $0x120] sm:$0xff]
        %v437 = vld [vmem:[%s340 + $0x128] sm:$0xff]
        %v438 = vld [vmem:[%s340 + $0x130] sm:$0xff]
        %v439 = vld [vmem:[%s340 + $0x138] sm:$0xff]
        %v440 = vld [vmem:[%s340 + $0x140] sm:$0xff]
        %v441 = vld [vmem:[%s340 + $0x148] sm:$0xff]
        %v442 = vld [vmem:[%s340 + $0x150] sm:$0xff]
        %v443 = vld [vmem:[%s340 + $0x158] sm:$0xff]
        %v444 = vld [vmem:[%s340 + $0x160] sm:$0xff]
        %v445 = vld [vmem:[%s340 + $0x168] sm:$0xff]
        %v446 = vld [vmem:[%s340 + $0x170] sm:$0xff]
        %v447 = vld [vmem:[%s340 + $0x178] sm:$0xff]
        %v448 = vld [vmem:[%s340 + $0x180] sm:$0xff]
        %v449 = vld [vmem:[%s340 + $0x188] sm:$0xff]
        %v450 = vld [vmem:[%s340 + $0x190] sm:$0xff]
        %v451 = vld [vmem:[%s340 + $0x198] sm:$0xff]
        %v452 = vld [vmem:[%s340 + $0x1a0] sm:$0xff]
        %v453 = vld [vmem:[%s340 + $0x1a8] sm:$0xff]
        %v454 = vld [vmem:[%s340 + $0x1b0] sm:$0xff]
        %v455 = vld [vmem:[%s340 + $0x1b8] sm:$0xff]
        %v456 = vld [vmem:[%s340 + $0x1c0] sm:$0xff]
        %v457 = vld [vmem:[%s340 + $0x1c8] sm:$0xff]
        %v458 = vld [vmem:[%s340 + $0x1d0] sm:$0xff]
        %v459 = vld [vmem:[%s340 + $0x1d8] sm:$0xff]
        %v460 = vld [vmem:[%s340 + $0x1e0] sm:$0xff]
        %v461 = vld [vmem:[%s340 + $0x1e8] sm:$0xff]
        %v462 = vld [vmem:[%s340 + $0x1f0] sm:$0xff]
        %v463 = vld [vmem:[%s340 + $0x1f8] sm:$0xff]
        %v464 = vpack.c.bf16 %v401, %v400
        %v465 = vpack.c.bf16 %v403, %v402
        %v466 = vpack.c.bf16 %v405, %v404
        %v467 = vpack.c.bf16 %v407, %v406
        %v468 = vpack.c.bf16 %v409, %v408
        %v469 = vpack.c.bf16 %v411, %v410
        %v470 = vpack.c.bf16 %v413, %v412
        %v471 = vpack.c.bf16 %v415, %v414
        %v472 = vpack.c.bf16 %v417, %v416
        %v473 = vpack.c.bf16 %v419, %v418
        %v474 = vpack.c.bf16 %v421, %v420
        %v475 = vpack.c.bf16 %v423, %v422
        %v476 = vpack.c.bf16 %v425, %v424
        %v477 = vpack.c.bf16 %v427, %v426
        %v478 = vpack.c.bf16 %v429, %v428
        %v479 = vpack.c.bf16 %v431, %v430
        %v480 = vpack.c.bf16 %v433, %v432
        %v481 = vpack.c.bf16 %v435, %v434
        %v482 = vpack.c.bf16 %v437, %v436
        %v483 = vpack.c.bf16 %v439, %v438
        %v484 = vpack.c.bf16 %v441, %v440
        %v485 = vpack.c.bf16 %v443, %v442
        %v486 = vpack.c.bf16 %v445, %v444
        %v487 = vpack.c.bf16 %v447, %v446
        %v488 = vpack.c.bf16 %v449, %v448
        %v489 = vpack.c.bf16 %v451, %v450
        %v490 = vpack.c.bf16 %v453, %v452
        %v491 = vpack.c.bf16 %v455, %v454
        %v492 = vpack.c.bf16 %v457, %v456
        %v493 = vpack.c.bf16 %v459, %v458
        %v494 = vpack.c.bf16 %v461, %v460
        %v495 = vpack.c.bf16 %v463, %v462
        %496 = vmatprep.subr.bf16.mxu0 0
        %497 = vmatpush1.bf16.msra.mxu0 %v471
        %498 = vmatprep.subr.bf16.mxu0 0
        %499 = vmatpush1.bf16.msra.mxu0 %v470
        %500 = vmatprep.subr.bf16.mxu0 0
        %501 = vmatpush1.bf16.msra.mxu0 %v469
        %502 = vmatprep.subr.bf16.mxu0 0
        %503 = vmatpush1.bf16.msra.mxu0 %v468
        %504 = vmatprep.subr.bf16.mxu0 0
        %505 = vmatpush1.bf16.msra.mxu0 %v467
        %506 = vmatprep.subr.bf16.mxu0 0
        %507 = vmatpush1.bf16.msra.mxu0 %v466
        %508 = vmatprep.subr.bf16.mxu0 0
        %509 = vmatpush1.bf16.msra.mxu0 %v465
        %510 = vmatprep.subr.bf16.mxu0 0
        %511 = vmatpush1.bf16.msra.mxu0 %v464
        %512 = vmatprep.subr.bf16.mxu0 0
        %513 = vmatpush2.bf16.msra.mxu0 %v479
        %514 = vmatprep.subr.bf16.mxu0 0
        %515 = vmatpush2.bf16.msra.mxu0 %v478
        %516 = vmatprep.subr.bf16.mxu0 0
        %517 = vmatpush2.bf16.msra.mxu0 %v477
        %518 = vmatprep.subr.bf16.mxu0 0
        %519 = vmatpush2.bf16.msra.mxu0 %v476
        %520 = vmatprep.subr.bf16.mxu0 0
        %521 = vmatpush2.bf16.msra.mxu0 %v475
        %522 = vmatprep.subr.bf16.mxu0 0
        %523 = vmatpush2.bf16.msra.mxu0 %v474
        %524 = vmatprep.subr.bf16.mxu0 0
        %525 = vmatpush2.bf16.msra.mxu0 %v473
        %526 = vmatprep.subr.bf16.mxu0 0
        %527 = vmatpush2.bf16.msra.mxu0 %v472
        %528 = vmatprep.mubr.bf16.mxu0 %v393
        %529 = vmatmul.mubr.bf16.gmra.mxu0 %v392
        %v530 = vpop.f32.mrf.mxu0
        %v531 = vadd.f32 0.0, %v530
        %v532 = vpop.f32.mrf.mxu0
        %v533 = vpop.f32.mrf.mxu0
        %v534 = vadd.f32 0.0, %v533
        %v535 = vpop.f32.mrf.mxu0
        %536 = vmatprep.mubr.bf16.mxu0 %v397
        %537 = vmatmul.mubr.bf16.gmra.mxu0 %v396
        %v538 = vpop.f32.mrf.mxu0
        %v539 = vadd.f32 0.0, %v538
        %v540 = vpop.f32.mrf.mxu0
        %v541 = vpop.f32.mrf.mxu0
        %v542 = vadd.f32 0.0, %v541
        %v543 = vpop.f32.mrf.mxu0
        %544 = vdwg.mxu0
        %545 = vmatprep.subr.bf16.mxu0 0
        %546 = vmatpush1.bf16.msra.mxu0 %v487
        %547 = vmatprep.subr.bf16.mxu0 0
        %548 = vmatpush1.bf16.msra.mxu0 %v486
        %549 = vmatprep.subr.bf16.mxu0 0
        %550 = vmatpush1.bf16.msra.mxu0 %v485
        %551 = vmatprep.subr.bf16.mxu0 0
        %552 = vmatpush1.bf16.msra.mxu0 %v484
        %553 = vmatprep.subr.bf16.mxu0 0
        %554 = vmatpush1.bf16.msra.mxu0 %v483
        %555 = vmatprep.subr.bf16.mxu0 0
        %556 = vmatpush1.bf16.msra.mxu0 %v482
        %557 = vmatprep.subr.bf16.mxu0 0
        %558 = vmatpush1.bf16.msra.mxu0 %v481
        %559 = vmatprep.subr.bf16.mxu0 0
        %560 = vmatpush1.bf16.msra.mxu0 %v480
        %561 = vmatprep.subr.bf16.mxu0 0
        %562 = vmatpush2.bf16.msra.mxu0 %v495
        %563 = vmatprep.subr.bf16.mxu0 0
        %564 = vmatpush2.bf16.msra.mxu0 %v494
        %565 = vmatprep.subr.bf16.mxu0 0
        %566 = vmatpush2.bf16.msra.mxu0 %v493
        %567 = vmatprep.subr.bf16.mxu0 0
        %568 = vmatpush2.bf16.msra.mxu0 %v492
        %569 = vmatprep.subr.bf16.mxu0 0
        %570 = vmatpush2.bf16.msra.mxu0 %v491
        %571 = vmatprep.subr.bf16.mxu0 0
        %572 = vmatpush2.bf16.msra.mxu0 %v490
        %573 = vmatprep.subr.bf16.mxu0 0
        %574 = vmatpush2.bf16.msra.mxu0 %v489
        %575 = vmatprep.subr.bf16.mxu0 0
        %576 = vmatpush2.bf16.msra.mxu0 %v488
        %577 = vmatprep.mubr.bf16.mxu0 %v395
        %578 = vmatmul.mubr.bf16.gmra.mxu0 %v394
        %v579 = vpop.f32.mrf.mxu0
        %v580 = vadd.f32 %v531, %v579
        %v581 = vpop.f32.mrf.mxu0
        %v582 = vpop.f32.mrf.mxu0
        %v583 = vadd.f32 %v534, %v582
        %v584 = vpop.f32.mrf.mxu0
        %585 = vmatprep.mubr.bf16.mxu0 %v399
        %586 = vmatmul.mubr.bf16.gmra.mxu0 %v398
        %v587 = vpop.f32.mrf.mxu0
        %v588 = vadd.f32 %v539, %v587
        %v589 = vpop.f32.mrf.mxu0
        %v590 = vpop.f32.mrf.mxu0
        %v591 = vadd.f32 %v542, %v590
        %v592 = vpop.f32.mrf.mxu0
        %593 = vdwg.mxu0
        %v594 = vadd.f32 %v388, %v580
        %v595 = vadd.f32 %v389, %v583
        %v596 = vadd.f32 %v390, %v588
        %v597 = vadd.f32 %v391, %v591
        %598 = vst [vmem:[#allocation2] sm:$0xff] %v594
        %599 = vst [vmem:[#allocation2 + $0x8] sm:$0xff] %v595
        %600 = vst [vmem:[#allocation2 + $0x10] sm:$0xff] %v596
        %601 = vst [vmem:[#allocation2 + $0x18] sm:$0xff] %v597
        %p602 = scmp.eq.s32.totalorder %s22, 1
        // Predicated region
        $region64: #{gpt_forward.21} parent=54 // pred_check
          %p603 = pneg %p602
        $region65: #{gpt_forward.21} parent=54 // pred_check_branch
          %605 = sbr.rel (%p603) target = $region67
        $region66: #{gpt_forward.21} parent=54 // pred_region
          %v606 = vld [vmem:[#allocation2] sm:$0xff]
          %v607 = vld [vmem:[#allocation2 + $0x8] sm:$0xff]
          %v608 = vld [vmem:[#allocation2 + $0x10] sm:$0xff]
          %v609 = vld [vmem:[#allocation2 + $0x18] sm:$0xff]
          %v610 = vld [vmem:[%s344] sm:$0x1]
          %v612 = vlaneseq
          %v613 = vshrl.u32 %v612, 7
          %v614 = vsub.s32 0, %v613
          %v615 = vrot.slane %v610, %v614
          %v617 = vadd.f32 %v606, %v615
          %v618 = vadd.f32 %v607, %v615
          %v619 = vadd.f32 %v608, %v615
          %v620 = vadd.f32 %v609, %v615
          %v621 = vld [vmem:[%s352] sm:$0xff]
          %v622 = vld [vmem:[%s352 + $0x8] sm:$0xff]
          %v623 = vld [vmem:[%s352 + $0x10] sm:$0xff]
          %v624 = vld [vmem:[%s352 + $0x18] sm:$0xff]
          %v625 = vadd.f32 %v617, %v621
          %v626 = vadd.f32 %v618, %v622
          %v627 = vadd.f32 %v619, %v623
          %v628 = vadd.f32 %v620, %v624
          %629 = vst [vmem:[%s361] sm:$0xff] %v625
          %630 = vst [vmem:[%s361 + $0x8] sm:$0xff] %v626
          %631 = vst [vmem:[%s361 + $0x10] sm:$0xff] %v627
          %632 = vst [vmem:[%s361 + $0x18] sm:$0xff] %v628
        $region67: #{gpt_forward.21} parent=54 // pred_fallthru
          _
        %s633 = smul.u32 4, %s20
        %p634 = scmp.lt.s32.totalorder %s633, 3
        %s635 = scalar_select %p634, %s633, 3
        %p636 = scmp.lt.s32.totalorder %s21, 0
        %s637 = scalar_select %p636, %s21, 0
        %s638 = sadd.s32 %s637, %s635
        %s639 = smul.addr %s638, 8
        %s640 = scalar_lea.vmem %s4, %s639
        // Predicated region
        $region68: #{gpt_forward.21} parent=54 // pred_check
          %p641 = pneg %p164
        $region69: #{gpt_forward.21} parent=54 // pred_check_branch
          %643 = sbr.rel (%p641) target = $region71
        $region70: #{gpt_forward.21} parent=54 // pred_region
          %s644 = smul.u32 4, %s20
        $region71: #{gpt_forward.21} parent=54 // pred_fallthru
          _
        // Predicated region
        $region72: #{gpt_forward.21} parent=54 // pred_check
          %p645 = pneg %p164
        $region73: #{gpt_forward.21} parent=54 // pred_check_branch
          %647 = sbr.rel (%p645) target = $region75
        $region74: #{gpt_forward.21} parent=54 // pred_region
          %s648 = smul.u32 4, %s20
          %p649 = scmp.lt.s32.totalorder %s648, 3
          %s650 = scalar_select %p649, %s648, 3
          %p651 = scmp.lt.s32.totalorder %s21, 0
          %s652 = scalar_select %p651, %s21, 0
          %s653 = sadd.s32 %s652, %s650
          %s654 = smul.addr %s653, 8
          %s655 = scalar_lea.vmem %s4, %s654
        $region75: #{gpt_forward.21} parent=54 // pred_fallthru
          _
      $region55: #{gpt_forward.21} parent=5 // pred_fallthru
        _
      %p656 = scmp.le.s32.totalorder 2, %s10
      // Predicated region
      $region76: #{gpt_forward.21} parent=5 // pred_check
        %p657 = pneg %p656
      $region77: #{gpt_forward.21} parent=5 // pred_check_branch
        %659 = sbr.rel (%p657) target = $region79
      $region78: #{gpt_forward.21} parent=5 // pred_region
        %s660 = ssub.s32 %s10, 2
      $region79: #{gpt_forward.21} parent=5 // pred_fallthru
        _
    $region6: #{gpt_forward.21} parent=1 // loop_footer
      %s14 = sadd.s32 1, %s10
    $region7: #{gpt_forward.21} parent=1 // loop_footer_branch
      %9 = sbr.rel target = $region3
    $region8: #{gpt_forward.21} parent=1 // loop_exit
      _

// kernel: gpt_forward.29
$region0: #{gpt_forward.29}
  #allocation0 [shape = 'u32[]', space=smem, size = 0x4, offset = 0x4, fixed_abs, tag = 'smem constant byte address 0x4 - core index']
  #allocation1 [shape = 'u32[144,128]{1,0:T(1,128)}', space=vmem, size = 0x12000, scoped, tag = 'internal scratch']
  #allocation2 [shape = 'f32[32,128]{1,0:T(8,128)}', space=vmem, size = 0x4000, scoped, tag = 'scratch operand']
  %s0 = inlined_call_operand.vmem [shape: f32[32,128], index: 0, kind: input, shape index: {}]
  %s1 = inlined_call_operand.vmem [shape: f32[1,128], index: 1, kind: input, shape index: {}]
  %s2 = inlined_call_operand.vmem [shape: f32[1,128], index: 2, kind: input, shape index: {}]
  %s3 = inlined_call_operand.vmem [shape: f32[128,128], index: 3, kind: input, shape index: {}]
  %s4 = inlined_call_operand.hbm [shape: f32[32,128], index: 4, kind: output, shape index: {}]
  %s5 = sld [smem:[#allocation0]]
  $region34: #{gpt_forward.29} parent=0
    _
  %s7 = ssub.s32 1, %s5
  %s8 = scalar_select 0, %s7, %s5
  $region1: #{gpt_forward.29} parent=0
    #allocation3 [shape = 'u8[16384]{0}', space=vmem, size = 0x4000, scoped, tag = 'output window, operand 0, single buffered']
    #allocation4 [shape = 's32[1]{0}', space=sflag, size = 0x4, scoped, tag = 'scoped memory for gpt_forward.29']
    %9 = vsyncpa [#allocation4], 0
    // Predicated region
    $region2: #{gpt_forward.29} parent=1 // pred_check
      _
    $region3: #{gpt_forward.29} parent=1 // pred_check_branch
      %11 = sbr.rel (0) target = $region5
    $region4: #{gpt_forward.29} parent=1 // pred_region
      _
    $region5: #{gpt_forward.29} parent=1 // pred_fallthru
      _
    // Predicated region
    $region6: #{gpt_forward.29} parent=1 // pred_check
      _
    $region7: #{gpt_forward.29} parent=1 // pred_check_branch
      %13 = sbr.rel (0) target = $region9
    $region8: #{gpt_forward.29} parent=1 // pred_region
      _
    $region9: #{gpt_forward.29} parent=1 // pred_fallthru
      _
    // Predicated region
    $region10: #{gpt_forward.29} parent=1 // pred_check
      _
    $region11: #{gpt_forward.29} parent=1 // pred_check_branch
      %15 = sbr.rel (0) target = $region13
    $region12: #{gpt_forward.29} parent=1 // pred_region
      _
    $region13: #{gpt_forward.29} parent=1 // pred_fallthru
      _
    // Predicated region
    $region14: #{gpt_forward.29} parent=1 // pred_check
      _
    $region15: #{gpt_forward.29} parent=1 // pred_check_branch
      %17 = sbr.rel (0) target = $region17
    $region16: #{gpt_forward.29} parent=1 // pred_region
      _
    $region17: #{gpt_forward.29} parent=1 // pred_fallthru
      _
    %p19 = scmp.eq.s32.totalorder 0, 0
    // Predicated region
    $region18: #{gpt_forward.29} parent=1 // pred_check
      %p20 = pneg %p19
    $region19: #{gpt_forward.29} parent=1 // pred_check_branch
      %22 = sbr.rel (%p20) target = $region21
    $region20: #{gpt_forward.29} parent=1 // pred_region
      %23 = vst [vmem:[#allocation2] sm:$0xff] 0.0
      %24 = vst [vmem:[#allocation2 + $0x8] sm:$0xff] 0.0
      %25 = vst [vmem:[#allocation2 + $0x10] sm:$0xff] 0.0
      %26 = vst [vmem:[#allocation2 + $0x18] sm:$0xff] 0.0
    $region21: #{gpt_forward.29} parent=1 // pred_fallthru
      _
    %v27 = vld [vmem:[%s0] sm:$0xff]
    %v28 = vld [vmem:[%s0 + $0x8] sm:$0xff]
    %v29 = vld [vmem:[%s0 + $0x10] sm:$0xff]
    %v30 = vld [vmem:[%s0 + $0x18] sm:$0xff]
    %31 = vadd.xlane.f32.xlu0 %v27
    %v32 = vpop.xlane.xlu0 %31
    %33 = vadd.xlane.f32.xlu0 %v28
    %v34 = vpop.xlane.xlu0 %33
    %35 = vadd.xlane.f32.xlu0 %v29
    %v36 = vpop.xlane.xlu0 %35
    %37 = vadd.xlane.f32.xlu0 %v30
    %v38 = vpop.xlane.xlu0 %37
    %v39 = vrcp.pop 128.0
    %v40 = vmul.f32 %v32, %v39
    %v41 = vmul.f32 %v34, %v39
    %v42 = vmul.f32 %v36, %v39
    %v43 = vmul.f32 %v38, %v39
    %v44 = vsub.f32 %v27, %v40
    %v45 = vsub.f32 %v28, %v41
    %v46 = vsub.f32 %v29, %v42
    %v47 = vsub.f32 %v30, %v43
    %v48 = vmul.f32 %v44, %v44
    %v49 = vmul.f32 %v45, %v45
    %v50 = vmul.f32 %v46, %v46
    %v51 = vmul.f32 %v47, %v47
    %52 = vadd.xlane.f32.xlu0 %v48
    %v53 = vpop.xlane.xlu0 %52
    %54 = vadd.xlane.f32.xlu0 %v49
    %v55 = vpop.xlane.xlu0 %54
    %56 = vadd.xlane.f32.xlu0 %v50
    %v57 = vpop.xlane.xlu0 %56
    %58 = vadd.xlane.f32.xlu0 %v51
    %v59 = vpop.xlane.xlu0 %58
    %v60 = vmul.f32 %v53, %v39
    %v61 = vmul.f32 %v55, %v39
    %v62 = vmul.f32 %v57, %v39
    %v63 = vmul.f32 %v59, %v39
    %v64 = vadd.f32 %v60, 1e-05
    %v65 = vadd.f32 %v61, 1e-05
    %v66 = vadd.f32 %v62, 1e-05
    %v67 = vadd.f32 %v63, 1e-05
    %v68 = vrsqrt.pop %v64
    %v69 = vrsqrt.pop %v65
    %v70 = vrsqrt.pop %v66
    %v71 = vrsqrt.pop %v67
    %v72 = vmul.f32 %v44, %v68
    %v73 = vmul.f32 %v45, %v69
    %v74 = vmul.f32 %v46, %v70
    %v75 = vmul.f32 %v47, %v71
    %v76 = vld [vmem:[%s1] sm:$0x1]
    %v78 = vlaneseq
    %v79 = vshrl.u32 %v78, 7
    %v80 = vsub.s32 0, %v79
    %v81 = vrot.slane %v76, %v80
    %v83 = vmul.f32 %v72, %v81
    %v84 = vmul.f32 %v73, %v81
    %v85 = vmul.f32 %v74, %v81
    %v86 = vmul.f32 %v75, %v81
    %v87 = vld [vmem:[%s2] sm:$0x1]
    %v89 = vlaneseq
    %v90 = vshrl.u32 %v89, 7
    %v91 = vsub.s32 0, %v90
    %v92 = vrot.slane %v87, %v91
    %v94 = vadd.f32 %v83, %v92
    %v95 = vadd.f32 %v84, %v92
    %v96 = vadd.f32 %v85, %v92
    %v97 = vadd.f32 %v86, %v92
    %v98 = vld [vmem:[#allocation2] sm:$0xff]
    %v99 = vld [vmem:[#allocation2 + $0x8] sm:$0xff]
    %v100 = vld [vmem:[#allocation2 + $0x10] sm:$0xff]
    %v101 = vld [vmem:[#allocation2 + $0x18] sm:$0xff]
    %v102 = vpack.c.bf16 %v95, %v94
    %v103 = vpack.c.bf16 %v97, %v96
    %v104 = vld [vmem:[%s3] sm:$0xff]
    %v105 = vld [vmem:[%s3 + $0x8] sm:$0xff]
    %v106 = vld [vmem:[%s3 + $0x10] sm:$0xff]
    %v107 = vld [vmem:[%s3 + $0x18] sm:$0xff]
    %v108 = vld [vmem:[%s3 + $0x20] sm:$0xff]
    %v109 = vld [vmem:[%s3 + $0x28] sm:$0xff]
    %v110 = vld [vmem:[%s3 + $0x30] sm:$0xff]
    %v111 = vld [vmem:[%s3 + $0x38] sm:$0xff]
    %v112 = vld [vmem:[%s3 + $0x40] sm:$0xff]
    %v113 = vld [vmem:[%s3 + $0x48] sm:$0xff]
    %v114 = vld [vmem:[%s3 + $0x50] sm:$0xff]
    %v115 = vld [vmem:[%s3 + $0x58] sm:$0xff]
    %v116 = vld [vmem:[%s3 + $0x60] sm:$0xff]
    %v117 = vld [vmem:[%s3 + $0x68] sm:$0xff]
    %v118 = vld [vmem:[%s3 + $0x70] sm:$0xff]
    %v119 = vld [vmem:[%s3 + $0x78] sm:$0xff]
    %v120 = vpack.c.bf16 %v105, %v104
    %v121 = vpack.c.bf16 %v107, %v106
    %v122 = vpack.c.bf16 %v109, %v108
    %v123 = vpack.c.bf16 %v111, %v110
    %v124 = vpack.c.bf16 %v113, %v112
    %v125 = vpack.c.bf16 %v115, %v114
    %v126 = vpack.c.bf16 %v117, %v116
    %v127 = vpack.c.bf16 %v119, %v118
    %128 = vmatprep.subr.bf16.mxu0 0
    %129 = vmatpush1.bf16.msra.mxu0 %v127
    %130 = vmatprep.subr.bf16.mxu0 0
    %131 = vmatpush1.bf16.msra.mxu0 %v126
    %132 = vmatprep.subr.bf16.mxu0 0
    %133 = vmatpush1.bf16.msra.mxu0 %v125
    %134 = vmatprep.subr.bf16.mxu0 0
    %135 = vmatpush1.bf16.msra.mxu0 %v124
    %136 = vmatprep.subr.bf16.mxu0 0
    %137 = vmatpush1.bf16.msra.mxu0 %v123
    %138 = vmatprep.subr.bf16.mxu0 0
    %139 = vmatpush1.bf16.msra.mxu0 %v122
    %140 = vmatprep.subr.bf16.mxu0 0
    %141 = vmatpush1.bf16.msra.mxu0 %v121
    %142 = vmatprep.subr.bf16.mxu0 0
    %143 = vmatpush1.bf16.msra.mxu0 %v120
    %144 = vmatprep.subr.bf16.mxu0 0
    %145 = vmatpush2.bf16.msra.mxu0 0
    %146 = vmatprep.subr.bf16.mxu0 0
    %147 = vmatpush2.bf16.msra.mxu0 0
    %148 = vmatprep.subr.bf16.mxu0 0
    %149 = vmatpush2.bf16.msra.mxu0 0
    %150 = vmatprep.subr.bf16.mxu0 0
    %151 = vmatpush2.bf16.msra.mxu0 0
    %152 = vmatprep.subr.bf16.mxu0 0
    %153 = vmatpush2.bf16.msra.mxu0 0
    %154 = vmatprep.subr.bf16.mxu0 0
    %155 = vmatpush2.bf16.msra.mxu0 0
    %156 = vmatprep.subr.bf16.mxu0 0
    %157 = vmatpush2.bf16.msra.mxu0 0
    %158 = vmatprep.subr.bf16.mxu0 0
    %159 = vmatpush2.bf16.msra.mxu0 0
    %160 = vmatprep.mubr.bf16.mxu0 0
    %161 = vmatmul.mubr.bf16.gmra.mxu0 %v102
    %v162 = vpop.f32.mrf.mxu0
    %v163 = vadd.f32 0.0, %v162
    %v164 = vpop.f32.mrf.mxu0
    %v165 = vpop.f32.mrf.mxu0
    %v166 = vadd.f32 0.0, %v165
    %v167 = vpop.f32.mrf.mxu0
    %168 = vmatprep.mubr.bf16.mxu0 0
    %169 = vmatmul.mubr.bf16.gmra.mxu0 %v103
    %v170 = vpop.f32.mrf.mxu0
    %v171 = vadd.f32 0.0, %v170
    %v172 = vpop.f32.mrf.mxu0
    %v173 = vpop.f32.mrf.mxu0
    %v174 = vadd.f32 0.0, %v173
    %v175 = vpop.f32.mrf.mxu0
    %176 = vdwg.mxu0
    %v177 = vadd.f32 %v98, %v163
    %v178 = vadd.f32 %v99, %v166
    %v179 = vadd.f32 %v100, %v171
    %v180 = vadd.f32 %v101, %v174
    %181 = vst [vmem:[#allocation2] sm:$0xff] %v177
    %182 = vst [vmem:[#allocation2 + $0x8] sm:$0xff] %v178
    %183 = vst [vmem:[#allocation2 + $0x10] sm:$0xff] %v179
    %184 = vst [vmem:[#allocation2 + $0x18] sm:$0xff] %v180
    // Predicated region
    $region22: #{gpt_forward.29} parent=1 // pred_check
      %p185 = pneg %p19
    $region23: #{gpt_forward.29} parent=1 // pred_check_branch
      %187 = sbr.rel (%p185) target = $region25
    $region24: #{gpt_forward.29} parent=1 // pred_region
      %v188 = vld [vmem:[#allocation2] sm:$0xff]
      %v189 = vld [vmem:[#allocation2 + $0x8] sm:$0xff]
      %v190 = vld [vmem:[#allocation2 + $0x10] sm:$0xff]
      %v191 = vld [vmem:[#allocation2 + $0x18] sm:$0xff]
      %192 = vst [vmem:[#allocation3] sm:$0xff] %v188
      %193 = vst [vmem:[#allocation3 + $0x8] sm:$0xff] %v189
      %194 = vst [vmem:[#allocation3 + $0x10] sm:$0xff] %v190
      %195 = vst [vmem:[#allocation3 + $0x18] sm:$0xff] %v191
    $region25: #{gpt_forward.29} parent=1 // pred_fallthru
      _
    // Predicated region
    $region26: #{gpt_forward.29} parent=1 // pred_check
      _
    $region27: #{gpt_forward.29} parent=1 // pred_check_branch
      %197 = sbr.rel (0) target = $region29
    $region28: #{gpt_forward.29} parent=1 // pred_region
      %s199 = ssub.s32 512, 512
      %200 = vsyncadd [#allocation4], %s199
      %s201 = sshll.u32 [#allocation3], 4
      %s202 = int_to_ptr.vmem [resolvable:$true] %s201
      %207 = dma.vmem_to_hbm [thread:$0]  %s202, 512, %s4, [#allocation4], 128, 128, 8
    $region29: #{gpt_forward.29} parent=1 // pred_fallthru
      _
    // Predicated region
    $region30: #{gpt_forward.29} parent=1 // pred_check
      _
    $region31: #{gpt_forward.29} parent=1 // pred_check_branch
      %209 = sbr.rel (0) target = $region33
    $region32: #{gpt_forward.29} parent=1 // pred_region
      %210 = dma.done [#allocation4], 512
    $region33: #{gpt_forward.29} parent=1 // pred_fallthru
      _
    %211 = vsyncpa [#allocation4], 1

</llo_original>
